<compile_context>
chip_gen: v7x
topology: tpu7x:2x2x1
jax: 0.10.0
libtpu: 0.0.40
codegen_flags: <defaults>
</compile_context>

<pallas_src>
import numpy as np
import jax
import jax.numpy as jnp
from jax.experimental import pallas as pl
from jax.experimental.pallas import tpu as pltpu


# Small configuration consistent with the module (defaults scaled down for the harness).
CFG = dict(
    n_block=3,
    input_dim=128,      # module default is 64*4=256; small shape for the test harness
    input_split=4,
    n_class=2,
    gru_n_layers=2,
)


def _round128(n):
    return ((n + 127) // 128) * 128


# ----------------------------------------------------------------------------- dims / layout
def _derive_dims(cfg):
    d = cfg["input_dim"]
    latent = d // cfg["input_split"]          # FoldAE latent_dim -> gru_hidden_dim
    nb = cfg["n_block"]
    enc_dims = [d]
    for i in range(nb - 1):
        enc_dims.append(max(latent, d // (2 ** (i + 1))))
    enc_dims.append(latent)
    dec_dims = enc_dims[::-1]
    return enc_dims, dec_dims, latent


def _layout(cfg):
    """Canonical (din, dout) of every packed weight block and its row offset in the slab.

    Order: encoder layers, decoder layers, per GRU layer [fused (din+H, 3H), Whh_n (H, H)],
    classifier. Bias slab rows use the same canonical order (one row per block).
    """
    enc_dims, dec_dims, latent = _derive_dims(cfg)
    H = latent
    nl = cfg["gru_n_layers"]
    ncls = cfg["n_class"]
    shapes = []
    for i in range(len(enc_dims) - 1):
        shapes.append((enc_dims[i], enc_dims[i + 1]))
    for i in range(len(dec_dims) - 1):
        shapes.append((dec_dims[i], dec_dims[i + 1]))
    for l in range(nl):
        din = latent if l == 0 else H
        shapes.append((din + H, 3 * H))       # fused [Wih ; Whh(r,z) | 0] block
        shapes.append((H, H))                 # Whh_n block
    shapes.append((H, ncls))
    offs, r = [], 0
    for (din, _) in shapes:
        offs.append(r)
        r += din
    return shapes, offs, r


# ----------------------------------------------------------------------------- params
def init_params(key, cfg):
    enc_dims, dec_dims, latent = _derive_dims(cfg)
    H = latent
    nl = cfg["gru_n_layers"]
    keys = iter(jax.random.split(key, 64))

    def lin(din, dout):
        scale = 1.0 / np.sqrt(din)
        w = scale * jax.random.normal(next(keys), (dout, din), jnp.float32)
        b = scale * jax.random.normal(next(keys), (dout,), jnp.float32)
        return w, b

    params = dict(enc=[], dec=[], gru=[], cls=None)
    for i in range(len(enc_dims) - 1):
        params["enc"].append(lin(enc_dims[i], enc_dims[i + 1]))
    for i in range(len(dec_dims) - 1):
        params["dec"].append(lin(dec_dims[i], dec_dims[i + 1]))
    for l in range(nl):
        din = latent if l == 0 else H
        scale = 1.0 / np.sqrt(H)
        wih = scale * jax.random.normal(next(keys), (3 * H, din), jnp.float32)
        whh = scale * jax.random.normal(next(keys), (3 * H, H), jnp.float32)
        bih = scale * jax.random.normal(next(keys), (3 * H,), jnp.float32)
        bhh = scale * jax.random.normal(next(keys), (3 * H,), jnp.float32)
        params["gru"].append((wih, whh, bih, bhh))
    params["cls"] = lin(H, cfg["n_class"])
    return params


def pack_params_for_kernel(params, cfg):
    """Pack every weight matrix into one zero-padded bf16 slab and every bias into one
    f32 slab (128-lane multiple width, one DMA each, static row-offset slicing in-kernel)."""
    enc_dims, dec_dims, latent = _derive_dims(cfg)
    H = latent
    blocks, biases = [], []
    for w, b in params["enc"]:
        blocks.append(np.asarray(w, np.float32).T)
        biases.append(np.asarray(b, np.float32))
    for w, b in params["dec"]:
        blocks.append(np.asarray(w, np.float32).T)
        biases.append(np.asarray(b, np.float32))
    for wih, whh, bih, bhh in params["gru"]:
        wih = np.asarray(wih, np.float32)
        whh = np.asarray(whh, np.float32)
        bih = np.asarray(bih, np.float32)
        bhh = np.asarray(bhh, np.float32)
        # Fused block: [x, h] @ big -> cols [0:2H] = (gi + gh)_{r,z}, cols [2H:3H] = gi_n
        whh_rz_t = whh[: 2 * H, :].T                                   # (H, 2H)
        big = np.concatenate(
            [wih.T,
             np.concatenate([whh_rz_t, np.zeros((H, H), np.float32)], axis=1)],
            axis=0)                                                    # (din+H, 3H)
        blocks.append(big)
        blocks.append(whh[2 * H:, :].T)                                # (H, H)  -> gh_n
        biases.append(np.concatenate([bih[: 2 * H] + bhh[: 2 * H], bih[2 * H:]]))
        biases.append(bhh[2 * H:])
    wc, bc = params["cls"]
    blocks.append(np.asarray(wc, np.float32).T)
    biases.append(np.asarray(bc, np.float32))

    shapes, offs, total_rows = _layout(cfg)
    slab_w = _round128(max(d for _, d in shapes))
    w_slab = np.zeros((total_rows, slab_w), np.float32)
    for blk, off in zip(blocks, offs):
        w_slab[off:off + blk.shape[0], : blk.shape[1]] = blk
    b_slab = np.zeros((len(biases), slab_w), np.float32)
    for i, b in enumerate(biases):
        b_slab[i, : b.shape[0]] = b
    return jnp.asarray(w_slab, dtype=jnp.bfloat16), jnp.asarray(b_slab, dtype=jnp.float32)


# ----------------------------------------------------------------------------- pallas forward
def make_forward(cfg, batch, tb):
    enc_dims, dec_dims, latent = _derive_dims(cfg)
    H = latent
    nl = cfg["gru_n_layers"]
    ncls = cfg["n_class"]
    D = cfg["input_dim"]
    n_enc = len(enc_dims) - 1
    n_dec = len(dec_dims) - 1
    shapes, offs, total_rows = _layout(cfg)
    slab_w = _round128(max(d for _, d in shapes))
    n_bias = len(shapes)
    hw = nl * H                                   # flat hidden-state width
    pack_w = _round128((nl + 1) * H + ncls)       # packed output slab width
    gate_w = _round128(3 * H)                     # lane-padded GRU gate width
    cls_w = _round128(ncls)                       # lane-padded logits width

    assert batch % tb == 0 and tb % 8 == 0

    def kernel(x_ref, h_ref, w_ref, b_ref, xhat_ref, pack_ref):
        def mm(a, idx, dout=None):
            r0 = offs[idx]
            din, dnat = shapes[idx]
            dout = dnat if dout is None else dout
            w = w_ref[r0:r0 + din, 0:dout]                      # bf16 slab slice (zero-padded cols)
            return jnp.dot(a.astype(jnp.bfloat16), w,
                           preferred_element_type=jnp.float32)

        def bias(idx, width):
            return b_ref[idx:idx + 1, 0:width]                  # (1, width) broadcasts over batch

        relu = lambda v: jnp.maximum(v, 0.0)

        # ---- FoldAE encoder ----
        a = x_ref[...]                                          # (TB, D) f32
        for i in range(n_enc):
            a = mm(a, i) + bias(i, shapes[i][1])
            if i < n_enc - 1:
                a = relu(a)
        z = a                                                   # (TB, H)

        # ---- FoldAE decoder ----
        a = z
        for i in range(n_dec):
            idx = n_enc + i
            a = mm(a, idx) + bias(idx, shapes[idx][1])
            if i < n_dec - 1:
                a = relu(a)
        xhat_ref[...] = a                                       # (TB, D), lane-dense store

        # ---- GRU, seq_len = 1, PyTorch gate order (r, z, n); eval -> no dropout ----
        xt = z
        h_news = []
        for l in range(nl):
            big_idx = n_enc + n_dec + 2 * l
            n_idx = big_idx + 1
            h_prev = h_ref[:, l * H:(l + 1) * H]                # (TB, H)
            ah = jnp.concatenate([xt, h_prev], axis=1)          # (TB, din+H)
            # one fused matmul: cols [0:H]=r pre-act, [H:2H]=z pre-act, [2H:3H]=Wih_n x + b_in
            g = mm(ah, big_idx, gate_w) + bias(big_idx, gate_w)
            gh_n = mm(h_prev, n_idx) + bias(n_idx, H)           # (TB, H) = Whh_n h + b_hn
            r = jax.nn.sigmoid(g[:, 0:H])
            zg = jax.nn.sigmoid(g[:, H:2 * H])
            n = jnp.tanh(g[:, 2 * H:3 * H] + r * gh_n)
            h_new = (1.0 - zg) * n + zg * h_prev
            h_news.append(h_new)
            xt = h_new

        # ---- classifier: ReLU -> Linear -> Softmax(dim=1) ----
        cls_idx = n_enc + n_dec + 2 * nl
        out = relu(xt)
        logits = (mm(out, cls_idx, cls_w) + bias(cls_idx, cls_w))[:, 0:ncls]
        m = jnp.max(logits, axis=-1, keepdims=True)
        e = jnp.exp(logits - m)
        probs = e * pl.reciprocal(jnp.sum(e, axis=-1, keepdims=True), approx=True)

        # ---- lane-dense packed output: [ z | h_0 .. h_{nl-1} | probs | zero pad ] ----
        pack_ref[:, 0:H] = z
        for l in range(nl):
            pack_ref[:, (l + 1) * H:(l + 2) * H] = h_news[l]
        off = (nl + 1) * H
        pack_ref[:, off:off + ncls] = probs
        if off + ncls < pack_w:
            pack_ref[:, off + ncls:pack_w] = jnp.zeros(
                (tb, pack_w - off - ncls), jnp.float32)

    pallas_fn = pl.pallas_call(
        kernel,
        out_shape=(jax.ShapeDtypeStruct((batch, D), jnp.float32),
                   jax.ShapeDtypeStruct((batch, pack_w), jnp.float32)),
        grid_spec=pltpu.PrefetchScalarGridSpec(
            num_scalar_prefetch=0,
            grid=(batch // tb,),
            in_specs=[
                pl.BlockSpec((tb, D), lambda n: (n, 0)),
                pl.BlockSpec((tb, hw), lambda n: (n, 0)),
                pl.BlockSpec((total_rows, slab_w), lambda n: (0, 0)),   # grid-invariant weight slab
                pl.BlockSpec((n_bias, slab_w), lambda n: (0, 0)),       # grid-invariant bias slab
            ],
            out_specs=(
                pl.BlockSpec((tb, D), lambda n: (n, 0)),
                pl.BlockSpec((tb, pack_w), lambda n: (n, 0)),
            )),
        compiler_params=pltpu.CompilerParams(
            dimension_semantics=("parallel",)),    # batch tiles are independent (v7x: 2 TCs)
    )

    def forward(x, h0, w_slab, b_slab):
        # h0: (nl, batch, H) -> flat (batch, nl*H) lane-dense tile for the kernel.
        h_flat = jnp.transpose(h0, (1, 0, 2)).reshape(batch, hw)
        x_hat, packed = pallas_fn(x, h_flat, w_slab, b_slab)
        z = packed[:, 0:H]
        h_out = jnp.transpose(
            packed[:, H:(nl + 1) * H].reshape(batch, nl, H), (1, 0, 2))
        probs = packed[:, (nl + 1) * H:(nl + 1) * H + ncls]
        return probs, z, x_hat, h_out

    return jax.jit(forward)


# ----------------------------------------------------------------------------- pure-JAX reference
def reference_forward(x, h0, params, cfg):
    _, _, latent = _derive_dims(cfg)
    H = latent
    nl = cfg["gru_n_layers"]
    relu = jax.nn.relu

    a = x
    for i, (w, b) in enumerate(params["enc"]):
        a = a @ w.T + b[None, :]
        if i < len(params["enc"]) - 1:
            a = relu(a)
    z = a
    a = z
    for i, (w, b) in enumerate(params["dec"]):
        a = a @ w.T + b[None, :]
        if i < len(params["dec"]) - 1:
            a = relu(a)
    x_hat = a

    xt = z
    h_new = []
    for l in range(nl):
        wih, whh, bih, bhh = params["gru"][l]
        gi = xt @ wih.T + bih[None, :]
        gh = h0[l] @ whh.T + bhh[None, :]
        r = jax.nn.sigmoid(gi[:, 0:H] + gh[:, 0:H])
        zg = jax.nn.sigmoid(gi[:, H:2 * H] + gh[:, H:2 * H])
        n = jnp.tanh(gi[:, 2 * H:] + r * gh[:, 2 * H:])
        hl = (1.0 - zg) * n + zg * h0[l]
        h_new.append(hl)
        xt = hl
    out = relu(xt)
    wc, bc = params["cls"]
    logits = out @ wc.T + bc[None, :]
    probs = jax.nn.softmax(logits, axis=1)
    return probs, z, x_hat, jnp.stack(h_new, axis=0)


# ----------------------------------------------------------------------------- main
if __name__ == "__main__":
    cfg = CFG
    batch, tb = 512, 128        # 4 "parallel" batch tiles of 128 rows each
    _, _, latent = _derive_dims(cfg)

    key = jax.random.PRNGKey(0)
    kx, kh, kp = jax.random.split(key, 3)
    x = jax.random.normal(kx, (batch, cfg["input_dim"]), dtype=jnp.float32)
    h0 = 0.5 * jax.random.normal(kh, (cfg["gru_n_layers"], batch, latent),
                                 dtype=jnp.float32)

    params = init_params(kp, cfg)
    w_slab, b_slab = pack_params_for_kernel(params, cfg)

    forward = make_forward(cfg, batch, tb)
    probs, z, x_hat, h_out = jax.block_until_ready(forward(x, h0, w_slab, b_slab))

    probs_r, z_r, xhat_r, h_r = reference_forward(x, h0, params, cfg)
    # bf16 matmul inputs (f32 accumulation) -> slightly looser tolerances than pure f32.
    np.testing.assert_allclose(np.asarray(z), np.asarray(z_r), rtol=2e-2, atol=2e-2)
    np.testing.assert_allclose(np.asarray(x_hat), np.asarray(xhat_r), rtol=2e-2, atol=2e-2)
    np.testing.assert_allclose(np.asarray(h_out), np.asarray(h_r), rtol=2e-2, atol=2e-2)
    np.testing.assert_allclose(np.asarray(probs), np.asarray(probs_r), rtol=2e-2, atol=2e-2)
    print("KERNEL_OK")
</pallas_src>

<mosaic_0001>
module attributes {stable_mosaic.version = 11 : i64} {
  func.func @kernel(%arg0: i32, %arg1: memref<128x128xf32, #tpu.memory_space<vmem>>, %arg2: memref<128x64xf32, #tpu.memory_space<vmem>>, %arg3: memref<576x128xbf16, #tpu.memory_space<vmem>>, %arg4: memref<11x128xf32, #tpu.memory_space<vmem>>, %arg5: memref<128x128xf32, #tpu.memory_space<vmem>>, %arg6: memref<128x128xf32, #tpu.memory_space<vmem>>) attributes {dimension_semantics = [#tpu.dimension_semantics<parallel>], iteration_bounds = array<i64: 4>, scalar_prefetch = 0 : i64, scratch_operands = 0 : i64, tpu.core_type = #tpu.core_type<tc>, window_params = [{transform_indices = @transform_0, window_bounds = array<i64: 128, 128>}, {transform_indices = @transform_1, window_bounds = array<i64: 128, 64>}, {pipeline_mode = #tpu.pipeline_mode<synchronous>, transform_indices = @transform_2, window_bounds = array<i64: 576, 128>}, {pipeline_mode = #tpu.pipeline_mode<synchronous>, transform_indices = @transform_3, window_bounds = array<i64: 11, 128>}, {transform_indices = @transform_4, window_bounds = array<i64: 128, 128>}, {transform_indices = @transform_5, window_bounds = array<i64: 128, 128>}]} {
    %c0 = arith.constant 0 : index
    %c0_0 = arith.constant 0 : index
    %0 = vector.load %arg1[%c0, %c0_0] : memref<128x128xf32, #tpu.memory_space<vmem>>, vector<128x128xf32>
    %c0_1 = arith.constant 0 : index
    %c0_2 = arith.constant 0 : index
    %1 = vector.load %arg3[%c0_1, %c0_2] : memref<576x128xbf16, #tpu.memory_space<vmem>>, vector<128x64xbf16>
    %2 = arith.truncf %0 : vector<128x128xf32> to vector<128x128xbf16>
    %cst = arith.constant dense<0.000000e+00> : vector<128x64xf32>
    %3 = tpu.matmul %2, %1, %cst {dimension_numbers = #tpu.dot_dimension_numbers<[1], [0], [0], [1], [0, 0, 1, 1], [], []>} : vector<128x128xbf16>, vector<128x64xbf16>, vector<128x64xf32> -> vector<128x64xf32>
    %c0_3 = arith.constant 0 : index
    %c0_4 = arith.constant 0 : index
    %4 = vector.load %arg4[%c0_3, %c0_4] : memref<11x128xf32, #tpu.memory_space<vmem>>, vector<1x64xf32>
    %5 = vector.broadcast %4 : vector<1x64xf32> to vector<128x64xf32>
    %6 = arith.addf %3, %5 : vector<128x64xf32>
    %cst_5 = arith.constant 0.000000e+00 : f32
    %7 = vector.broadcast %cst_5 : f32 to vector<128x64xf32>
    %8 = arith.maximumf %6, %7 : vector<128x64xf32>
    %c128 = arith.constant 128 : index
    %c0_6 = arith.constant 0 : index
    %9 = vector.load %arg3[%c128, %c0_6] : memref<576x128xbf16, #tpu.memory_space<vmem>>, vector<64x32xbf16>
    %10 = arith.truncf %8 : vector<128x64xf32> to vector<128x64xbf16>
    %cst_7 = arith.constant dense<0.000000e+00> : vector<128x32xf32>
    %11 = tpu.matmul %10, %9, %cst_7 {dimension_numbers = #tpu.dot_dimension_numbers<[1], [0], [0], [1], [0, 0, 1, 1], [], []>} : vector<128x64xbf16>, vector<64x32xbf16>, vector<128x32xf32> -> vector<128x32xf32>
    %c1 = arith.constant 1 : index
    %c0_8 = arith.constant 0 : index
    %12 = vector.load %arg4[%c1, %c0_8] : memref<11x128xf32, #tpu.memory_space<vmem>>, vector<1x32xf32>
    %13 = vector.broadcast %12 : vector<1x32xf32> to vector<128x32xf32>
    %14 = arith.addf %11, %13 : vector<128x32xf32>
    %cst_9 = arith.constant 0.000000e+00 : f32
    %15 = vector.broadcast %cst_9 : f32 to vector<128x32xf32>
    %16 = arith.maximumf %14, %15 : vector<128x32xf32>
    %c192 = arith.constant 192 : index
    %c0_10 = arith.constant 0 : index
    %17 = vector.load %arg3[%c192, %c0_10] : memref<576x128xbf16, #tpu.memory_space<vmem>>, vector<32x32xbf16>
    %18 = arith.truncf %16 : vector<128x32xf32> to vector<128x32xbf16>
    %cst_11 = arith.constant dense<0.000000e+00> : vector<128x32xf32>
    %19 = tpu.matmul %18, %17, %cst_11 {dimension_numbers = #tpu.dot_dimension_numbers<[1], [0], [0], [1], [0, 0, 1, 1], [], []>} : vector<128x32xbf16>, vector<32x32xbf16>, vector<128x32xf32> -> vector<128x32xf32>
    %c2 = arith.constant 2 : index
    %c0_12 = arith.constant 0 : index
    %20 = vector.load %arg4[%c2, %c0_12] : memref<11x128xf32, #tpu.memory_space<vmem>>, vector<1x32xf32>
    %21 = vector.broadcast %20 : vector<1x32xf32> to vector<128x32xf32>
    %22 = arith.addf %19, %21 : vector<128x32xf32>
    %c224 = arith.constant 224 : index
    %c0_13 = arith.constant 0 : index
    %23 = vector.load %arg3[%c224, %c0_13] : memref<576x128xbf16, #tpu.memory_space<vmem>>, vector<32x32xbf16>
    %24 = arith.truncf %22 : vector<128x32xf32> to vector<128x32xbf16>
    %cst_14 = arith.constant dense<0.000000e+00> : vector<128x32xf32>
    %25 = tpu.matmul %24, %23, %cst_14 {dimension_numbers = #tpu.dot_dimension_numbers<[1], [0], [0], [1], [0, 0, 1, 1], [], []>} : vector<128x32xbf16>, vector<32x32xbf16>, vector<128x32xf32> -> vector<128x32xf32>
    %c3 = arith.constant 3 : index
    %c0_15 = arith.constant 0 : index
    %26 = vector.load %arg4[%c3, %c0_15] : memref<11x128xf32, #tpu.memory_space<vmem>>, vector<1x32xf32>
    %27 = vector.broadcast %26 : vector<1x32xf32> to vector<128x32xf32>
    %28 = arith.addf %25, %27 : vector<128x32xf32>
    %cst_16 = arith.constant 0.000000e+00 : f32
    %29 = vector.broadcast %cst_16 : f32 to vector<128x32xf32>
    %30 = arith.maximumf %28, %29 : vector<128x32xf32>
    %c256 = arith.constant 256 : index
    %c0_17 = arith.constant 0 : index
    %31 = vector.load %arg3[%c256, %c0_17] : memref<576x128xbf16, #tpu.memory_space<vmem>>, vector<32x64xbf16>
    %32 = arith.truncf %30 : vector<128x32xf32> to vector<128x32xbf16>
    %cst_18 = arith.constant dense<0.000000e+00> : vector<128x64xf32>
    %33 = tpu.matmul %32, %31, %cst_18 {dimension_numbers = #tpu.dot_dimension_numbers<[1], [0], [0], [1], [0, 0, 1, 1], [], []>} : vector<128x32xbf16>, vector<32x64xbf16>, vector<128x64xf32> -> vector<128x64xf32>
    %c4 = arith.constant 4 : index
    %c0_19 = arith.constant 0 : index
    %34 = vector.load %arg4[%c4, %c0_19] : memref<11x128xf32, #tpu.memory_space<vmem>>, vector<1x64xf32>
    %35 = vector.broadcast %34 : vector<1x64xf32> to vector<128x64xf32>
    %36 = arith.addf %33, %35 : vector<128x64xf32>
    %cst_20 = arith.constant 0.000000e+00 : f32
    %37 = vector.broadcast %cst_20 : f32 to vector<128x64xf32>
    %38 = arith.maximumf %36, %37 : vector<128x64xf32>
    %c288 = arith.constant 288 : index
    %c0_21 = arith.constant 0 : index
    %39 = vector.load %arg3[%c288, %c0_21] : memref<576x128xbf16, #tpu.memory_space<vmem>>, vector<64x128xbf16>
    %40 = arith.truncf %38 : vector<128x64xf32> to vector<128x64xbf16>
    %cst_22 = arith.constant dense<0.000000e+00> : vector<128x128xf32>
    %41 = tpu.matmul %40, %39, %cst_22 {dimension_numbers = #tpu.dot_dimension_numbers<[1], [0], [0], [1], [0, 0, 1, 1], [], []>} : vector<128x64xbf16>, vector<64x128xbf16>, vector<128x128xf32> -> vector<128x128xf32>
    %c5 = arith.constant 5 : index
    %c0_23 = arith.constant 0 : index
    %42 = vector.load %arg4[%c5, %c0_23] : memref<11x128xf32, #tpu.memory_space<vmem>>, vector<1x128xf32>
    %43 = vector.broadcast %42 : vector<1x128xf32> to vector<128x128xf32>
    %44 = arith.addf %41, %43 : vector<128x128xf32>
    %c0_24 = arith.constant 0 : index
    %c0_25 = arith.constant 0 : index
    %45 = vector.load %arg5[%c0_24, %c0_25] : memref<128x128xf32, #tpu.memory_space<vmem>>, vector<128x128xf32>
    tpu.vector_store %arg5[%c0_24, %c0_25], %44 {strides = array<i32>} : memref<128x128xf32, #tpu.memory_space<vmem>>, vector<128x128xf32>,
    %c0_26 = arith.constant 0 : index
    %c0_27 = arith.constant 0 : index
    %46 = vector.load %arg2[%c0_26, %c0_27] : memref<128x64xf32, #tpu.memory_space<vmem>>, vector<128x32xf32>
    %47 = tpu.concatenate %22, %46 in 1 : vector<128x32xf32>, vector<128x32xf32> -> vector<128x64xf32>
    %c352 = arith.constant 352 : index
    %c0_28 = arith.constant 0 : index
    %48 = vector.load %arg3[%c352, %c0_28] : memref<576x128xbf16, #tpu.memory_space<vmem>>, vector<64x128xbf16>
    %49 = arith.truncf %47 : vector<128x64xf32> to vector<128x64xbf16>
    %cst_29 = arith.constant dense<0.000000e+00> : vector<128x128xf32>
    %50 = tpu.matmul %49, %48, %cst_29 {dimension_numbers = #tpu.dot_dimension_numbers<[1], [0], [0], [1], [0, 0, 1, 1], [], []>} : vector<128x64xbf16>, vector<64x128xbf16>, vector<128x128xf32> -> vector<128x128xf32>
    %c6 = arith.constant 6 : index
    %c0_30 = arith.constant 0 : index
    %51 = vector.load %arg4[%c6, %c0_30] : memref<11x128xf32, #tpu.memory_space<vmem>>, vector<1x128xf32>
    %52 = vector.broadcast %51 : vector<1x128xf32> to vector<128x128xf32>
    %53 = arith.addf %50, %52 : vector<128x128xf32>
    %c416 = arith.constant 416 : index
    %c0_31 = arith.constant 0 : index
    %54 = vector.load %arg3[%c416, %c0_31] : memref<576x128xbf16, #tpu.memory_space<vmem>>, vector<32x32xbf16>
    %55 = arith.truncf %46 : vector<128x32xf32> to vector<128x32xbf16>
    %cst_32 = arith.constant dense<0.000000e+00> : vector<128x32xf32>
    %56 = tpu.matmul %55, %54, %cst_32 {dimension_numbers = #tpu.dot_dimension_numbers<[1], [0], [0], [1], [0, 0, 1, 1], [], []>} : vector<128x32xbf16>, vector<32x32xbf16>, vector<128x32xf32> -> vector<128x32xf32>
    %c7 = arith.constant 7 : index
    %c0_33 = arith.constant 0 : index
    %57 = vector.load %arg4[%c7, %c0_33] : memref<11x128xf32, #tpu.memory_space<vmem>>, vector<1x32xf32>
    %58 = vector.broadcast %57 : vector<1x32xf32> to vector<128x32xf32>
    %59 = arith.addf %56, %58 : vector<128x32xf32>
    %60 = vector.extract_strided_slice %53 {offsets = [0, 0], sizes = [128, 32], strides = [1, 1]} : vector<128x128xf32> to vector<128x32xf32>
    %61 = arith.negf %60 : vector<128x32xf32>
    %62 = math.exp %61 : vector<128x32xf32>
    %cst_34 = arith.constant 1.000000e+00 : f32
    %63 = vector.broadcast %cst_34 : f32 to vector<128x32xf32>
    %64 = arith.addf %63, %62 : vector<128x32xf32>
    %65 = arith.divf %63, %64 : vector<128x32xf32>
    %66 = vector.extract_strided_slice %53 {offsets = [0, 32], sizes = [128, 32], strides = [1, 1]} : vector<128x128xf32> to vector<128x32xf32>
    %67 = arith.negf %66 : vector<128x32xf32>
    %68 = math.exp %67 : vector<128x32xf32>
    %cst_35 = arith.constant 1.000000e+00 : f32
    %69 = vector.broadcast %cst_35 : f32 to vector<128x32xf32>
    %70 = arith.addf %69, %68 : vector<128x32xf32>
    %71 = arith.divf %69, %70 : vector<128x32xf32>
    %72 = vector.extract_strided_slice %53 {offsets = [0, 64], sizes = [128, 32], strides = [1, 1]} : vector<128x128xf32> to vector<128x32xf32>
    %73 = arith.mulf %65, %59 : vector<128x32xf32>
    %74 = arith.addf %72, %73 : vector<128x32xf32>
    %75 = math.tanh %74 : vector<128x32xf32>
    %cst_36 = arith.constant 1.000000e+00 : f32
    %76 = vector.broadcast %cst_36 : f32 to vector<128x32xf32>
    %77 = arith.subf %76, %71 : vector<128x32xf32>
    %78 = arith.mulf %77, %75 : vector<128x32xf32>
    %79 = arith.mulf %71, %46 : vector<128x32xf32>
    %80 = arith.addf %78, %79 : vector<128x32xf32>
    %c0_37 = arith.constant 0 : index
    %c32 = arith.constant 32 : index
    %81 = vector.load %arg2[%c0_37, %c32] : memref<128x64xf32, #tpu.memory_space<vmem>>, vector<128x32xf32>
    %82 = tpu.concatenate %80, %81 in 1 : vector<128x32xf32>, vector<128x32xf32> -> vector<128x64xf32>
    %c448 = arith.constant 448 : index
    %c0_38 = arith.constant 0 : index
    %83 = vector.load %arg3[%c448, %c0_38] : memref<576x128xbf16, #tpu.memory_space<vmem>>, vector<64x128xbf16>
    %84 = arith.truncf %82 : vector<128x64xf32> to vector<128x64xbf16>
    %cst_39 = arith.constant dense<0.000000e+00> : vector<128x128xf32>
    %85 = tpu.matmul %84, %83, %cst_39 {dimension_numbers = #tpu.dot_dimension_numbers<[1], [0], [0], [1], [0, 0, 1, 1], [], []>} : vector<128x64xbf16>, vector<64x128xbf16>, vector<128x128xf32> -> vector<128x128xf32>
    %c8 = arith.constant 8 : index
    %c0_40 = arith.constant 0 : index
    %86 = vector.load %arg4[%c8, %c0_40] : memref<11x128xf32, #tpu.memory_space<vmem>>, vector<1x128xf32>
    %87 = vector.broadcast %86 : vector<1x128xf32> to vector<128x128xf32>
    %88 = arith.addf %85, %87 : vector<128x128xf32>
    %c512 = arith.constant 512 : index
    %c0_41 = arith.constant 0 : index
    %89 = vector.load %arg3[%c512, %c0_41] : memref<576x128xbf16, #tpu.memory_space<vmem>>, vector<32x32xbf16>
    %90 = arith.truncf %81 : vector<128x32xf32> to vector<128x32xbf16>
    %cst_42 = arith.constant dense<0.000000e+00> : vector<128x32xf32>
    %91 = tpu.matmul %90, %89, %cst_42 {dimension_numbers = #tpu.dot_dimension_numbers<[1], [0], [0], [1], [0, 0, 1, 1], [], []>} : vector<128x32xbf16>, vector<32x32xbf16>, vector<128x32xf32> -> vector<128x32xf32>
    %c9 = arith.constant 9 : index
    %c0_43 = arith.constant 0 : index
    %92 = vector.load %arg4[%c9, %c0_43] : memref<11x128xf32, #tpu.memory_space<vmem>>, vector<1x32xf32>
    %93 = vector.broadcast %92 : vector<1x32xf32> to vector<128x32xf32>
    %94 = arith.addf %91, %93 : vector<128x32xf32>
    %95 = vector.extract_strided_slice %88 {offsets = [0, 0], sizes = [128, 32], strides = [1, 1]} : vector<128x128xf32> to vector<128x32xf32>
    %96 = arith.negf %95 : vector<128x32xf32>
    %97 = math.exp %96 : vector<128x32xf32>
    %cst_44 = arith.constant 1.000000e+00 : f32
    %98 = vector.broadcast %cst_44 : f32 to vector<128x32xf32>
    %99 = arith.addf %98, %97 : vector<128x32xf32>
    %100 = arith.divf %98, %99 : vector<128x32xf32>
    %101 = vector.extract_strided_slice %88 {offsets = [0, 32], sizes = [128, 32], strides = [1, 1]} : vector<128x128xf32> to vector<128x32xf32>
    %102 = arith.negf %101 : vector<128x32xf32>
    %103 = math.exp %102 : vector<128x32xf32>
    %cst_45 = arith.constant 1.000000e+00 : f32
    %104 = vector.broadcast %cst_45 : f32 to vector<128x32xf32>
    %105 = arith.addf %104, %103 : vector<128x32xf32>
    %106 = arith.divf %104, %105 : vector<128x32xf32>
    %107 = vector.extract_strided_slice %88 {offsets = [0, 64], sizes = [128, 32], strides = [1, 1]} : vector<128x128xf32> to vector<128x32xf32>
    %108 = arith.mulf %100, %94 : vector<128x32xf32>
    %109 = arith.addf %107, %108 : vector<128x32xf32>
    %110 = math.tanh %109 : vector<128x32xf32>
    %cst_46 = arith.constant 1.000000e+00 : f32
    %111 = vector.broadcast %cst_46 : f32 to vector<128x32xf32>
    %112 = arith.subf %111, %106 : vector<128x32xf32>
    %113 = arith.mulf %112, %110 : vector<128x32xf32>
    %114 = arith.mulf %106, %81 : vector<128x32xf32>
    %115 = arith.addf %113, %114 : vector<128x32xf32>
    %cst_47 = arith.constant 0.000000e+00 : f32
    %116 = vector.broadcast %cst_47 : f32 to vector<128x32xf32>
    %117 = arith.maximumf %115, %116 : vector<128x32xf32>
    %c544 = arith.constant 544 : index
    %c0_48 = arith.constant 0 : index
    %118 = vector.load %arg3[%c544, %c0_48] : memref<576x128xbf16, #tpu.memory_space<vmem>>, vector<32x128xbf16>
    %119 = arith.truncf %117 : vector<128x32xf32> to vector<128x32xbf16>
    %cst_49 = arith.constant dense<0.000000e+00> : vector<128x128xf32>
    %120 = tpu.matmul %119, %118, %cst_49 {dimension_numbers = #tpu.dot_dimension_numbers<[1], [0], [0], [1], [0, 0, 1, 1], [], []>} : vector<128x32xbf16>, vector<32x128xbf16>, vector<128x128xf32> -> vector<128x128xf32>
    %c10 = arith.constant 10 : index
    %c0_50 = arith.constant 0 : index
    %121 = vector.load %arg4[%c10, %c0_50] : memref<11x128xf32, #tpu.memory_space<vmem>>, vector<1x128xf32>
    %122 = vector.broadcast %121 : vector<1x128xf32> to vector<128x128xf32>
    %123 = arith.addf %120, %122 : vector<128x128xf32>
    %124 = vector.extract_strided_slice %123 {offsets = [0, 0], sizes = [128, 2], strides = [1, 1]} : vector<128x128xf32> to vector<128x2xf32>
    %cst_51 = arith.constant dense<0xFF800000> : vector<128xf32>
    %125 = vector.multi_reduction <maximumf>, %124, %cst_51 [1] : vector<128x2xf32> to vector<128xf32>
    %126 = vector.shape_cast %125 : vector<128xf32> to vector<128x1xf32>
    %127 = vector.broadcast %126 : vector<128x1xf32> to vector<128x2xf32>
    %128 = arith.subf %124, %127 : vector<128x2xf32>
    %129 = math.exp %128 : vector<128x2xf32>
    %cst_52 = arith.constant dense<0.000000e+00> : vector<128xf32>
    %130 = vector.multi_reduction <add>, %129, %cst_52 [1] : vector<128x2xf32> to vector<128xf32>
    %131 = vector.shape_cast %130 : vector<128xf32> to vector<128x1xf32>
    %132 = tpu.reciprocal %131 {approx = true} : vector<128x1xf32> -> vector<128x1xf32>
    %133 = vector.broadcast %132 : vector<128x1xf32> to vector<128x2xf32>
    %134 = arith.mulf %129, %133 : vector<128x2xf32>
    %c0_53 = arith.constant 0 : index
    %c0_54 = arith.constant 0 : index
    %135 = vector.load %arg6[%c0_53, %c0_54] : memref<128x128xf32, #tpu.memory_space<vmem>>, vector<128x32xf32>
    tpu.vector_store %arg6[%c0_53, %c0_54], %22 {strides = array<i32>} : memref<128x128xf32, #tpu.memory_space<vmem>>, vector<128x32xf32>,
    %c0_55 = arith.constant 0 : index
    %c32_56 = arith.constant 32 : index
    %136 = vector.load %arg6[%c0_55, %c32_56] : memref<128x128xf32, #tpu.memory_space<vmem>>, vector<128x32xf32>
    tpu.vector_store %arg6[%c0_55, %c32_56], %80 {strides = array<i32>} : memref<128x128xf32, #tpu.memory_space<vmem>>, vector<128x32xf32>,
    %c0_57 = arith.constant 0 : index
    %c64 = arith.constant 64 : index
    %137 = vector.load %arg6[%c0_57, %c64] : memref<128x128xf32, #tpu.memory_space<vmem>>, vector<128x32xf32>
    tpu.vector_store %arg6[%c0_57, %c64], %115 {strides = array<i32>} : memref<128x128xf32, #tpu.memory_space<vmem>>, vector<128x32xf32>,
    %c0_58 = arith.constant 0 : index
    %c96 = arith.constant 96 : index
    %138 = vector.load %arg6[%c0_58, %c96] : memref<128x128xf32, #tpu.memory_space<vmem>>, vector<128x2xf32>
    tpu.vector_store %arg6[%c0_58, %c96], %134 {strides = array<i32>} : memref<128x128xf32, #tpu.memory_space<vmem>>, vector<128x2xf32>,
    %cst_59 = arith.constant 0.000000e+00 : f32
    %139 = vector.broadcast %cst_59 : f32 to vector<128x30xf32>
    %c0_60 = arith.constant 0 : index
    %c98 = arith.constant 98 : index
    %140 = vector.load %arg6[%c0_60, %c98] : memref<128x128xf32, #tpu.memory_space<vmem>>, vector<128x30xf32>
    tpu.vector_store %arg6[%c0_60, %c98], %139 {strides = array<i32>} : memref<128x128xf32, #tpu.memory_space<vmem>>, vector<128x30xf32>,
    return
  }
  func.func @transform_0(%arg0: i32) -> (i32, i32) {
    %c0_i32 = arith.constant 0 : i32
    %c0_i32_0 = arith.constant 0 : i32
    return %arg0, %c0_i32 : i32, i32
  }
  func.func @transform_1(%arg0: i32) -> (i32, i32) {
    %c0_i32 = arith.constant 0 : i32
    %c0_i32_0 = arith.constant 0 : i32
    return %arg0, %c0_i32 : i32, i32
  }
  func.func @transform_2(%arg0: i32) -> (i32, i32) {
    %c0_i32 = arith.constant 0 : i32
    %c0_i32_0 = arith.constant 0 : i32
    %c0_i32_1 = arith.constant 0 : i32
    return %c0_i32, %c0_i32_0 : i32, i32
  }
  func.func @transform_3(%arg0: i32) -> (i32, i32) {
    %c0_i32 = arith.constant 0 : i32
    %c0_i32_0 = arith.constant 0 : i32
    %c0_i32_1 = arith.constant 0 : i32
    return %c0_i32, %c0_i32_0 : i32, i32
  }
  func.func @transform_4(%arg0: i32) -> (i32, i32) {
    %c0_i32 = arith.constant 0 : i32
    %c0_i32_0 = arith.constant 0 : i32
    return %arg0, %c0_i32 : i32, i32
  }
  func.func @transform_5(%arg0: i32) -> (i32, i32) {
    %c0_i32 = arith.constant 0 : i32
    %c0_i32_0 = arith.constant 0 : i32
    return %arg0, %c0_i32 : i32, i32
  }
}

</mosaic_0001>

<llo_original>
// kernel: forward.1
$region0: #{forward.1}
  #allocation0 [shape = 'u32[]', space=smem, size = 0x4, offset = 0x4, fixed_abs, tag = 'smem constant byte address 0x4 - core index']
  #allocation1 [shape = 'u32[144,128]{1,0:T(1,128)}', space=vmem, size = 0x12000, scoped, tag = 'internal scratch']
  %s0 = inlined_call_operand.vmem [shape: f32[512,128], index: 0, kind: input, shape index: {}]
  %s1 = inlined_call_operand.vmem [shape: f32[512,64], index: 1, kind: input, shape index: {}]
  %s2 = inlined_call_operand.hbm [shape: bf16[576,128], index: 2, kind: input, shape index: {}]
  %s3 = inlined_call_operand.vmem [shape: f32[11,128], index: 3, kind: input, shape index: {}]
  %s4 = inlined_call_operand.hbm [shape: f32[512,128], index: 4, kind: output, shape index: {0}]
  %s5 = inlined_call_operand.vmem [shape: f32[512,128], index: 5, kind: output, shape index: {1}]
  %6 = xla_tuple %s4, %s5
  %s7 = sld [smem:[#allocation0]]
  $region61: #{forward.1} parent=0
    _
  %s9 = ssub.s32 1, %s7
  %s10 = scalar_select 0, %s9, %s7
  $region1: #{forward.1} parent=0
    #allocation2 [shape = 'u8[147456]{0}', space=vmem, size = 0x24000, scoped, tag = 'input window, operand 2, single buffered']
    #allocation3 [shape = 's32[2]{0}', space=sflag, size = 0x8, scoped, tag = 'scoped memory for forward.1']
    #allocation4 [shape = 's32[2]{0}', space=sflag, size = 0x8, scoped, tag = 'scoped memory for forward.1']
    #allocation5 [shape = 'u8[131072]{0}', space=vmem, size = 0x20000, scoped, tag = 'output window, operand 0']
    %11 = vsyncpa [#allocation3], 0
    %12 = vsyncpa [#allocation4], 0
    %s13 = scalar_lea.sflag [#allocation4], 1
    %14 = vsyncpa %s13, 0
    loop: start=0, step=1, limit=6
    $region2: #{forward.1} parent=1 // loop_pre_header
      _
    $region3: #{forward.1} parent=1 // loop_header
      %s16 = sphi 0, %s20
      %p17 = scmp.ge.s32.totalorder %s16, 6
      %s26 = sphi 0, %s28
      %s29 = sphi 0, %s26
      %s30 = sphi 0, %s29
      %s46 = sphi 0, %s30
      %s52 = sphi 0, %s54
      %s55 = sphi 0, %s52
      %s56 = sphi 0, %s55
      %s72 = sphi 0, %s56
      %s76 = sphi 0, %s76
      %s78 = sphi 0, %s76
      %s79 = sphi 0, %s78
      %s93 = sphi 0, %s79
      %s97 = sphi 0, %s97
      %s99 = sphi 0, %s97
      %s100 = sphi 0, %s99
      %s114 = sphi 0, %s100
      %s120 = sphi 0, %s122
      %s123 = sphi 0, %s120
      %s124 = sphi 0, %s123
      %s140 = sphi 0, %s124
      %s146 = sphi 0, %s148
      %s149 = sphi 0, %s146
      %s150 = sphi 0, %s149
      %s166 = sphi 0, %s150
    $region4: #{forward.1} parent=1 // loop_header_branch
      %19 = sbr.rel (%p17) target = $region8
    $region5: #{forward.1} parent=1 // loop_body
      %s21 = ssub.s32 %s16, 1
      %s22 = ssub.s32 %s16, 2
      %s23 = sadd.s32 %s16, 1
      %s24 = ssub.s32 %s16, %s23
      %p25 = scmp.eq.s32.totalorder %s24, 0
      %s27 = sadd.s32 %s26, 1
      %s28 = scalar_select %p25, %s26, %s27
      %p31 = pneg %p25
      %p32 = scmp.eq.s32.totalorder %s16, 3
      %p33 = por %p31, %p32
      %p34 = scmp.ne.s32.totalorder %s26, %s29
      %p35 = scmp.eq.s32.totalorder %s16, 0
      %p36 = por %p34, %p35
      %p37 = scmp.ne.s32.totalorder %s26, %s29
      %p38 = scmp.eq.s32.totalorder %s21, 3
      %p39 = por %p37, %p38
      %p40 = scmp.ne.s32.totalorder %s29, %s30
      %p41 = scmp.eq.s32.totalorder %s21, 0
      %p42 = por %p40, %p41
      %p43 = scmp.ne.s32.totalorder %s29, %s30
      %p44 = scmp.eq.s32.totalorder %s22, 3
      %p45 = por %p43, %p44
      %p47 = scmp.ne.s32.totalorder %s30, %s46
      %p48 = scmp.eq.s32.totalorder %s22, 0
      %p49 = por %p47, %p48
      %s50 = ssub.s32 %s16, %s23
      %p51 = scmp.eq.s32.totalorder %s50, 0
      %s53 = sadd.s32 %s52, 1
      %s54 = scalar_select %p51, %s52, %s53
      %p57 = pneg %p51
      %p58 = scmp.eq.s32.totalorder %s16, 3
      %p59 = por %p57, %p58
      %p60 = scmp.ne.s32.totalorder %s52, %s55
      %p61 = scmp.eq.s32.totalorder %s16, 0
      %p62 = por %p60, %p61
      %p63 = scmp.ne.s32.totalorder %s52, %s55
      %p64 = scmp.eq.s32.totalorder %s21, 3
      %p65 = por %p63, %p64
      %p66 = scmp.ne.s32.totalorder %s55, %s56
      %p67 = scmp.eq.s32.totalorder %s21, 0
      %p68 = por %p66, %p67
      %p69 = scmp.ne.s32.totalorder %s55, %s56
      %p70 = scmp.eq.s32.totalorder %s22, 3
      %p71 = por %p69, %p70
      %p73 = scmp.ne.s32.totalorder %s56, %s72
      %p74 = scmp.eq.s32.totalorder %s22, 0
      %p75 = por %p73, %p74
      %s77 = sadd.s32 %s76, 1
      %p80 = scmp.eq.s32.totalorder %s16, 3
      %p81 = scmp.ne.s32.totalorder %s76, %s78
      %p82 = scmp.eq.s32.totalorder %s16, 0
      %p83 = por %p81, %p82
      %p84 = scmp.ne.s32.totalorder %s76, %s78
      %p85 = scmp.eq.s32.totalorder %s21, 3
      %p86 = por %p84, %p85
      %p87 = scmp.ne.s32.totalorder %s78, %s79
      %p88 = scmp.eq.s32.totalorder %s21, 0
      %p89 = por %p87, %p88
      %p90 = scmp.ne.s32.totalorder %s78, %s79
      %p91 = scmp.eq.s32.totalorder %s22, 3
      %p92 = por %p90, %p91
      %p94 = scmp.ne.s32.totalorder %s79, %s93
      %p95 = scmp.eq.s32.totalorder %s22, 0
      %p96 = por %p94, %p95
      %s98 = sadd.s32 %s97, 1
      %p101 = scmp.eq.s32.totalorder %s16, 3
      %p102 = scmp.ne.s32.totalorder %s97, %s99
      %p103 = scmp.eq.s32.totalorder %s16, 0
      %p104 = por %p102, %p103
      %p105 = scmp.ne.s32.totalorder %s97, %s99
      %p106 = scmp.eq.s32.totalorder %s21, 3
      %p107 = por %p105, %p106
      %p108 = scmp.ne.s32.totalorder %s99, %s100
      %p109 = scmp.eq.s32.totalorder %s21, 0
      %p110 = por %p108, %p109
      %p111 = scmp.ne.s32.totalorder %s99, %s100
      %p112 = scmp.eq.s32.totalorder %s22, 3
      %p113 = por %p111, %p112
      %p115 = scmp.ne.s32.totalorder %s100, %s114
      %p116 = scmp.eq.s32.totalorder %s22, 0
      %p117 = por %p115, %p116
      %s118 = ssub.s32 %s16, %s23
      %p119 = scmp.eq.s32.totalorder %s118, 0
      %s121 = sadd.s32 %s120, 1
      %s122 = scalar_select %p119, %s120, %s121
      %p125 = pneg %p119
      %p126 = scmp.eq.s32.totalorder %s16, 3
      %p127 = por %p125, %p126
      %p128 = scmp.ne.s32.totalorder %s120, %s123
      %p129 = scmp.eq.s32.totalorder %s16, 0
      %p130 = por %p128, %p129
      %p131 = scmp.ne.s32.totalorder %s120, %s123
      %p132 = scmp.eq.s32.totalorder %s21, 3
      %p133 = por %p131, %p132
      %p134 = scmp.ne.s32.totalorder %s123, %s124
      %p135 = scmp.eq.s32.totalorder %s21, 0
      %p136 = por %p134, %p135
      %p137 = scmp.ne.s32.totalorder %s123, %s124
      %p138 = scmp.eq.s32.totalorder %s22, 3
      %p139 = por %p137, %p138
      %p141 = scmp.ne.s32.totalorder %s124, %s140
      %p142 = scmp.eq.s32.totalorder %s22, 0
      %p143 = por %p141, %p142
      %s144 = ssub.s32 %s16, %s23
      %p145 = scmp.eq.s32.totalorder %s144, 0
      %s147 = sadd.s32 %s146, 1
      %s148 = scalar_select %p145, %s146, %s147
      %p151 = pneg %p145
      %p152 = scmp.eq.s32.totalorder %s16, 3
      %p153 = por %p151, %p152
      %p154 = scmp.ne.s32.totalorder %s146, %s149
      %p155 = scmp.eq.s32.totalorder %s16, 0
      %p156 = por %p154, %p155
      %p157 = scmp.ne.s32.totalorder %s146, %s149
      %p158 = scmp.eq.s32.totalorder %s21, 3
      %p159 = por %p157, %p158
      %p160 = scmp.ne.s32.totalorder %s149, %s150
      %p161 = scmp.eq.s32.totalorder %s21, 0
      %p162 = por %p160, %p161
      %p163 = scmp.ne.s32.totalorder %s149, %s150
      %p164 = scmp.eq.s32.totalorder %s22, 3
      %p165 = por %p163, %p164
      %p167 = scmp.ne.s32.totalorder %s150, %s166
      %p168 = scmp.eq.s32.totalorder %s22, 0
      %p169 = por %p167, %p168
      %p170 = scmp.le.s32.totalorder 1, %s16
      %p171 = scmp.lt.s32.totalorder %s16, 5
      %p172 = pnand %p170, %p171
      %p173 = pneg %p172
      // Predicated region
      $region9: #{forward.1} parent=5 // pred_check
        _
      $region10: #{forward.1} parent=5 // pred_check_branch
        %175 = sbr.rel (%p172) target = $region12
      $region11: #{forward.1} parent=5 // pred_region
        %s176 = ssub.s32 %s16, 1
        // Predicated region
        $region13: #{forward.1} parent=11 // pred_check
          %p177 = pneg %p89
        $region14: #{forward.1} parent=11 // pred_check_branch
          %179 = sbr.rel (%p177) target = $region16
        $region15: #{forward.1} parent=11 // pred_region
          %s181 = ssub.s32 4608, 4608
          %182 = vsyncadd [#allocation3], %s181
          %s183 = sshll.u32 [#allocation2], 4
          %s184 = int_to_ptr.vmem [resolvable:$true] %s183
          %189 = dma.hbm_to_vmem [thread:$0]  %s2, 4608, %s184, [#allocation3], 64, 64, 4
        $region16: #{forward.1} parent=11 // pred_fallthru
          _
        // Predicated region
        $region17: #{forward.1} parent=11 // pred_check
          %p190 = pneg %p110
        $region18: #{forward.1} parent=11 // pred_check_branch
          %192 = sbr.rel (%p190) target = $region20
        $region19: #{forward.1} parent=11 // pred_region
          _
        $region20: #{forward.1} parent=11 // pred_fallthru
          _
      $region12: #{forward.1} parent=5 // pred_fallthru
        _
      %p193 = scmp.lt.s32.totalorder %s16, 4
      // Predicated region
      $region21: #{forward.1} parent=5 // pred_check
        %p194 = pneg %p193
      $region22: #{forward.1} parent=5 // pred_check_branch
        %196 = sbr.rel (%p194) target = $region24
      $region23: #{forward.1} parent=5 // pred_region
        // Predicated region
        $region25: #{forward.1} parent=23 // pred_check
          %p197 = pneg %p36
        $region26: #{forward.1} parent=23 // pred_check_branch
          %199 = sbr.rel (%p197) target = $region28
        $region27: #{forward.1} parent=23 // pred_region
          %s200 = smul.u32 16, %s16
          %p201 = scmp.lt.s32.totalorder %s200, 63
          %s202 = scalar_select %p201, %s200, 63
          %s203 = smul.addr %s202, 8
          %s204 = scalar_lea.vmem %s0, %s203
          %s205 = smul.u32 16, %s16
        $region28: #{forward.1} parent=23 // pred_fallthru
          _
        // Predicated region
        $region29: #{forward.1} parent=23 // pred_check
          %p206 = pneg %p62
        $region30: #{forward.1} parent=23 // pred_check_branch
          %208 = sbr.rel (%p206) target = $region32
        $region31: #{forward.1} parent=23 // pred_region
          %s209 = smul.u32 16, %s16
          %p210 = scmp.lt.s32.totalorder %s209, 63
          %s211 = scalar_select %p210, %s209, 63
          %s212 = smul.addr %s211, 8
          %s213 = scalar_lea.vmem %s1, %s212
          %s214 = smul.u32 16, %s16
        $region32: #{forward.1} parent=23 // pred_fallthru
          _
      $region24: #{forward.1} parent=5 // pred_fallthru
        _
      %p215 = scmp.le.s32.totalorder 1, %s16
      %p216 = scmp.lt.s32.totalorder %s16, 5
      %p217 = pnand %p215, %p216
      %p218 = pneg %p217
      // Predicated region
      $region33: #{forward.1} parent=5 // pred_check
        _
      $region34: #{forward.1} parent=5 // pred_check_branch
        %220 = sbr.rel (%p217) target = $region36
      $region35: #{forward.1} parent=5 // pred_region
        %s221 = ssub.s32 %s16, 1
        // Predicated region
        $region37: #{forward.1} parent=35 // pred_check
          %p222 = pneg %p89
        $region38: #{forward.1} parent=35 // pred_check_branch
          %224 = sbr.rel (%p222) target = $region40
        $region39: #{forward.1} parent=35 // pred_region
          %225 = dma.done [#allocation3], 4608
        $region40: #{forward.1} parent=35 // pred_fallthru
          _
        %s226 = smul.u32 16, %s21
        %p227 = scmp.lt.s32.totalorder %s226, 63
        %s228 = scalar_select %p227, %s226, 63
        %s229 = smul.addr %s228, 8
        %s230 = scalar_lea.vmem %s0, %s229
        %p231 = pneg %p42
        %p232 = pneg %p39
        %s233 = smul.u32 16, %s21
        %p234 = scmp.lt.s32.totalorder %s233, 63
        %s235 = scalar_select %p234, %s233, 63
        %s236 = smul.addr %s235, 8
        %s237 = scalar_lea.vmem %s1, %s236
        %p238 = pneg %p68
        %p239 = pneg %p65
        %p240 = pneg %p89
        %p241 = pneg %p86
        %p242 = pneg %p110
        %p243 = pneg %p107
        %p244 = pneg %p136
        %p245 = pneg %p133
        %s246 = sand.u32 %s123, 1
        %s247 = scalar_lea.sflag [#allocation4], %s246
        %s248 = sand.u32 %s123, 1
        %s249 = smul.addr %s248, 128
        %s250 = scalar_lea.vmem [#allocation5], %s249
        %p251 = pneg %p162
        %p252 = pneg %p159
        %s253 = smul.u32 16, %s21
        %p254 = scmp.lt.s32.totalorder %s253, 63
        %s255 = scalar_select %p254, %s253, 63
        %s256 = smul.addr %s255, 8
        %s257 = scalar_lea.vmem %s5, %s256
        %s258 = smul.u32 16, %s21
        %p259 = scmp.lt.s32.totalorder %s258, 63
        %s260 = scalar_select %p259, %s258, 63
        %s261 = smul.addr %s260, 8
        %s262 = scalar_lea.vmem %s0, %s261
        %s263 = smul.u32 16, %s21
        %s264 = smul.u32 16, %s21
        %p265 = scmp.lt.s32.totalorder %s264, 63
        %s266 = scalar_select %p265, %s264, 63
        %s267 = smul.addr %s266, 8
        %s268 = scalar_lea.vmem %s1, %s267
        %s269 = smul.u32 16, %s21
        %s270 = smul.u32 16, %s21
        %s271 = smul.u32 16, %s21
        %p272 = scmp.lt.s32.totalorder %s271, 63
        %s273 = scalar_select %p272, %s271, 63
        %s274 = smul.addr %s273, 8
        %s275 = scalar_lea.vmem %s5, %s274
        %s276 = smul.u32 16, %s21
        %v278 = vld [vmem:[%s262] sm:$0xff]
        %v279 = vld [vmem:[%s262 + $0x8] sm:$0xff]
        %v280 = vld [vmem:[%s262 + $0x10] sm:$0xff]
        %v281 = vld [vmem:[%s262 + $0x18] sm:$0xff]
        %v282 = vld [vmem:[%s262 + $0x20] sm:$0xff]
        %v283 = vld [vmem:[%s262 + $0x28] sm:$0xff]
        %v284 = vld [vmem:[%s262 + $0x30] sm:$0xff]
        %v285 = vld [vmem:[%s262 + $0x38] sm:$0xff]
        %v286 = vld [vmem:[%s262 + $0x40] sm:$0xff]
        %v287 = vld [vmem:[%s262 + $0x48] sm:$0xff]
        %v288 = vld [vmem:[%s262 + $0x50] sm:$0xff]
        %v289 = vld [vmem:[%s262 + $0x58] sm:$0xff]
        %v290 = vld [vmem:[%s262 + $0x60] sm:$0xff]
        %v291 = vld [vmem:[%s262 + $0x68] sm:$0xff]
        %v292 = vld [vmem:[%s262 + $0x70] sm:$0xff]
        %v293 = vld [vmem:[%s262 + $0x78] sm:$0xff]
        %v294 = vld [vmem:[#allocation2] sm:$0xf]
        %v295 = vld [vmem:[#allocation2 + $0x4] sm:$0xf]
        %v296 = vld [vmem:[#allocation2 + $0x8] sm:$0xf]
        %v297 = vld [vmem:[#allocation2 + $0xc] sm:$0xf]
        %v298 = vld [vmem:[#allocation2 + $0x10] sm:$0xf]
        %v299 = vld [vmem:[#allocation2 + $0x14] sm:$0xf]
        %v300 = vld [vmem:[#allocation2 + $0x18] sm:$0xf]
        %v301 = vld [vmem:[#allocation2 + $0x1c] sm:$0xf]
        %v302 = vld [vmem:[#allocation2 + $0x20] sm:$0xf]
        %v303 = vld [vmem:[#allocation2 + $0x24] sm:$0xf]
        %v304 = vld [vmem:[#allocation2 + $0x28] sm:$0xf]
        %v305 = vld [vmem:[#allocation2 + $0x2c] sm:$0xf]
        %v306 = vld [vmem:[#allocation2 + $0x30] sm:$0xf]
        %v307 = vld [vmem:[#allocation2 + $0x34] sm:$0xf]
        %v308 = vld [vmem:[#allocation2 + $0x38] sm:$0xf]
        %v309 = vld [vmem:[#allocation2 + $0x3c] sm:$0xf]
        %v310 = vpack.c.bf16 %v279, %v278
        %v311 = vpack.c.bf16 %v281, %v280
        %v312 = vpack.c.bf16 %v283, %v282
        %v313 = vpack.c.bf16 %v285, %v284
        %v314 = vpack.c.bf16 %v287, %v286
        %v315 = vpack.c.bf16 %v289, %v288
        %v316 = vpack.c.bf16 %v291, %v290
        %v317 = vpack.c.bf16 %v293, %v292
        %v318 = vld [vmem:[%s3] sm:$0x1]
        %v319 = vlaneseq
        %v320 = vshrl.u32 %v319, 7
        %v321 = vsub.s32 0, %v320
        %v322 = vrot.slane %v318, %v321
        %v339 = vunpack.c.l.b16 %v294
        %v340 = vunpack.c.l.b16 %v295
        %v341 = vunpack.c.l.b16 %v296
        %v342 = vunpack.c.l.b16 %v297
        %v343 = vunpack.c.l.b16 %v298
        %v344 = vunpack.c.l.b16 %v299
        %v345 = vunpack.c.l.b16 %v300
        %v346 = vunpack.c.l.b16 %v301
        %v347 = vunpack.c.l.b16 %v302
        %v348 = vunpack.c.l.b16 %v303
        %v349 = vunpack.c.l.b16 %v304
        %v350 = vunpack.c.l.b16 %v305
        %v351 = vunpack.c.l.b16 %v306
        %v352 = vunpack.c.l.b16 %v307
        %v353 = vunpack.c.l.b16 %v308
        %v354 = vunpack.c.l.b16 %v309
        %v355 = vpack.c.b16 %v340, %v339
        %v356 = vpack.c.b16 %v342, %v341
        %v357 = vpack.c.b16 %v344, %v343
        %v358 = vpack.c.b16 %v346, %v345
        %v359 = vpack.c.b16 %v348, %v347
        %v360 = vpack.c.b16 %v350, %v349
        %v361 = vpack.c.b16 %v352, %v351
        %v362 = vpack.c.b16 %v354, %v353
        %371 = vmatprep.subr.bf16.mxu0 0
        %372 = vmatpush1.bf16.msra.mxu0 %v355
        %373 = vmatprep.subr.bf16.mxu0 0
        %374 = vmatpush1.bf16.msra.mxu0 %v356
        %375 = vmatprep.subr.bf16.mxu0 0
        %376 = vmatpush1.bf16.msra.mxu0 %v357
        %377 = vmatprep.subr.bf16.mxu0 0
        %378 = vmatpush1.bf16.msra.mxu0 %v358
        %379 = vmatprep.subr.bf16.mxu0 0
        %380 = vmatpush1.bf16.msra.mxu0 %v359
        %381 = vmatprep.subr.bf16.mxu0 0
        %382 = vmatpush1.bf16.msra.mxu0 %v360
        %383 = vmatprep.subr.bf16.mxu0 0
        %384 = vmatpush1.bf16.msra.mxu0 %v361
        %385 = vmatprep.subr.bf16.mxu0 0
        %386 = vmatpush1.bf16.msra.mxu0 %v362
        %387 = vmatprep.subr.bf16.mxu0 0
        %388 = vmatpush1.bf16.msra.mxu0 0
        %389 = vmatprep.subr.bf16.mxu0 0
        %390 = vmatpush1.bf16.msra.mxu0 0
        %391 = vmatprep.subr.bf16.mxu0 0
        %392 = vmatpush1.bf16.msra.mxu0 0
        %393 = vmatprep.subr.bf16.mxu0 0
        %394 = vmatpush1.bf16.msra.mxu0 0
        %395 = vmatprep.subr.bf16.mxu0 0
        %396 = vmatpush1.bf16.msra.mxu0 0
        %397 = vmatprep.subr.bf16.mxu0 0
        %398 = vmatpush1.bf16.msra.mxu0 0
        %399 = vmatprep.subr.bf16.mxu0 0
        %400 = vmatpush1.bf16.msra.mxu0 0
        %401 = vmatprep.subr.bf16.mxu0 0
        %402 = vmatpush1.bf16.msra.mxu0 0
        %403 = vmatprep.mubr.bf16.mxu0 0
        %404 = vmatmul.mubr.bf16.gmra.mrb[0].mxu0 %v310
        %v405 = vpop.f32.mrb[0].mxu0
        %v406 = vadd.f32 %v322, %v405
        %v407 = vpop.f32.mrb[0].mxu0
        %v408 = vpop.f32.mrb[0].mxu0
        %v409 = vadd.f32 %v322, %v408
        %v410 = vpop.f32.mrb[0].mxu0
        %411 = vmatprep.mubr.bf16.mxu0 0
        %412 = vmatmul.mubr.bf16.gmra.mrb[0].mxu0 %v311
        %v413 = vpop.f32.mrb[0].mxu0
        %v414 = vadd.f32 %v322, %v413
        %v415 = vpop.f32.mrb[0].mxu0
        %v416 = vpop.f32.mrb[0].mxu0
        %v417 = vadd.f32 %v322, %v416
        %v418 = vpop.f32.mrb[0].mxu0
        %419 = vmatprep.mubr.bf16.mxu0 0
        %420 = vmatmul.mubr.bf16.gmra.mrb[0].mxu0 %v312
        %v421 = vpop.f32.mrb[0].mxu0
        %v422 = vadd.f32 %v322, %v421
        %v423 = vpop.f32.mrb[0].mxu0
        %v424 = vpop.f32.mrb[0].mxu0
        %v425 = vadd.f32 %v322, %v424
        %v426 = vpop.f32.mrb[0].mxu0
        %427 = vmatprep.mubr.bf16.mxu0 0
        %428 = vmatmul.mubr.bf16.gmra.mrb[0].mxu0 %v313
        %v429 = vpop.f32.mrb[0].mxu0
        %v430 = vadd.f32 %v322, %v429
        %v431 = vpop.f32.mrb[0].mxu0
        %v432 = vpop.f32.mrb[0].mxu0
        %v433 = vadd.f32 %v322, %v432
        %v434 = vpop.f32.mrb[0].mxu0
        %435 = vmatprep.mubr.bf16.mxu0 0
        %436 = vmatmul.mubr.bf16.gmra.mrb[0].mxu0 %v314
        %v437 = vpop.f32.mrb[0].mxu0
        %v438 = vadd.f32 %v322, %v437
        %v439 = vpop.f32.mrb[0].mxu0
        %v440 = vpop.f32.mrb[0].mxu0
        %v441 = vadd.f32 %v322, %v440
        %v442 = vpop.f32.mrb[0].mxu0
        %443 = vmatprep.mubr.bf16.mxu0 0
        %444 = vmatmul.mubr.bf16.gmra.mrb[0].mxu0 %v315
        %v445 = vpop.f32.mrb[0].mxu0
        %v446 = vadd.f32 %v322, %v445
        %v447 = vpop.f32.mrb[0].mxu0
        %v448 = vpop.f32.mrb[0].mxu0
        %v449 = vadd.f32 %v322, %v448
        %v450 = vpop.f32.mrb[0].mxu0
        %451 = vmatprep.mubr.bf16.mxu0 0
        %452 = vmatmul.mubr.bf16.gmra.mrb[0].mxu0 %v316
        %v453 = vpop.f32.mrb[0].mxu0
        %v454 = vadd.f32 %v322, %v453
        %v455 = vpop.f32.mrb[0].mxu0
        %v456 = vpop.f32.mrb[0].mxu0
        %v457 = vadd.f32 %v322, %v456
        %v458 = vpop.f32.mrb[0].mxu0
        %459 = vmatprep.mubr.bf16.mxu0 0
        %460 = vmatmul.mubr.bf16.gmra.mrb[0].mxu0 %v317
        %v461 = vpop.f32.mrb[0].mxu0
        %v462 = vadd.f32 %v322, %v461
        %v463 = vpop.f32.mrb[0].mxu0
        %v464 = vpop.f32.mrb[0].mxu0
        %v465 = vadd.f32 %v322, %v464
        %v466 = vpop.f32.mrb[0].mxu0
        %467 = vdwg.mxu0
        %v468 = vmax.f32 %v406, 0.0
        %v469 = vmax.f32 %v409, 0.0
        %v470 = vmax.f32 %v414, 0.0
        %v471 = vmax.f32 %v417, 0.0
        %v472 = vmax.f32 %v422, 0.0
        %v473 = vmax.f32 %v425, 0.0
        %v474 = vmax.f32 %v430, 0.0
        %v475 = vmax.f32 %v433, 0.0
        %v476 = vmax.f32 %v438, 0.0
        %v477 = vmax.f32 %v441, 0.0
        %v478 = vmax.f32 %v446, 0.0
        %v479 = vmax.f32 %v449, 0.0
        %v480 = vmax.f32 %v454, 0.0
        %v481 = vmax.f32 %v457, 0.0
        %v482 = vmax.f32 %v462, 0.0
        %v483 = vmax.f32 %v465, 0.0
        %v484 = vld [vmem:[#allocation2 + $0x40] sm:$0xf]
        %v485 = vld [vmem:[#allocation2 + $0x44] sm:$0xf]
        %v486 = vld [vmem:[#allocation2 + $0x48] sm:$0xf]
        %v487 = vld [vmem:[#allocation2 + $0x4c] sm:$0xf]
        %v488 = vld [vmem:[#allocation2 + $0x50] sm:$0xf]
        %v489 = vld [vmem:[#allocation2 + $0x54] sm:$0xf]
        %v490 = vld [vmem:[#allocation2 + $0x58] sm:$0xf]
        %v491 = vld [vmem:[#allocation2 + $0x5c] sm:$0xf]
        %v492 = vpack.c.bf16 %v469, %v468
        %v493 = vpack.c.bf16 %v471, %v470
        %v494 = vpack.c.bf16 %v473, %v472
        %v495 = vpack.c.bf16 %v475, %v474
        %v496 = vpack.c.bf16 %v477, %v476
        %v497 = vpack.c.bf16 %v479, %v478
        %v498 = vpack.c.bf16 %v481, %v480
        %v499 = vpack.c.bf16 %v483, %v482
        %v500 = vld [vmem:[%s3 + $0x1] sm:$0x1]
        %v501 = vlaneseq
        %v502 = vshrl.u32 %v501, 7
        %v503 = vsub.s32 0, %v502
        %v504 = vrot.slane %v500, %v503
        %v513 = vunpack.c.l.b16 %v484
        %v514 = vunpack.c.l.b16 %v485
        %v515 = vunpack.c.l.b16 %v486
        %v516 = vunpack.c.l.b16 %v487
        %v517 = vunpack.c.l.b16 %v488
        %v518 = vunpack.c.l.b16 %v489
        %v519 = vunpack.c.l.b16 %v490
        %v520 = vunpack.c.l.b16 %v491
        %v521 = vpack.c.b16 %v514, %v513
        %v522 = vpack.c.b16 %v516, %v515
        %v523 = vpack.c.b16 %v518, %v517
        %v524 = vpack.c.b16 %v520, %v519
        %vm529 = vcmask 523264
        %v531 = vsel %vm529, %v492, 0
        %v534 = vsel %vm529, %v493, 0
        %v537 = vsel %vm529, %v494, 0
        %v540 = vsel %vm529, %v495, 0
        %v543 = vsel %vm529, %v496, 0
        %v546 = vsel %vm529, %v497, 0
        %v549 = vsel %vm529, %v498, 0
        %v552 = vsel %vm529, %v499, 0
        %554 = vmatprep.subr.bf16.mxu0 0
        %555 = vmatpush1.bf16.msra.mxu0 %v521
        %556 = vmatprep.subr.bf16.mxu0 0
        %557 = vmatpush1.bf16.msra.mxu0 %v522
        %558 = vmatprep.subr.bf16.mxu0 0
        %559 = vmatpush1.bf16.msra.mxu0 %v523
        %560 = vmatprep.subr.bf16.mxu0 0
        %561 = vmatpush1.bf16.msra.mxu0 %v524
        %562 = vmatprep.subr.bf16.mxu0 0
        %563 = vmatpush1.bf16.msra.mxu0 0
        %564 = vmatprep.subr.bf16.mxu0 0
        %565 = vmatpush1.bf16.msra.mxu0 0
        %566 = vmatprep.subr.bf16.mxu0 0
        %567 = vmatpush1.bf16.msra.mxu0 0
        %568 = vmatprep.subr.bf16.mxu0 0
        %569 = vmatpush1.bf16.msra.mxu0 0
        %570 = vmatprep.subr.bf16.mxu0 0
        %571 = vmatpush1.bf16.msra.mxu0 0
        %572 = vmatprep.subr.bf16.mxu0 0
        %573 = vmatpush1.bf16.msra.mxu0 0
        %574 = vmatprep.subr.bf16.mxu0 0
        %575 = vmatpush1.bf16.msra.mxu0 0
        %576 = vmatprep.subr.bf16.mxu0 0
        %577 = vmatpush1.bf16.msra.mxu0 0
        %578 = vmatprep.subr.bf16.mxu0 0
        %579 = vmatpush1.bf16.msra.mxu0 0
        %580 = vmatprep.subr.bf16.mxu0 0
        %581 = vmatpush1.bf16.msra.mxu0 0
        %582 = vmatprep.subr.bf16.mxu0 0
        %583 = vmatpush1.bf16.msra.mxu0 0
        %584 = vmatprep.subr.bf16.mxu0 0
        %585 = vmatpush1.bf16.msra.mxu0 0
        %586 = vmatprep.mubr.bf16.mxu0 0
        %587 = vmatmul.mubr.bf16.gmra.mrb[0].mxu0 %v531
        %v588 = vpop.f32.mrb[0].mxu0
        %v589 = vadd.f32 %v504, %v588
        %v590 = vpop.f32.mrb[0].mxu0
        %v591 = vpop.f32.mrb[0].mxu0
        %v592 = vadd.f32 %v504, %v591
        %v593 = vpop.f32.mrb[0].mxu0
        %594 = vmatprep.mubr.bf16.mxu0 0
        %595 = vmatmul.mubr.bf16.gmra.mrb[0].mxu0 %v534
        %v596 = vpop.f32.mrb[0].mxu0
        %v597 = vadd.f32 %v504, %v596
        %v598 = vpop.f32.mrb[0].mxu0
        %v599 = vpop.f32.mrb[0].mxu0
        %v600 = vadd.f32 %v504, %v599
        %v601 = vpop.f32.mrb[0].mxu0
        %602 = vmatprep.mubr.bf16.mxu0 0
        %603 = vmatmul.mubr.bf16.gmra.mrb[0].mxu0 %v537
        %v604 = vpop.f32.mrb[0].mxu0
        %v605 = vadd.f32 %v504, %v604
        %v606 = vpop.f32.mrb[0].mxu0
        %v607 = vpop.f32.mrb[0].mxu0
        %v608 = vadd.f32 %v504, %v607
        %v609 = vpop.f32.mrb[0].mxu0
        %610 = vmatprep.mubr.bf16.mxu0 0
        %611 = vmatmul.mubr.bf16.gmra.mrb[0].mxu0 %v540
        %v612 = vpop.f32.mrb[0].mxu0
        %v613 = vadd.f32 %v504, %v612
        %v614 = vpop.f32.mrb[0].mxu0
        %v615 = vpop.f32.mrb[0].mxu0
        %v616 = vadd.f32 %v504, %v615
        %v617 = vpop.f32.mrb[0].mxu0
        %618 = vmatprep.mubr.bf16.mxu0 0
        %619 = vmatmul.mubr.bf16.gmra.mrb[0].mxu0 %v543
        %v620 = vpop.f32.mrb[0].mxu0
        %v621 = vadd.f32 %v504, %v620
        %v622 = vpop.f32.mrb[0].mxu0
        %v623 = vpop.f32.mrb[0].mxu0
        %v624 = vadd.f32 %v504, %v623
        %v625 = vpop.f32.mrb[0].mxu0
        %626 = vmatprep.mubr.bf16.mxu0 0
        %627 = vmatmul.mubr.bf16.gmra.mrb[0].mxu0 %v546
        %v628 = vpop.f32.mrb[0].mxu0
        %v629 = vadd.f32 %v504, %v628
        %v630 = vpop.f32.mrb[0].mxu0
        %v631 = vpop.f32.mrb[0].mxu0
        %v632 = vadd.f32 %v504, %v631
        %v633 = vpop.f32.mrb[0].mxu0
        %634 = vmatprep.mubr.bf16.mxu0 0
        %635 = vmatmul.mubr.bf16.gmra.mrb[0].mxu0 %v549
        %v636 = vpop.f32.mrb[0].mxu0
        %v637 = vadd.f32 %v504, %v636
        %v638 = vpop.f32.mrb[0].mxu0
        %v639 = vpop.f32.mrb[0].mxu0
        %v640 = vadd.f32 %v504, %v639
        %v641 = vpop.f32.mrb[0].mxu0
        %642 = vmatprep.mubr.bf16.mxu0 0
        %643 = vmatmul.mubr.bf16.gmra.mrb[0].mxu0 %v552
        %v644 = vpop.f32.mrb[0].mxu0
        %v645 = vadd.f32 %v504, %v644
        %v646 = vpop.f32.mrb[0].mxu0
        %v647 = vpop.f32.mrb[0].mxu0
        %v648 = vadd.f32 %v504, %v647
        %v649 = vpop.f32.mrb[0].mxu0
        %650 = vdwg.mxu0
        %v651 = vmax.f32 %v589, 0.0
        %v652 = vmax.f32 %v592, 0.0
        %v653 = vmax.f32 %v597, 0.0
        %v654 = vmax.f32 %v600, 0.0
        %v655 = vmax.f32 %v605, 0.0
        %v656 = vmax.f32 %v608, 0.0
        %v657 = vmax.f32 %v613, 0.0
        %v658 = vmax.f32 %v616, 0.0
        %v659 = vmax.f32 %v621, 0.0
        %v660 = vmax.f32 %v624, 0.0
        %v661 = vmax.f32 %v629, 0.0
        %v662 = vmax.f32 %v632, 0.0
        %v663 = vmax.f32 %v637, 0.0
        %v664 = vmax.f32 %v640, 0.0
        %v665 = vmax.f32 %v645, 0.0
        %v666 = vmax.f32 %v648, 0.0
        %v667 = vld [vmem:[#allocation2 + $0x60] sm:$0xf]
        %v668 = vld [vmem:[#allocation2 + $0x64] sm:$0xf]
        %v669 = vld [vmem:[#allocation2 + $0x68] sm:$0xf]
        %v670 = vld [vmem:[#allocation2 + $0x6c] sm:$0xf]
        %v671 = vpack.c.bf16 %v652, %v651
        %v672 = vpack.c.bf16 %v654, %v653
        %v673 = vpack.c.bf16 %v656, %v655
        %v674 = vpack.c.bf16 %v658, %v657
        %v675 = vpack.c.bf16 %v660, %v659
        %v676 = vpack.c.bf16 %v662, %v661
        %v677 = vpack.c.bf16 %v664, %v663
        %v678 = vpack.c.bf16 %v666, %v665
        %v679 = vld [vmem:[%s3 + $0x2] sm:$0x1]
        %v680 = vlaneseq
        %v681 = vshrl.u32 %v680, 7
        %v682 = vsub.s32 0, %v681
        %v683 = vrot.slane %v679, %v682
        %v688 = vunpack.c.l.b16 %v667
        %v689 = vunpack.c.l.b16 %v668
        %v690 = vunpack.c.l.b16 %v669
        %v691 = vunpack.c.l.b16 %v670
        %v692 = vpack.c.b16 %v689, %v688
        %v693 = vpack.c.b16 %v691, %v690
        %vm696 = vcmask 261120
        %v698 = vsel %vm696, %v671, 0
        %v701 = vsel %vm696, %v672, 0
        %v704 = vsel %vm696, %v673, 0
        %v707 = vsel %vm696, %v674, 0
        %v710 = vsel %vm696, %v675, 0
        %v713 = vsel %vm696, %v676, 0
        %v716 = vsel %vm696, %v677, 0
        %v719 = vsel %vm696, %v678, 0
        %721 = vmatprep.subr.bf16.mxu0 0
        %722 = vmatpush1.bf16.msra.mxu0 %v692
        %723 = vmatprep.subr.bf16.mxu0 0
        %724 = vmatpush1.bf16.msra.mxu0 %v693
        %725 = vmatprep.subr.bf16.mxu0 0
        %726 = vmatpush1.bf16.msra.mxu0 0
        %727 = vmatprep.subr.bf16.mxu0 0
        %728 = vmatpush1.bf16.msra.mxu0 0
        %729 = vmatprep.subr.bf16.mxu0 0
        %730 = vmatpush1.bf16.msra.mxu0 0
        %731 = vmatprep.subr.bf16.mxu0 0
        %732 = vmatpush1.bf16.msra.mxu0 0
        %733 = vmatprep.subr.bf16.mxu0 0
        %734 = vmatpush1.bf16.msra.mxu0 0
        %735 = vmatprep.subr.bf16.mxu0 0
        %736 = vmatpush1.bf16.msra.mxu0 0
        %737 = vmatprep.subr.bf16.mxu0 0
        %738 = vmatpush1.bf16.msra.mxu0 0
        %739 = vmatprep.subr.bf16.mxu0 0
        %740 = vmatpush1.bf16.msra.mxu0 0
        %741 = vmatprep.subr.bf16.mxu0 0
        %742 = vmatpush1.bf16.msra.mxu0 0
        %743 = vmatprep.subr.bf16.mxu0 0
        %744 = vmatpush1.bf16.msra.mxu0 0
        %745 = vmatprep.subr.bf16.mxu0 0
        %746 = vmatpush1.bf16.msra.mxu0 0
        %747 = vmatprep.subr.bf16.mxu0 0
        %748 = vmatpush1.bf16.msra.mxu0 0
        %749 = vmatprep.subr.bf16.mxu0 0
        %750 = vmatpush1.bf16.msra.mxu0 0
        %751 = vmatprep.subr.bf16.mxu0 0
        %752 = vmatpush1.bf16.msra.mxu0 0
        %753 = vmatprep.mubr.bf16.mxu0 0
        %754 = vmatmul.mubr.bf16.gmra.mrb[0].mxu0 %v698
        %v755 = vpop.f32.mrb[0].mxu0
        %v756 = vadd.f32 %v683, %v755
        %v757 = vpop.f32.mrb[0].mxu0
        %v758 = vpop.f32.mrb[0].mxu0
        %v759 = vadd.f32 %v683, %v758
        %v760 = vpop.f32.mrb[0].mxu0
        %761 = vmatprep.mubr.bf16.mxu0 0
        %762 = vmatmul.mubr.bf16.gmra.mrb[0].mxu0 %v701
        %v763 = vpop.f32.mrb[0].mxu0
        %v764 = vadd.f32 %v683, %v763
        %v765 = vpop.f32.mrb[0].mxu0
        %v766 = vpop.f32.mrb[0].mxu0
        %v767 = vadd.f32 %v683, %v766
        %v768 = vpop.f32.mrb[0].mxu0
        %769 = vmatprep.mubr.bf16.mxu0 0
        %770 = vmatmul.mubr.bf16.gmra.mrb[0].mxu0 %v704
        %v771 = vpop.f32.mrb[0].mxu0
        %v772 = vadd.f32 %v683, %v771
        %v773 = vpop.f32.mrb[0].mxu0
        %v774 = vpop.f32.mrb[0].mxu0
        %v775 = vadd.f32 %v683, %v774
        %v776 = vpop.f32.mrb[0].mxu0
        %777 = vmatprep.mubr.bf16.mxu0 0
        %778 = vmatmul.mubr.bf16.gmra.mrb[0].mxu0 %v707
        %v779 = vpop.f32.mrb[0].mxu0
        %v780 = vadd.f32 %v683, %v779
        %v781 = vpop.f32.mrb[0].mxu0
        %v782 = vpop.f32.mrb[0].mxu0
        %v783 = vadd.f32 %v683, %v782
        %v784 = vpop.f32.mrb[0].mxu0
        %785 = vmatprep.mubr.bf16.mxu0 0
        %786 = vmatmul.mubr.bf16.gmra.mrb[0].mxu0 %v710
        %v787 = vpop.f32.mrb[0].mxu0
        %v788 = vadd.f32 %v683, %v787
        %v789 = vpop.f32.mrb[0].mxu0
        %v790 = vpop.f32.mrb[0].mxu0
        %v791 = vadd.f32 %v683, %v790
        %v792 = vpop.f32.mrb[0].mxu0
        %793 = vmatprep.mubr.bf16.mxu0 0
        %794 = vmatmul.mubr.bf16.gmra.mrb[0].mxu0 %v713
        %v795 = vpop.f32.mrb[0].mxu0
        %v796 = vadd.f32 %v683, %v795
        %v797 = vpop.f32.mrb[0].mxu0
        %v798 = vpop.f32.mrb[0].mxu0
        %v799 = vadd.f32 %v683, %v798
        %v800 = vpop.f32.mrb[0].mxu0
        %801 = vmatprep.mubr.bf16.mxu0 0
        %802 = vmatmul.mubr.bf16.gmra.mrb[0].mxu0 %v716
        %v803 = vpop.f32.mrb[0].mxu0
        %v804 = vadd.f32 %v683, %v803
        %v805 = vpop.f32.mrb[0].mxu0
        %v806 = vpop.f32.mrb[0].mxu0
        %v807 = vadd.f32 %v683, %v806
        %v808 = vpop.f32.mrb[0].mxu0
        %809 = vmatprep.mubr.bf16.mxu0 0
        %810 = vmatmul.mubr.bf16.gmra.mrb[0].mxu0 %v719
        %v811 = vpop.f32.mrb[0].mxu0
        %v812 = vadd.f32 %v683, %v811
        %v813 = vpop.f32.mrb[0].mxu0
        %v814 = vpop.f32.mrb[0].mxu0
        %v815 = vadd.f32 %v683, %v814
        %v816 = vpop.f32.mrb[0].mxu0
        %817 = vdwg.mxu0
        %v818 = vld [vmem:[#allocation2 + $0x70] sm:$0xf]
        %v819 = vld [vmem:[#allocation2 + $0x74] sm:$0xf]
        %v820 = vld [vmem:[#allocation2 + $0x78] sm:$0xf]
        %v821 = vld [vmem:[#allocation2 + $0x7c] sm:$0xf]
        %v822 = vpack.c.bf16 %v759, %v756
        %v823 = vpack.c.bf16 %v767, %v764
        %v824 = vpack.c.bf16 %v775, %v772
        %v825 = vpack.c.bf16 %v783, %v780
        %v826 = vpack.c.bf16 %v791, %v788
        %v827 = vpack.c.bf16 %v799, %v796
        %v828 = vpack.c.bf16 %v807, %v804
        %v829 = vpack.c.bf16 %v815, %v812
        %v830 = vld [vmem:[%s3 + $0x3] sm:$0x1]
        %v831 = vlaneseq
        %v832 = vshrl.u32 %v831, 7
        %v833 = vsub.s32 0, %v832
        %v834 = vrot.slane %v830, %v833
        %v839 = vunpack.c.l.b16 %v818
        %v840 = vunpack.c.l.b16 %v819
        %v841 = vunpack.c.l.b16 %v820
        %v842 = vunpack.c.l.b16 %v821
        %v843 = vpack.c.b16 %v840, %v839
        %v844 = vpack.c.b16 %v842, %v841
        %v848 = vsel %vm696, %v822, 0
        %v851 = vsel %vm696, %v823, 0
        %v854 = vsel %vm696, %v824, 0
        %v857 = vsel %vm696, %v825, 0
        %v860 = vsel %vm696, %v826, 0
        %v863 = vsel %vm696, %v827, 0
        %v866 = vsel %vm696, %v828, 0
        %v869 = vsel %vm696, %v829, 0
        %871 = vmatprep.subr.bf16.mxu0 0
        %872 = vmatpush1.bf16.msra.mxu0 %v843
        %873 = vmatprep.subr.bf16.mxu0 0
        %874 = vmatpush1.bf16.msra.mxu0 %v844
        %875 = vmatprep.subr.bf16.mxu0 0
        %876 = vmatpush1.bf16.msra.mxu0 0
        %877 = vmatprep.subr.bf16.mxu0 0
        %878 = vmatpush1.bf16.msra.mxu0 0
        %879 = vmatprep.subr.bf16.mxu0 0
        %880 = vmatpush1.bf16.msra.mxu0 0
        %881 = vmatprep.subr.bf16.mxu0 0
        %882 = vmatpush1.bf16.msra.mxu0 0
        %883 = vmatprep.subr.bf16.mxu0 0
        %884 = vmatpush1.bf16.msra.mxu0 0
        %885 = vmatprep.subr.bf16.mxu0 0
        %886 = vmatpush1.bf16.msra.mxu0 0
        %887 = vmatprep.subr.bf16.mxu0 0
        %888 = vmatpush1.bf16.msra.mxu0 0
        %889 = vmatprep.subr.bf16.mxu0 0
        %890 = vmatpush1.bf16.msra.mxu0 0
        %891 = vmatprep.subr.bf16.mxu0 0
        %892 = vmatpush1.bf16.msra.mxu0 0
        %893 = vmatprep.subr.bf16.mxu0 0
        %894 = vmatpush1.bf16.msra.mxu0 0
        %895 = vmatprep.subr.bf16.mxu0 0
        %896 = vmatpush1.bf16.msra.mxu0 0
        %897 = vmatprep.subr.bf16.mxu0 0
        %898 = vmatpush1.bf16.msra.mxu0 0
        %899 = vmatprep.subr.bf16.mxu0 0
        %900 = vmatpush1.bf16.msra.mxu0 0
        %901 = vmatprep.subr.bf16.mxu0 0
        %902 = vmatpush1.bf16.msra.mxu0 0
        %903 = vmatprep.mubr.bf16.mxu0 0
        %904 = vmatmul.mubr.bf16.gmra.mrb[0].mxu0 %v848
        %v905 = vpop.f32.mrb[0].mxu0
        %v906 = vadd.f32 %v834, %v905
        %v907 = vpop.f32.mrb[0].mxu0
        %v908 = vpop.f32.mrb[0].mxu0
        %v909 = vadd.f32 %v834, %v908
        %v910 = vpop.f32.mrb[0].mxu0
        %911 = vmatprep.mubr.bf16.mxu0 0
        %912 = vmatmul.mubr.bf16.gmra.mrb[0].mxu0 %v851
        %v913 = vpop.f32.mrb[0].mxu0
        %v914 = vadd.f32 %v834, %v913
        %v915 = vpop.f32.mrb[0].mxu0
        %v916 = vpop.f32.mrb[0].mxu0
        %v917 = vadd.f32 %v834, %v916
        %v918 = vpop.f32.mrb[0].mxu0
        %919 = vmatprep.mubr.bf16.mxu0 0
        %920 = vmatmul.mubr.bf16.gmra.mrb[0].mxu0 %v854
        %v921 = vpop.f32.mrb[0].mxu0
        %v922 = vadd.f32 %v834, %v921
        %v923 = vpop.f32.mrb[0].mxu0
        %v924 = vpop.f32.mrb[0].mxu0
        %v925 = vadd.f32 %v834, %v924
        %v926 = vpop.f32.mrb[0].mxu0
        %927 = vmatprep.mubr.bf16.mxu0 0
        %928 = vmatmul.mubr.bf16.gmra.mrb[0].mxu0 %v857
        %v929 = vpop.f32.mrb[0].mxu0
        %v930 = vadd.f32 %v834, %v929
        %v931 = vpop.f32.mrb[0].mxu0
        %v932 = vpop.f32.mrb[0].mxu0
        %v933 = vadd.f32 %v834, %v932
        %v934 = vpop.f32.mrb[0].mxu0
        %935 = vmatprep.mubr.bf16.mxu0 0
        %936 = vmatmul.mubr.bf16.gmra.mrb[0].mxu0 %v860
        %v937 = vpop.f32.mrb[0].mxu0
        %v938 = vadd.f32 %v834, %v937
        %v939 = vpop.f32.mrb[0].mxu0
        %v940 = vpop.f32.mrb[0].mxu0
        %v941 = vadd.f32 %v834, %v940
        %v942 = vpop.f32.mrb[0].mxu0
        %943 = vmatprep.mubr.bf16.mxu0 0
        %944 = vmatmul.mubr.bf16.gmra.mrb[0].mxu0 %v863
        %v945 = vpop.f32.mrb[0].mxu0
        %v946 = vadd.f32 %v834, %v945
        %v947 = vpop.f32.mrb[0].mxu0
        %v948 = vpop.f32.mrb[0].mxu0
        %v949 = vadd.f32 %v834, %v948
        %v950 = vpop.f32.mrb[0].mxu0
        %951 = vmatprep.mubr.bf16.mxu0 0
        %952 = vmatmul.mubr.bf16.gmra.mrb[0].mxu0 %v866
        %v953 = vpop.f32.mrb[0].mxu0
        %v954 = vadd.f32 %v834, %v953
        %v955 = vpop.f32.mrb[0].mxu0
        %v956 = vpop.f32.mrb[0].mxu0
        %v957 = vadd.f32 %v834, %v956
        %v958 = vpop.f32.mrb[0].mxu0
        %959 = vmatprep.mubr.bf16.mxu0 0
        %960 = vmatmul.mubr.bf16.gmra.mrb[0].mxu0 %v869
        %v961 = vpop.f32.mrb[0].mxu0
        %v962 = vadd.f32 %v834, %v961
        %v963 = vpop.f32.mrb[0].mxu0
        %v964 = vpop.f32.mrb[0].mxu0
        %v965 = vadd.f32 %v834, %v964
        %v966 = vpop.f32.mrb[0].mxu0
        %967 = vdwg.mxu0
        %v968 = vmax.f32 %v906, 0.0
        %v969 = vmax.f32 %v909, 0.0
        %v970 = vmax.f32 %v914, 0.0
        %v971 = vmax.f32 %v917, 0.0
        %v972 = vmax.f32 %v922, 0.0
        %v973 = vmax.f32 %v925, 0.0
        %v974 = vmax.f32 %v930, 0.0
        %v975 = vmax.f32 %v933, 0.0
        %v976 = vmax.f32 %v938, 0.0
        %v977 = vmax.f32 %v941, 0.0
        %v978 = vmax.f32 %v946, 0.0
        %v979 = vmax.f32 %v949, 0.0
        %v980 = vmax.f32 %v954, 0.0
        %v981 = vmax.f32 %v957, 0.0
        %v982 = vmax.f32 %v962, 0.0
        %v983 = vmax.f32 %v965, 0.0
        %v984 = vld [vmem:[#allocation2 + $0x80] sm:$0xf]
        %v985 = vld [vmem:[#allocation2 + $0x84] sm:$0xf]
        %v986 = vld [vmem:[#allocation2 + $0x88] sm:$0xf]
        %v987 = vld [vmem:[#allocation2 + $0x8c] sm:$0xf]
        %v988 = vpack.c.bf16 %v969, %v968
        %v989 = vpack.c.bf16 %v971, %v970
        %v990 = vpack.c.bf16 %v973, %v972
        %v991 = vpack.c.bf16 %v975, %v974
        %v992 = vpack.c.bf16 %v977, %v976
        %v993 = vpack.c.bf16 %v979, %v978
        %v994 = vpack.c.bf16 %v981, %v980
        %v995 = vpack.c.bf16 %v983, %v982
        %v996 = vld [vmem:[%s3 + $0x4] sm:$0x1]
        %v997 = vlaneseq
        %v998 = vshrl.u32 %v997, 7
        %v999 = vsub.s32 0, %v998
        %v1000 = vrot.slane %v996, %v999
        %v1005 = vunpack.c.l.b16 %v984
        %v1006 = vunpack.c.l.b16 %v985
        %v1007 = vunpack.c.l.b16 %v986
        %v1008 = vunpack.c.l.b16 %v987
        %v1009 = vpack.c.b16 %v1006, %v1005
        %v1010 = vpack.c.b16 %v1008, %v1007
        %v1014 = vsel %vm696, %v988, 0
        %v1017 = vsel %vm696, %v989, 0
        %v1020 = vsel %vm696, %v990, 0
        %v1023 = vsel %vm696, %v991, 0
        %v1026 = vsel %vm696, %v992, 0
        %v1029 = vsel %vm696, %v993, 0
        %v1032 = vsel %vm696, %v994, 0
        %v1035 = vsel %vm696, %v995, 0
        %1037 = vmatprep.subr.bf16.mxu0 0
        %1038 = vmatpush1.bf16.msra.mxu0 %v1009
        %1039 = vmatprep.subr.bf16.mxu0 0
        %1040 = vmatpush1.bf16.msra.mxu0 %v1010
        %1041 = vmatprep.subr.bf16.mxu0 0
        %1042 = vmatpush1.bf16.msra.mxu0 0
        %1043 = vmatprep.subr.bf16.mxu0 0
        %1044 = vmatpush1.bf16.msra.mxu0 0
        %1045 = vmatprep.subr.bf16.mxu0 0
        %1046 = vmatpush1.bf16.msra.mxu0 0
        %1047 = vmatprep.subr.bf16.mxu0 0
        %1048 = vmatpush1.bf16.msra.mxu0 0
        %1049 = vmatprep.subr.bf16.mxu0 0
        %1050 = vmatpush1.bf16.msra.mxu0 0
        %1051 = vmatprep.subr.bf16.mxu0 0
        %1052 = vmatpush1.bf16.msra.mxu0 0
        %1053 = vmatprep.subr.bf16.mxu0 0
        %1054 = vmatpush1.bf16.msra.mxu0 0
        %1055 = vmatprep.subr.bf16.mxu0 0
        %1056 = vmatpush1.bf16.msra.mxu0 0
        %1057 = vmatprep.subr.bf16.mxu0 0
        %1058 = vmatpush1.bf16.msra.mxu0 0
        %1059 = vmatprep.subr.bf16.mxu0 0
        %1060 = vmatpush1.bf16.msra.mxu0 0
        %1061 = vmatprep.subr.bf16.mxu0 0
        %1062 = vmatpush1.bf16.msra.mxu0 0
        %1063 = vmatprep.subr.bf16.mxu0 0
        %1064 = vmatpush1.bf16.msra.mxu0 0
        %1065 = vmatprep.subr.bf16.mxu0 0
        %1066 = vmatpush1.bf16.msra.mxu0 0
        %1067 = vmatprep.subr.bf16.mxu0 0
        %1068 = vmatpush1.bf16.msra.mxu0 0
        %1069 = vmatprep.mubr.bf16.mxu0 0
        %1070 = vmatmul.mubr.bf16.gmra.mrb[0].mxu0 %v1014
        %v1071 = vpop.f32.mrb[0].mxu0
        %v1072 = vadd.f32 %v1000, %v1071
        %v1073 = vpop.f32.mrb[0].mxu0
        %v1074 = vpop.f32.mrb[0].mxu0
        %v1075 = vadd.f32 %v1000, %v1074
        %v1076 = vpop.f32.mrb[0].mxu0
        %1077 = vmatprep.mubr.bf16.mxu0 0
        %1078 = vmatmul.mubr.bf16.gmra.mrb[0].mxu0 %v1017
        %v1079 = vpop.f32.mrb[0].mxu0
        %v1080 = vadd.f32 %v1000, %v1079
        %v1081 = vpop.f32.mrb[0].mxu0
        %v1082 = vpop.f32.mrb[0].mxu0
        %v1083 = vadd.f32 %v1000, %v1082
        %v1084 = vpop.f32.mrb[0].mxu0
        %1085 = vmatprep.mubr.bf16.mxu0 0
        %1086 = vmatmul.mubr.bf16.gmra.mrb[0].mxu0 %v1020
        %v1087 = vpop.f32.mrb[0].mxu0
        %v1088 = vadd.f32 %v1000, %v1087
        %v1089 = vpop.f32.mrb[0].mxu0
        %v1090 = vpop.f32.mrb[0].mxu0
        %v1091 = vadd.f32 %v1000, %v1090
        %v1092 = vpop.f32.mrb[0].mxu0
        %1093 = vmatprep.mubr.bf16.mxu0 0
        %1094 = vmatmul.mubr.bf16.gmra.mrb[0].mxu0 %v1023
        %v1095 = vpop.f32.mrb[0].mxu0
        %v1096 = vadd.f32 %v1000, %v1095
        %v1097 = vpop.f32.mrb[0].mxu0
        %v1098 = vpop.f32.mrb[0].mxu0
        %v1099 = vadd.f32 %v1000, %v1098
        %v1100 = vpop.f32.mrb[0].mxu0
        %1101 = vmatprep.mubr.bf16.mxu0 0
        %1102 = vmatmul.mubr.bf16.gmra.mrb[0].mxu0 %v1026
        %v1103 = vpop.f32.mrb[0].mxu0
        %v1104 = vadd.f32 %v1000, %v1103
        %v1105 = vpop.f32.mrb[0].mxu0
        %v1106 = vpop.f32.mrb[0].mxu0
        %v1107 = vadd.f32 %v1000, %v1106
        %v1108 = vpop.f32.mrb[0].mxu0
        %1109 = vmatprep.mubr.bf16.mxu0 0
        %1110 = vmatmul.mubr.bf16.gmra.mrb[0].mxu0 %v1029
        %v1111 = vpop.f32.mrb[0].mxu0
        %v1112 = vadd.f32 %v1000, %v1111
        %v1113 = vpop.f32.mrb[0].mxu0
        %v1114 = vpop.f32.mrb[0].mxu0
        %v1115 = vadd.f32 %v1000, %v1114
        %v1116 = vpop.f32.mrb[0].mxu0
        %1117 = vmatprep.mubr.bf16.mxu0 0
        %1118 = vmatmul.mubr.bf16.gmra.mrb[0].mxu0 %v1032
        %v1119 = vpop.f32.mrb[0].mxu0
        %v1120 = vadd.f32 %v1000, %v1119
        %v1121 = vpop.f32.mrb[0].mxu0
        %v1122 = vpop.f32.mrb[0].mxu0
        %v1123 = vadd.f32 %v1000, %v1122
        %v1124 = vpop.f32.mrb[0].mxu0
        %1125 = vmatprep.mubr.bf16.mxu0 0
        %1126 = vmatmul.mubr.bf16.gmra.mrb[0].mxu0 %v1035
        %v1127 = vpop.f32.mrb[0].mxu0
        %v1128 = vadd.f32 %v1000, %v1127
        %v1129 = vpop.f32.mrb[0].mxu0
        %v1130 = vpop.f32.mrb[0].mxu0
        %v1131 = vadd.f32 %v1000, %v1130
        %v1132 = vpop.f32.mrb[0].mxu0
        %1133 = vdwg.mxu0
        %v1134 = vmax.f32 %v1072, 0.0
        %v1135 = vmax.f32 %v1075, 0.0
        %v1136 = vmax.f32 %v1080, 0.0
        %v1137 = vmax.f32 %v1083, 0.0
        %v1138 = vmax.f32 %v1088, 0.0
        %v1139 = vmax.f32 %v1091, 0.0
        %v1140 = vmax.f32 %v1096, 0.0
        %v1141 = vmax.f32 %v1099, 0.0
        %v1142 = vmax.f32 %v1104, 0.0
        %v1143 = vmax.f32 %v1107, 0.0
        %v1144 = vmax.f32 %v1112, 0.0
        %v1145 = vmax.f32 %v1115, 0.0
        %v1146 = vmax.f32 %v1120, 0.0
        %v1147 = vmax.f32 %v1123, 0.0
        %v1148 = vmax.f32 %v1128, 0.0
        %v1149 = vmax.f32 %v1131, 0.0
        %v1150 = vld [vmem:[#allocation2 + $0x90] sm:$0xf]
        %v1151 = vld [vmem:[#allocation2 + $0x94] sm:$0xf]
        %v1152 = vld [vmem:[#allocation2 + $0x98] sm:$0xf]
        %v1153 = vld [vmem:[#allocation2 + $0x9c] sm:$0xf]
        %v1154 = vld [vmem:[#allocation2 + $0xa0] sm:$0xf]
        %v1155 = vld [vmem:[#allocation2 + $0xa4] sm:$0xf]
        %v1156 = vld [vmem:[#allocation2 + $0xa8] sm:$0xf]
        %v1157 = vld [vmem:[#allocation2 + $0xac] sm:$0xf]
        %v1158 = vpack.c.bf16 %v1135, %v1134
        %v1159 = vpack.c.bf16 %v1137, %v1136
        %v1160 = vpack.c.bf16 %v1139, %v1138
        %v1161 = vpack.c.bf16 %v1141, %v1140
        %v1162 = vpack.c.bf16 %v1143, %v1142
        %v1163 = vpack.c.bf16 %v1145, %v1144
        %v1164 = vpack.c.bf16 %v1147, %v1146
        %v1165 = vpack.c.bf16 %v1149, %v1148
        %v1166 = vld [vmem:[%s3 + $0x5] sm:$0x1]
        %v1167 = vlaneseq
        %v1168 = vshrl.u32 %v1167, 7
        %v1169 = vsub.s32 0, %v1168
        %v1170 = vrot.slane %v1166, %v1169
        %v1179 = vunpack.c.l.b16 %v1150
        %v1180 = vunpack.c.l.b16 %v1151
        %v1181 = vunpack.c.l.b16 %v1152
        %v1182 = vunpack.c.l.b16 %v1153
        %v1183 = vunpack.c.l.b16 %v1154
        %v1184 = vunpack.c.l.b16 %v1155
        %v1185 = vunpack.c.l.b16 %v1156
        %v1186 = vunpack.c.l.b16 %v1157
        %v1187 = vpack.c.b16 %v1180, %v1179
        %v1188 = vpack.c.b16 %v1182, %v1181
        %v1189 = vpack.c.b16 %v1184, %v1183
        %v1190 = vpack.c.b16 %v1186, %v1185
        %v1196 = vsel %vm529, %v1158, 0
        %v1199 = vsel %vm529, %v1159, 0
        %v1202 = vsel %vm529, %v1160, 0
        %v1205 = vsel %vm529, %v1161, 0
        %v1208 = vsel %vm529, %v1162, 0
        %v1211 = vsel %vm529, %v1163, 0
        %v1214 = vsel %vm529, %v1164, 0
        %v1217 = vsel %vm529, %v1165, 0
        %1219 = vmatprep.subr.bf16.mxu0 0
        %1220 = vmatpush1.bf16.msra.mxu0 %v1187
        %1221 = vmatprep.subr.bf16.mxu0 0
        %1222 = vmatpush1.bf16.msra.mxu0 %v1188
        %1223 = vmatprep.subr.bf16.mxu0 0
        %1224 = vmatpush1.bf16.msra.mxu0 %v1189
        %1225 = vmatprep.subr.bf16.mxu0 0
        %1226 = vmatpush1.bf16.msra.mxu0 %v1190
        %1227 = vmatprep.subr.bf16.mxu0 0
        %1228 = vmatpush1.bf16.msra.mxu0 0
        %1229 = vmatprep.subr.bf16.mxu0 0
        %1230 = vmatpush1.bf16.msra.mxu0 0
        %1231 = vmatprep.subr.bf16.mxu0 0
        %1232 = vmatpush1.bf16.msra.mxu0 0
        %1233 = vmatprep.subr.bf16.mxu0 0
        %1234 = vmatpush1.bf16.msra.mxu0 0
        %1235 = vmatprep.subr.bf16.mxu0 0
        %1236 = vmatpush1.bf16.msra.mxu0 0
        %1237 = vmatprep.subr.bf16.mxu0 0
        %1238 = vmatpush1.bf16.msra.mxu0 0
        %1239 = vmatprep.subr.bf16.mxu0 0
        %1240 = vmatpush1.bf16.msra.mxu0 0
        %1241 = vmatprep.subr.bf16.mxu0 0
        %1242 = vmatpush1.bf16.msra.mxu0 0
        %1243 = vmatprep.subr.bf16.mxu0 0
        %1244 = vmatpush1.bf16.msra.mxu0 0
        %1245 = vmatprep.subr.bf16.mxu0 0
        %1246 = vmatpush1.bf16.msra.mxu0 0
        %1247 = vmatprep.subr.bf16.mxu0 0
        %1248 = vmatpush1.bf16.msra.mxu0 0
        %1249 = vmatprep.subr.bf16.mxu0 0
        %1250 = vmatpush1.bf16.msra.mxu0 0
        %1251 = vmatprep.mubr.bf16.mxu0 0
        %1252 = vmatmul.mubr.bf16.gmra.mrb[0].mxu0 %v1196
        %v1253 = vpop.f32.mrb[0].mxu0
        %v1254 = vadd.f32 %v1170, %v1253
        %v1255 = vpop.f32.mrb[0].mxu0
        %v1256 = vpop.f32.mrb[0].mxu0
        %v1257 = vadd.f32 %v1170, %v1256
        %v1258 = vpop.f32.mrb[0].mxu0
        %1259 = vmatprep.mubr.bf16.mxu0 0
        %1260 = vmatmul.mubr.bf16.gmra.mrb[0].mxu0 %v1199
        %v1261 = vpop.f32.mrb[0].mxu0
        %v1262 = vadd.f32 %v1170, %v1261
        %v1263 = vpop.f32.mrb[0].mxu0
        %v1264 = vpop.f32.mrb[0].mxu0
        %v1265 = vadd.f32 %v1170, %v1264
        %v1266 = vpop.f32.mrb[0].mxu0
        %1267 = vmatprep.mubr.bf16.mxu0 0
        %1268 = vmatmul.mubr.bf16.gmra.mrb[0].mxu0 %v1202
        %v1269 = vpop.f32.mrb[0].mxu0
        %v1270 = vadd.f32 %v1170, %v1269
        %v1271 = vpop.f32.mrb[0].mxu0
        %v1272 = vpop.f32.mrb[0].mxu0
        %v1273 = vadd.f32 %v1170, %v1272
        %v1274 = vpop.f32.mrb[0].mxu0
        %1275 = vmatprep.mubr.bf16.mxu0 0
        %1276 = vmatmul.mubr.bf16.gmra.mrb[0].mxu0 %v1205
        %v1277 = vpop.f32.mrb[0].mxu0
        %v1278 = vadd.f32 %v1170, %v1277
        %v1279 = vpop.f32.mrb[0].mxu0
        %v1280 = vpop.f32.mrb[0].mxu0
        %v1281 = vadd.f32 %v1170, %v1280
        %v1282 = vpop.f32.mrb[0].mxu0
        %1283 = vmatprep.mubr.bf16.mxu0 0
        %1284 = vmatmul.mubr.bf16.gmra.mrb[0].mxu0 %v1208
        %v1285 = vpop.f32.mrb[0].mxu0
        %v1286 = vadd.f32 %v1170, %v1285
        %v1287 = vpop.f32.mrb[0].mxu0
        %v1288 = vpop.f32.mrb[0].mxu0
        %v1289 = vadd.f32 %v1170, %v1288
        %v1290 = vpop.f32.mrb[0].mxu0
        %1291 = vmatprep.mubr.bf16.mxu0 0
        %1292 = vmatmul.mubr.bf16.gmra.mrb[0].mxu0 %v1211
        %v1293 = vpop.f32.mrb[0].mxu0
        %v1294 = vadd.f32 %v1170, %v1293
        %v1295 = vpop.f32.mrb[0].mxu0
        %v1296 = vpop.f32.mrb[0].mxu0
        %v1297 = vadd.f32 %v1170, %v1296
        %v1298 = vpop.f32.mrb[0].mxu0
        %1299 = vmatprep.mubr.bf16.mxu0 0
        %1300 = vmatmul.mubr.bf16.gmra.mrb[0].mxu0 %v1214
        %v1301 = vpop.f32.mrb[0].mxu0
        %v1302 = vadd.f32 %v1170, %v1301
        %v1303 = vpop.f32.mrb[0].mxu0
        %v1304 = vpop.f32.mrb[0].mxu0
        %v1305 = vadd.f32 %v1170, %v1304
        %v1306 = vpop.f32.mrb[0].mxu0
        %1307 = vmatprep.mubr.bf16.mxu0 0
        %1308 = vmatmul.mubr.bf16.gmra.mrb[0].mxu0 %v1217
        %v1309 = vpop.f32.mrb[0].mxu0
        %v1310 = vadd.f32 %v1170, %v1309
        %v1311 = vpop.f32.mrb[0].mxu0
        %v1312 = vpop.f32.mrb[0].mxu0
        %v1313 = vadd.f32 %v1170, %v1312
        %v1314 = vpop.f32.mrb[0].mxu0
        %1315 = vdwg.mxu0
        %1316 = vst [vmem:[%s250] sm:$0xff] %v1254
        %1317 = vst [vmem:[%s250 + $0x8] sm:$0xff] %v1257
        %1318 = vst [vmem:[%s250 + $0x10] sm:$0xff] %v1262
        %1319 = vst [vmem:[%s250 + $0x18] sm:$0xff] %v1265
        %1320 = vst [vmem:[%s250 + $0x20] sm:$0xff] %v1270
        %1321 = vst [vmem:[%s250 + $0x28] sm:$0xff] %v1273
        %1322 = vst [vmem:[%s250 + $0x30] sm:$0xff] %v1278
        %1323 = vst [vmem:[%s250 + $0x38] sm:$0xff] %v1281
        %1324 = vst [vmem:[%s250 + $0x40] sm:$0xff] %v1286
        %1325 = vst [vmem:[%s250 + $0x48] sm:$0xff] %v1289
        %1326 = vst [vmem:[%s250 + $0x50] sm:$0xff] %v1294
        %1327 = vst [vmem:[%s250 + $0x58] sm:$0xff] %v1297
        %1328 = vst [vmem:[%s250 + $0x60] sm:$0xff] %v1302
        %1329 = vst [vmem:[%s250 + $0x68] sm:$0xff] %v1305
        %1330 = vst [vmem:[%s250 + $0x70] sm:$0xff] %v1310
        %1331 = vst [vmem:[%s250 + $0x78] sm:$0xff] %v1313
        %v1332 = vld [vmem:[%s268] sm:$0xff]
        %v1333 = vld [vmem:[%s268 + $0x8] sm:$0xff]
        %v1334 = vld [vmem:[%s268 + $0x10] sm:$0xff]
        %v1335 = vld [vmem:[%s268 + $0x18] sm:$0xff]
        %v1336 = vld [vmem:[%s268 + $0x20] sm:$0xff]
        %v1337 = vld [vmem:[%s268 + $0x28] sm:$0xff]
        %v1338 = vld [vmem:[%s268 + $0x30] sm:$0xff]
        %v1339 = vld [vmem:[%s268 + $0x38] sm:$0xff]
        %v1340 = vld [vmem:[%s268 + $0x40] sm:$0xff]
        %v1341 = vld [vmem:[%s268 + $0x48] sm:$0xff]
        %v1342 = vld [vmem:[%s268 + $0x50] sm:$0xff]
        %v1343 = vld [vmem:[%s268 + $0x58] sm:$0xff]
        %v1344 = vld [vmem:[%s268 + $0x60] sm:$0xff]
        %v1345 = vld [vmem:[%s268 + $0x68] sm:$0xff]
        %v1346 = vld [vmem:[%s268 + $0x70] sm:$0xff]
        %v1347 = vld [vmem:[%s268 + $0x78] sm:$0xff]
        %1364 = vrot.lane.b32.xlu0 %v1332, 32
        %v1365 = vpop.permute.xlu0 %1364
        %1366 = vrot.lane.b32.xlu0 %v1333, 32
        %v1367 = vpop.permute.xlu0 %1366
        %1368 = vrot.lane.b32.xlu0 %v1334, 32
        %v1369 = vpop.permute.xlu0 %1368
        %1370 = vrot.lane.b32.xlu0 %v1335, 32
        %v1371 = vpop.permute.xlu0 %1370
        %1372 = vrot.lane.b32.xlu0 %v1336, 32
        %v1373 = vpop.permute.xlu0 %1372
        %1374 = vrot.lane.b32.xlu0 %v1337, 32
        %v1375 = vpop.permute.xlu0 %1374
        %1376 = vrot.lane.b32.xlu0 %v1338, 32
        %v1377 = vpop.permute.xlu0 %1376
        %1378 = vrot.lane.b32.xlu0 %v1339, 32
        %v1379 = vpop.permute.xlu0 %1378
        %1380 = vrot.lane.b32.xlu0 %v1340, 32
        %v1381 = vpop.permute.xlu0 %1380
        %1382 = vrot.lane.b32.xlu0 %v1341, 32
        %v1383 = vpop.permute.xlu0 %1382
        %1384 = vrot.lane.b32.xlu0 %v1342, 32
        %v1385 = vpop.permute.xlu0 %1384
        %1386 = vrot.lane.b32.xlu0 %v1343, 32
        %v1387 = vpop.permute.xlu0 %1386
        %1388 = vrot.lane.b32.xlu0 %v1344, 32
        %v1389 = vpop.permute.xlu0 %1388
        %1390 = vrot.lane.b32.xlu0 %v1345, 32
        %v1391 = vpop.permute.xlu0 %1390
        %1392 = vrot.lane.b32.xlu0 %v1346, 32
        %v1393 = vpop.permute.xlu0 %1392
        %1394 = vrot.lane.b32.xlu0 %v1347, 32
        %v1395 = vpop.permute.xlu0 %1394
        %v1412 = vsel %vm696, %v756, %v1365
        %v1413 = vsel %vm696, %v759, %v1367
        %v1414 = vsel %vm696, %v764, %v1369
        %v1415 = vsel %vm696, %v767, %v1371
        %v1416 = vsel %vm696, %v772, %v1373
        %v1417 = vsel %vm696, %v775, %v1375
        %v1418 = vsel %vm696, %v780, %v1377
        %v1419 = vsel %vm696, %v783, %v1379
        %v1420 = vsel %vm696, %v788, %v1381
        %v1421 = vsel %vm696, %v791, %v1383
        %v1422 = vsel %vm696, %v796, %v1385
        %v1423 = vsel %vm696, %v799, %v1387
        %v1424 = vsel %vm696, %v804, %v1389
        %v1425 = vsel %vm696, %v807, %v1391
        %v1426 = vsel %vm696, %v812, %v1393
        %v1427 = vsel %vm696, %v815, %v1395
        %v1428 = vld [vmem:[#allocation2 + $0xb0] sm:$0xf]
        %v1429 = vld [vmem:[#allocation2 + $0xb4] sm:$0xf]
        %v1430 = vld [vmem:[#allocation2 + $0xb8] sm:$0xf]
        %v1431 = vld [vmem:[#allocation2 + $0xbc] sm:$0xf]
        %v1432 = vld [vmem:[#allocation2 + $0xc0] sm:$0xf]
        %v1433 = vld [vmem:[#allocation2 + $0xc4] sm:$0xf]
        %v1434 = vld [vmem:[#allocation2 + $0xc8] sm:$0xf]
        %v1435 = vld [vmem:[#allocation2 + $0xcc] sm:$0xf]
        %v1436 = vpack.c.bf16 %v1413, %v1412
        %v1437 = vpack.c.bf16 %v1415, %v1414
        %v1438 = vpack.c.bf16 %v1417, %v1416
        %v1439 = vpack.c.bf16 %v1419, %v1418
        %v1440 = vpack.c.bf16 %v1421, %v1420
        %v1441 = vpack.c.bf16 %v1423, %v1422
        %v1442 = vpack.c.bf16 %v1425, %v1424
        %v1443 = vpack.c.bf16 %v1427, %v1426
        %v1444 = vld [vmem:[%s3 + $0x6] sm:$0x1]
        %v1445 = vlaneseq
        %v1446 = vshrl.u32 %v1445, 7
        %v1447 = vsub.s32 0, %v1446
        %v1448 = vrot.slane %v1444, %v1447
        %v1457 = vunpack.c.l.b16 %v1428
        %v1458 = vunpack.c.l.b16 %v1429
        %v1459 = vunpack.c.l.b16 %v1430
        %v1460 = vunpack.c.l.b16 %v1431
        %v1461 = vunpack.c.l.b16 %v1432
        %v1462 = vunpack.c.l.b16 %v1433
        %v1463 = vunpack.c.l.b16 %v1434
        %v1464 = vunpack.c.l.b16 %v1435
        %v1465 = vpack.c.b16 %v1458, %v1457
        %v1466 = vpack.c.b16 %v1460, %v1459
        %v1467 = vpack.c.b16 %v1462, %v1461
        %v1468 = vpack.c.b16 %v1464, %v1463
        %v1474 = vsel %vm529, %v1436, 0
        %v1477 = vsel %vm529, %v1437, 0
        %v1480 = vsel %vm529, %v1438, 0
        %v1483 = vsel %vm529, %v1439, 0
        %v1486 = vsel %vm529, %v1440, 0
        %v1489 = vsel %vm529, %v1441, 0
        %v1492 = vsel %vm529, %v1442, 0
        %v1495 = vsel %vm529, %v1443, 0
        %1497 = vmatprep.subr.bf16.mxu0 0
        %1498 = vmatpush1.bf16.msra.mxu0 %v1465
        %1499 = vmatprep.subr.bf16.mxu0 0
        %1500 = vmatpush1.bf16.msra.mxu0 %v1466
        %1501 = vmatprep.subr.bf16.mxu0 0
        %1502 = vmatpush1.bf16.msra.mxu0 %v1467
        %1503 = vmatprep.subr.bf16.mxu0 0
        %1504 = vmatpush1.bf16.msra.mxu0 %v1468
        %1505 = vmatprep.subr.bf16.mxu0 0
        %1506 = vmatpush1.bf16.msra.mxu0 0
        %1507 = vmatprep.subr.bf16.mxu0 0
        %1508 = vmatpush1.bf16.msra.mxu0 0
        %1509 = vmatprep.subr.bf16.mxu0 0
        %1510 = vmatpush1.bf16.msra.mxu0 0
        %1511 = vmatprep.subr.bf16.mxu0 0
        %1512 = vmatpush1.bf16.msra.mxu0 0
        %1513 = vmatprep.subr.bf16.mxu0 0
        %1514 = vmatpush1.bf16.msra.mxu0 0
        %1515 = vmatprep.subr.bf16.mxu0 0
        %1516 = vmatpush1.bf16.msra.mxu0 0
        %1517 = vmatprep.subr.bf16.mxu0 0
        %1518 = vmatpush1.bf16.msra.mxu0 0
        %1519 = vmatprep.subr.bf16.mxu0 0
        %1520 = vmatpush1.bf16.msra.mxu0 0
        %1521 = vmatprep.subr.bf16.mxu0 0
        %1522 = vmatpush1.bf16.msra.mxu0 0
        %1523 = vmatprep.subr.bf16.mxu0 0
        %1524 = vmatpush1.bf16.msra.mxu0 0
        %1525 = vmatprep.subr.bf16.mxu0 0
        %1526 = vmatpush1.bf16.msra.mxu0 0
        %1527 = vmatprep.subr.bf16.mxu0 0
        %1528 = vmatpush1.bf16.msra.mxu0 0
        %1529 = vmatprep.mubr.bf16.mxu0 0
        %1530 = vmatmul.mubr.bf16.gmra.mrb[0].mxu0 %v1474
        %v1531 = vpop.f32.mrb[0].mxu0
        %v1532 = vadd.f32 %v1448, %v1531
        %v1533 = vpop.f32.mrb[0].mxu0
        %v1534 = vpop.f32.mrb[0].mxu0
        %v1535 = vadd.f32 %v1448, %v1534
        %v1536 = vpop.f32.mrb[0].mxu0
        %1537 = vmatprep.mubr.bf16.mxu0 0
        %1538 = vmatmul.mubr.bf16.gmra.mrb[0].mxu0 %v1477
        %v1539 = vpop.f32.mrb[0].mxu0
        %v1540 = vadd.f32 %v1448, %v1539
        %v1541 = vpop.f32.mrb[0].mxu0
        %v1542 = vpop.f32.mrb[0].mxu0
        %v1543 = vadd.f32 %v1448, %v1542
        %v1544 = vpop.f32.mrb[0].mxu0
        %1545 = vmatprep.mubr.bf16.mxu0 0
        %1546 = vmatmul.mubr.bf16.gmra.mrb[0].mxu0 %v1480
        %v1547 = vpop.f32.mrb[0].mxu0
        %v1548 = vadd.f32 %v1448, %v1547
        %v1549 = vpop.f32.mrb[0].mxu0
        %v1550 = vpop.f32.mrb[0].mxu0
        %v1551 = vadd.f32 %v1448, %v1550
        %v1552 = vpop.f32.mrb[0].mxu0
        %1553 = vmatprep.mubr.bf16.mxu0 0
        %1554 = vmatmul.mubr.bf16.gmra.mrb[0].mxu0 %v1483
        %v1555 = vpop.f32.mrb[0].mxu0
        %v1556 = vadd.f32 %v1448, %v1555
        %v1557 = vpop.f32.mrb[0].mxu0
        %v1558 = vpop.f32.mrb[0].mxu0
        %v1559 = vadd.f32 %v1448, %v1558
        %v1560 = vpop.f32.mrb[0].mxu0
        %1561 = vmatprep.mubr.bf16.mxu0 0
        %1562 = vmatmul.mubr.bf16.gmra.mrb[0].mxu0 %v1486
        %v1563 = vpop.f32.mrb[0].mxu0
        %v1564 = vadd.f32 %v1448, %v1563
        %v1565 = vpop.f32.mrb[0].mxu0
        %v1566 = vpop.f32.mrb[0].mxu0
        %v1567 = vadd.f32 %v1448, %v1566
        %v1568 = vpop.f32.mrb[0].mxu0
        %1569 = vmatprep.mubr.bf16.mxu0 0
        %1570 = vmatmul.mubr.bf16.gmra.mrb[0].mxu0 %v1489
        %v1571 = vpop.f32.mrb[0].mxu0
        %v1572 = vadd.f32 %v1448, %v1571
        %v1573 = vpop.f32.mrb[0].mxu0
        %v1574 = vpop.f32.mrb[0].mxu0
        %v1575 = vadd.f32 %v1448, %v1574
        %v1576 = vpop.f32.mrb[0].mxu0
        %1577 = vmatprep.mubr.bf16.mxu0 0
        %1578 = vmatmul.mubr.bf16.gmra.mrb[0].mxu0 %v1492
        %v1579 = vpop.f32.mrb[0].mxu0
        %v1580 = vadd.f32 %v1448, %v1579
        %v1581 = vpop.f32.mrb[0].mxu0
        %v1582 = vpop.f32.mrb[0].mxu0
        %v1583 = vadd.f32 %v1448, %v1582
        %v1584 = vpop.f32.mrb[0].mxu0
        %1585 = vmatprep.mubr.bf16.mxu0 0
        %1586 = vmatmul.mubr.bf16.gmra.mrb[0].mxu0 %v1495
        %v1587 = vpop.f32.mrb[0].mxu0
        %v1588 = vadd.f32 %v1448, %v1587
        %v1589 = vpop.f32.mrb[0].mxu0
        %v1590 = vpop.f32.mrb[0].mxu0
        %v1591 = vadd.f32 %v1448, %v1590
        %v1592 = vpop.f32.mrb[0].mxu0
        %1593 = vdwg.mxu0
        %v1594 = vld [vmem:[#allocation2 + $0xd0] sm:$0xf]
        %v1595 = vld [vmem:[#allocation2 + $0xd4] sm:$0xf]
        %v1596 = vld [vmem:[#allocation2 + $0xd8] sm:$0xf]
        %v1597 = vld [vmem:[#allocation2 + $0xdc] sm:$0xf]
        %v1598 = vpack.c.bf16 %v1333, %v1332
        %v1599 = vpack.c.bf16 %v1335, %v1334
        %v1600 = vpack.c.bf16 %v1337, %v1336
        %v1601 = vpack.c.bf16 %v1339, %v1338
        %v1602 = vpack.c.bf16 %v1341, %v1340
        %v1603 = vpack.c.bf16 %v1343, %v1342
        %v1604 = vpack.c.bf16 %v1345, %v1344
        %v1605 = vpack.c.bf16 %v1347, %v1346
        %v1606 = vld [vmem:[%s3 + $0x7] sm:$0x1]
        %v1607 = vlaneseq
        %v1608 = vshrl.u32 %v1607, 7
        %v1609 = vsub.s32 0, %v1608
        %v1610 = vrot.slane %v1606, %v1609
        %v1615 = vunpack.c.l.b16 %v1594
        %v1616 = vunpack.c.l.b16 %v1595
        %v1617 = vunpack.c.l.b16 %v1596
        %v1618 = vunpack.c.l.b16 %v1597
        %v1619 = vpack.c.b16 %v1616, %v1615
        %v1620 = vpack.c.b16 %v1618, %v1617
        %v1624 = vsel %vm696, %v1598, 0
        %v1627 = vsel %vm696, %v1599, 0
        %v1630 = vsel %vm696, %v1600, 0
        %v1633 = vsel %vm696, %v1601, 0
        %v1636 = vsel %vm696, %v1602, 0
        %v1639 = vsel %vm696, %v1603, 0
        %v1642 = vsel %vm696, %v1604, 0
        %v1645 = vsel %vm696, %v1605, 0
        %1647 = vmatprep.subr.bf16.mxu0 0
        %1648 = vmatpush1.bf16.msra.mxu0 %v1619
        %1649 = vmatprep.subr.bf16.mxu0 0
        %1650 = vmatpush1.bf16.msra.mxu0 %v1620
        %1651 = vmatprep.subr.bf16.mxu0 0
        %1652 = vmatpush1.bf16.msra.mxu0 0
        %1653 = vmatprep.subr.bf16.mxu0 0
        %1654 = vmatpush1.bf16.msra.mxu0 0
        %1655 = vmatprep.subr.bf16.mxu0 0
        %1656 = vmatpush1.bf16.msra.mxu0 0
        %1657 = vmatprep.subr.bf16.mxu0 0
        %1658 = vmatpush1.bf16.msra.mxu0 0
        %1659 = vmatprep.subr.bf16.mxu0 0
        %1660 = vmatpush1.bf16.msra.mxu0 0
        %1661 = vmatprep.subr.bf16.mxu0 0
        %1662 = vmatpush1.bf16.msra.mxu0 0
        %1663 = vmatprep.subr.bf16.mxu0 0
        %1664 = vmatpush1.bf16.msra.mxu0 0
        %1665 = vmatprep.subr.bf16.mxu0 0
        %1666 = vmatpush1.bf16.msra.mxu0 0
        %1667 = vmatprep.subr.bf16.mxu0 0
        %1668 = vmatpush1.bf16.msra.mxu0 0
        %1669 = vmatprep.subr.bf16.mxu0 0
        %1670 = vmatpush1.bf16.msra.mxu0 0
        %1671 = vmatprep.subr.bf16.mxu0 0
        %1672 = vmatpush1.bf16.msra.mxu0 0
        %1673 = vmatprep.subr.bf16.mxu0 0
        %1674 = vmatpush1.bf16.msra.mxu0 0
        %1675 = vmatprep.subr.bf16.mxu0 0
        %1676 = vmatpush1.bf16.msra.mxu0 0
        %1677 = vmatprep.subr.bf16.mxu0 0
        %1678 = vmatpush1.bf16.msra.mxu0 0
        %1679 = vmatprep.mubr.bf16.mxu0 0
        %1680 = vmatmul.mubr.bf16.gmra.mrb[0].mxu0 %v1624
        %v1681 = vpop.f32.mrb[0].mxu0
        %v1682 = vadd.f32 %v1610, %v1681
        %v1683 = vpop.f32.mrb[0].mxu0
        %v1684 = vpop.f32.mrb[0].mxu0
        %v1685 = vadd.f32 %v1610, %v1684
        %v1686 = vpop.f32.mrb[0].mxu0
        %1687 = vmatprep.mubr.bf16.mxu0 0
        %1688 = vmatmul.mubr.bf16.gmra.mrb[0].mxu0 %v1627
        %v1689 = vpop.f32.mrb[0].mxu0
        %v1690 = vadd.f32 %v1610, %v1689
        %v1691 = vpop.f32.mrb[0].mxu0
        %v1692 = vpop.f32.mrb[0].mxu0
        %v1693 = vadd.f32 %v1610, %v1692
        %v1694 = vpop.f32.mrb[0].mxu0
        %1695 = vmatprep.mubr.bf16.mxu0 0
        %1696 = vmatmul.mubr.bf16.gmra.mrb[0].mxu0 %v1630
        %v1697 = vpop.f32.mrb[0].mxu0
        %v1698 = vadd.f32 %v1610, %v1697
        %v1699 = vpop.f32.mrb[0].mxu0
        %v1700 = vpop.f32.mrb[0].mxu0
        %v1701 = vadd.f32 %v1610, %v1700
        %v1702 = vpop.f32.mrb[0].mxu0
        %1703 = vmatprep.mubr.bf16.mxu0 0
        %1704 = vmatmul.mubr.bf16.gmra.mrb[0].mxu0 %v1633
        %v1705 = vpop.f32.mrb[0].mxu0
        %v1706 = vadd.f32 %v1610, %v1705
        %v1707 = vpop.f32.mrb[0].mxu0
        %v1708 = vpop.f32.mrb[0].mxu0
        %v1709 = vadd.f32 %v1610, %v1708
        %v1710 = vpop.f32.mrb[0].mxu0
        %1711 = vmatprep.mubr.bf16.mxu0 0
        %1712 = vmatmul.mubr.bf16.gmra.mrb[0].mxu0 %v1636
        %v1713 = vpop.f32.mrb[0].mxu0
        %v1714 = vadd.f32 %v1610, %v1713
        %v1715 = vpop.f32.mrb[0].mxu0
        %v1716 = vpop.f32.mrb[0].mxu0
        %v1717 = vadd.f32 %v1610, %v1716
        %v1718 = vpop.f32.mrb[0].mxu0
        %1719 = vmatprep.mubr.bf16.mxu0 0
        %1720 = vmatmul.mubr.bf16.gmra.mrb[0].mxu0 %v1639
        %v1721 = vpop.f32.mrb[0].mxu0
        %v1722 = vadd.f32 %v1610, %v1721
        %v1723 = vpop.f32.mrb[0].mxu0
        %v1724 = vpop.f32.mrb[0].mxu0
        %v1725 = vadd.f32 %v1610, %v1724
        %v1726 = vpop.f32.mrb[0].mxu0
        %1727 = vmatprep.mubr.bf16.mxu0 0
        %1728 = vmatmul.mubr.bf16.gmra.mrb[0].mxu0 %v1642
        %v1729 = vpop.f32.mrb[0].mxu0
        %v1730 = vadd.f32 %v1610, %v1729
        %v1731 = vpop.f32.mrb[0].mxu0
        %v1732 = vpop.f32.mrb[0].mxu0
        %v1733 = vadd.f32 %v1610, %v1732
        %v1734 = vpop.f32.mrb[0].mxu0
        %1735 = vmatprep.mubr.bf16.mxu0 0
        %1736 = vmatmul.mubr.bf16.gmra.mrb[0].mxu0 %v1645
        %v1737 = vpop.f32.mrb[0].mxu0
        %v1738 = vadd.f32 %v1610, %v1737
        %v1739 = vpop.f32.mrb[0].mxu0
        %v1740 = vpop.f32.mrb[0].mxu0
        %v1741 = vadd.f32 %v1610, %v1740
        %v1742 = vpop.f32.mrb[0].mxu0
        %1743 = vdwg.mxu0
        %v1744 = vxor.u32 %v1532, 2147483648
        %v1745 = vxor.u32 %v1535, 2147483648
        %v1746 = vxor.u32 %v1540, 2147483648
        %v1747 = vxor.u32 %v1543, 2147483648
        %v1748 = vxor.u32 %v1548, 2147483648
        %v1749 = vxor.u32 %v1551, 2147483648
        %v1750 = vxor.u32 %v1556, 2147483648
        %v1751 = vxor.u32 %v1559, 2147483648
        %v1752 = vxor.u32 %v1564, 2147483648
        %v1753 = vxor.u32 %v1567, 2147483648
        %v1754 = vxor.u32 %v1572, 2147483648
        %v1755 = vxor.u32 %v1575, 2147483648
        %v1756 = vxor.u32 %v1580, 2147483648
        %v1757 = vxor.u32 %v1583, 2147483648
        %v1758 = vxor.u32 %v1588, 2147483648
        %v1759 = vxor.u32 %v1591, 2147483648
        %v1760 = vmul.f32 %v1744, 1.442695
        %v1761 = vpow.pop %v1760
        %v1762 = vmul.f32 %v1745, 1.442695
        %v1763 = vpow.pop %v1762
        %v1764 = vmul.f32 %v1746, 1.442695
        %v1765 = vpow.pop %v1764
        %v1766 = vmul.f32 %v1747, 1.442695
        %v1767 = vpow.pop %v1766
        %v1768 = vmul.f32 %v1748, 1.442695
        %v1769 = vpow.pop %v1768
        %v1770 = vmul.f32 %v1749, 1.442695
        %v1771 = vpow.pop %v1770
        %v1772 = vmul.f32 %v1750, 1.442695
        %v1773 = vpow.pop %v1772
        %v1774 = vmul.f32 %v1751, 1.442695
        %v1775 = vpow.pop %v1774
        %v1776 = vmul.f32 %v1752, 1.442695
        %v1777 = vpow.pop %v1776
        %v1778 = vmul.f32 %v1753, 1.442695
        %v1779 = vpow.pop %v1778
        %v1780 = vmul.f32 %v1754, 1.442695
        %v1781 = vpow.pop %v1780
        %v1782 = vmul.f32 %v1755, 1.442695
        %v1783 = vpow.pop %v1782
        %v1784 = vmul.f32 %v1756, 1.442695
        %v1785 = vpow.pop %v1784
        %v1786 = vmul.f32 %v1757, 1.442695
        %v1787 = vpow.pop %v1786
        %v1788 = vmul.f32 %v1758, 1.442695
        %v1789 = vpow.pop %v1788
        %v1790 = vmul.f32 %v1759, 1.442695
        %v1791 = vpow.pop %v1790
        %v1792 = vadd.f32 %v1761, 1.0
        %v1793 = vadd.f32 %v1763, 1.0
        %v1794 = vadd.f32 %v1765, 1.0
        %v1795 = vadd.f32 %v1767, 1.0
        %v1796 = vadd.f32 %v1769, 1.0
        %v1797 = vadd.f32 %v1771, 1.0
        %v1798 = vadd.f32 %v1773, 1.0
        %v1799 = vadd.f32 %v1775, 1.0
        %v1800 = vadd.f32 %v1777, 1.0
        %v1801 = vadd.f32 %v1779, 1.0
        %v1802 = vadd.f32 %v1781, 1.0
        %v1803 = vadd.f32 %v1783, 1.0
        %v1804 = vadd.f32 %v1785, 1.0
        %v1805 = vadd.f32 %v1787, 1.0
        %v1806 = vadd.f32 %v1789, 1.0
        %v1807 = vadd.f32 %v1791, 1.0
        %v1808 = vrcp.pop %v1792
        %v1809 = vmul.f32 1.0, %v1808
        %v1810 = vrcp.pop %v1793
        %v1811 = vmul.f32 1.0, %v1810
        %v1812 = vrcp.pop %v1794
        %v1813 = vmul.f32 1.0, %v1812
        %v1814 = vrcp.pop %v1795
        %v1815 = vmul.f32 1.0, %v1814
        %v1816 = vrcp.pop %v1796
        %v1817 = vmul.f32 1.0, %v1816
        %v1818 = vrcp.pop %v1797
        %v1819 = vmul.f32 1.0, %v1818
        %v1820 = vrcp.pop %v1798
        %v1821 = vmul.f32 1.0, %v1820
        %v1822 = vrcp.pop %v1799
        %v1823 = vmul.f32 1.0, %v1822
        %v1824 = vrcp.pop %v1800
        %v1825 = vmul.f32 1.0, %v1824
        %v1826 = vrcp.pop %v1801
        %v1827 = vmul.f32 1.0, %v1826
        %v1828 = vrcp.pop %v1802
        %v1829 = vmul.f32 1.0, %v1828
        %v1830 = vrcp.pop %v1803
        %v1831 = vmul.f32 1.0, %v1830
        %v1832 = vrcp.pop %v1804
        %v1833 = vmul.f32 1.0, %v1832
        %v1834 = vrcp.pop %v1805
        %v1835 = vmul.f32 1.0, %v1834
        %v1836 = vrcp.pop %v1806
        %v1837 = vmul.f32 1.0, %v1836
        %v1838 = vrcp.pop %v1807
        %v1839 = vmul.f32 1.0, %v1838
        %v1840 = vmul.f32 %v1809, %v1682
        %v1841 = vmul.f32 %v1811, %v1685
        %v1842 = vmul.f32 %v1813, %v1690
        %v1843 = vmul.f32 %v1815, %v1693
        %v1844 = vmul.f32 %v1817, %v1698
        %v1845 = vmul.f32 %v1819, %v1701
        %v1846 = vmul.f32 %v1821, %v1706
        %v1847 = vmul.f32 %v1823, %v1709
        %v1848 = vmul.f32 %v1825, %v1714
        %v1849 = vmul.f32 %v1827, %v1717
        %v1850 = vmul.f32 %v1829, %v1722
        %v1851 = vmul.f32 %v1831, %v1725
        %v1852 = vmul.f32 %v1833, %v1730
        %v1853 = vmul.f32 %v1835, %v1733
        %v1854 = vmul.f32 %v1837, %v1738
        %v1855 = vmul.f32 %v1839, %v1741
        %1872 = vrot.lane.b32.xlu0 %v1840, 64
        %v1873 = vpop.permute.xlu0 %1872
        %1874 = vrot.lane.b32.xlu0 %v1841, 64
        %v1875 = vpop.permute.xlu0 %1874
        %1876 = vrot.lane.b32.xlu0 %v1842, 64
        %v1877 = vpop.permute.xlu0 %1876
        %1878 = vrot.lane.b32.xlu0 %v1843, 64
        %v1879 = vpop.permute.xlu0 %1878
        %1880 = vrot.lane.b32.xlu0 %v1844, 64
        %v1881 = vpop.permute.xlu0 %1880
        %1882 = vrot.lane.b32.xlu0 %v1845, 64
        %v1883 = vpop.permute.xlu0 %1882
        %1884 = vrot.lane.b32.xlu0 %v1846, 64
        %v1885 = vpop.permute.xlu0 %1884
        %1886 = vrot.lane.b32.xlu0 %v1847, 64
        %v1887 = vpop.permute.xlu0 %1886
        %1888 = vrot.lane.b32.xlu0 %v1848, 64
        %v1889 = vpop.permute.xlu0 %1888
        %1890 = vrot.lane.b32.xlu0 %v1849, 64
        %v1891 = vpop.permute.xlu0 %1890
        %1892 = vrot.lane.b32.xlu0 %v1850, 64
        %v1893 = vpop.permute.xlu0 %1892
        %1894 = vrot.lane.b32.xlu0 %v1851, 64
        %v1895 = vpop.permute.xlu0 %1894
        %1896 = vrot.lane.b32.xlu0 %v1852, 64
        %v1897 = vpop.permute.xlu0 %1896
        %1898 = vrot.lane.b32.xlu0 %v1853, 64
        %v1899 = vpop.permute.xlu0 %1898
        %1900 = vrot.lane.b32.xlu0 %v1854, 64
        %v1901 = vpop.permute.xlu0 %1900
        %1902 = vrot.lane.b32.xlu0 %v1855, 64
        %v1903 = vpop.permute.xlu0 %1902
        %v1920 = vadd.f32 %v1532, %v1873
        %v1921 = vadd.f32 %v1535, %v1875
        %v1922 = vadd.f32 %v1540, %v1877
        %v1923 = vadd.f32 %v1543, %v1879
        %v1924 = vadd.f32 %v1548, %v1881
        %v1925 = vadd.f32 %v1551, %v1883
        %v1926 = vadd.f32 %v1556, %v1885
        %v1927 = vadd.f32 %v1559, %v1887
        %v1928 = vadd.f32 %v1564, %v1889
        %v1929 = vadd.f32 %v1567, %v1891
        %v1930 = vadd.f32 %v1572, %v1893
        %v1931 = vadd.f32 %v1575, %v1895
        %v1932 = vadd.f32 %v1580, %v1897
        %v1933 = vadd.f32 %v1583, %v1899
        %v1934 = vadd.f32 %v1588, %v1901
        %v1935 = vadd.f32 %v1591, %v1903
        %v1936 = vtanh.pop %v1920
        %v1937 = vtanh.pop %v1921
        %v1938 = vtanh.pop %v1922
        %v1939 = vtanh.pop %v1923
        %v1940 = vtanh.pop %v1924
        %v1941 = vtanh.pop %v1925
        %v1942 = vtanh.pop %v1926
        %v1943 = vtanh.pop %v1927
        %v1944 = vtanh.pop %v1928
        %v1945 = vtanh.pop %v1929
        %v1946 = vtanh.pop %v1930
        %v1947 = vtanh.pop %v1931
        %v1948 = vtanh.pop %v1932
        %v1949 = vtanh.pop %v1933
        %v1950 = vtanh.pop %v1934
        %v1951 = vtanh.pop %v1935
        %v1952 = vsub.f32 1.0, %v1809
        %v1953 = vsub.f32 1.0, %v1811
        %v1954 = vsub.f32 1.0, %v1813
        %v1955 = vsub.f32 1.0, %v1815
        %v1956 = vsub.f32 1.0, %v1817
        %v1957 = vsub.f32 1.0, %v1819
        %v1958 = vsub.f32 1.0, %v1821
        %v1959 = vsub.f32 1.0, %v1823
        %v1960 = vsub.f32 1.0, %v1825
        %v1961 = vsub.f32 1.0, %v1827
        %v1962 = vsub.f32 1.0, %v1829
        %v1963 = vsub.f32 1.0, %v1831
        %v1964 = vsub.f32 1.0, %v1833
        %v1965 = vsub.f32 1.0, %v1835
        %v1966 = vsub.f32 1.0, %v1837
        %v1967 = vsub.f32 1.0, %v1839
        %1984 = vrot.lane.b32.xlu0 %v1936, 96
        %v1985 = vpop.permute.xlu0 %1984
        %1986 = vrot.lane.b32.xlu0 %v1937, 96
        %v1987 = vpop.permute.xlu0 %1986
        %1988 = vrot.lane.b32.xlu0 %v1938, 96
        %v1989 = vpop.permute.xlu0 %1988
        %1990 = vrot.lane.b32.xlu0 %v1939, 96
        %v1991 = vpop.permute.xlu0 %1990
        %1992 = vrot.lane.b32.xlu0 %v1940, 96
        %v1993 = vpop.permute.xlu0 %1992
        %1994 = vrot.lane.b32.xlu0 %v1941, 96
        %v1995 = vpop.permute.xlu0 %1994
        %1996 = vrot.lane.b32.xlu0 %v1942, 96
        %v1997 = vpop.permute.xlu0 %1996
        %1998 = vrot.lane.b32.xlu0 %v1943, 96
        %v1999 = vpop.permute.xlu0 %1998
        %2000 = vrot.lane.b32.xlu0 %v1944, 96
        %v2001 = vpop.permute.xlu0 %2000
        %2002 = vrot.lane.b32.xlu0 %v1945, 96
        %v2003 = vpop.permute.xlu0 %2002
        %2004 = vrot.lane.b32.xlu0 %v1946, 96
        %v2005 = vpop.permute.xlu0 %2004
        %2006 = vrot.lane.b32.xlu0 %v1947, 96
        %v2007 = vpop.permute.xlu0 %2006
        %2008 = vrot.lane.b32.xlu0 %v1948, 96
        %v2009 = vpop.permute.xlu0 %2008
        %2010 = vrot.lane.b32.xlu0 %v1949, 96
        %v2011 = vpop.permute.xlu0 %2010
        %2012 = vrot.lane.b32.xlu0 %v1950, 96
        %v2013 = vpop.permute.xlu0 %2012
        %2014 = vrot.lane.b32.xlu0 %v1951, 96
        %v2015 = vpop.permute.xlu0 %2014
        %v2032 = vmul.f32 %v1952, %v1985
        %v2033 = vmul.f32 %v1953, %v1987
        %v2034 = vmul.f32 %v1954, %v1989
        %v2035 = vmul.f32 %v1955, %v1991
        %v2036 = vmul.f32 %v1956, %v1993
        %v2037 = vmul.f32 %v1957, %v1995
        %v2038 = vmul.f32 %v1958, %v1997
        %v2039 = vmul.f32 %v1959, %v1999
        %v2040 = vmul.f32 %v1960, %v2001
        %v2041 = vmul.f32 %v1961, %v2003
        %v2042 = vmul.f32 %v1962, %v2005
        %v2043 = vmul.f32 %v1963, %v2007
        %v2044 = vmul.f32 %v1964, %v2009
        %v2045 = vmul.f32 %v1965, %v2011
        %v2046 = vmul.f32 %v1966, %v2013
        %v2047 = vmul.f32 %v1967, %v2015
        %v2048 = vmul.f32 %v1809, %v1365
        %v2049 = vmul.f32 %v1811, %v1367
        %v2050 = vmul.f32 %v1813, %v1369
        %v2051 = vmul.f32 %v1815, %v1371
        %v2052 = vmul.f32 %v1817, %v1373
        %v2053 = vmul.f32 %v1819, %v1375
        %v2054 = vmul.f32 %v1821, %v1377
        %v2055 = vmul.f32 %v1823, %v1379
        %v2056 = vmul.f32 %v1825, %v1381
        %v2057 = vmul.f32 %v1827, %v1383
        %v2058 = vmul.f32 %v1829, %v1385
        %v2059 = vmul.f32 %v1831, %v1387
        %v2060 = vmul.f32 %v1833, %v1389
        %v2061 = vmul.f32 %v1835, %v1391
        %v2062 = vmul.f32 %v1837, %v1393
        %v2063 = vmul.f32 %v1839, %v1395
        %v2064 = vadd.f32 %v2032, %v2048
        %v2065 = vadd.f32 %v2033, %v2049
        %v2066 = vadd.f32 %v2034, %v2050
        %v2067 = vadd.f32 %v2035, %v2051
        %v2068 = vadd.f32 %v2036, %v2052
        %v2069 = vadd.f32 %v2037, %v2053
        %v2070 = vadd.f32 %v2038, %v2054
        %v2071 = vadd.f32 %v2039, %v2055
        %v2072 = vadd.f32 %v2040, %v2056
        %v2073 = vadd.f32 %v2041, %v2057
        %v2074 = vadd.f32 %v2042, %v2058
        %v2075 = vadd.f32 %v2043, %v2059
        %v2076 = vadd.f32 %v2044, %v2060
        %v2077 = vadd.f32 %v2045, %v2061
        %v2078 = vadd.f32 %v2046, %v2062
        %v2079 = vadd.f32 %v2047, %v2063
        %2096 = vrot.lane.b32.xlu0 %v2064, 96
        %v2097 = vpop.permute.xlu0 %2096
        %2098 = vrot.lane.b32.xlu0 %v2065, 96
        %v2099 = vpop.permute.xlu0 %2098
        %2100 = vrot.lane.b32.xlu0 %v2066, 96
        %v2101 = vpop.permute.xlu0 %2100
        %2102 = vrot.lane.b32.xlu0 %v2067, 96
        %v2103 = vpop.permute.xlu0 %2102
        %2104 = vrot.lane.b32.xlu0 %v2068, 96
        %v2105 = vpop.permute.xlu0 %2104
        %2106 = vrot.lane.b32.xlu0 %v2069, 96
        %v2107 = vpop.permute.xlu0 %2106
        %2108 = vrot.lane.b32.xlu0 %v2070, 96
        %v2109 = vpop.permute.xlu0 %2108
        %2110 = vrot.lane.b32.xlu0 %v2071, 96
        %v2111 = vpop.permute.xlu0 %2110
        %2112 = vrot.lane.b32.xlu0 %v2072, 96
        %v2113 = vpop.permute.xlu0 %2112
        %2114 = vrot.lane.b32.xlu0 %v2073, 96
        %v2115 = vpop.permute.xlu0 %2114
        %2116 = vrot.lane.b32.xlu0 %v2074, 96
        %v2117 = vpop.permute.xlu0 %2116
        %2118 = vrot.lane.b32.xlu0 %v2075, 96
        %v2119 = vpop.permute.xlu0 %2118
        %2120 = vrot.lane.b32.xlu0 %v2076, 96
        %v2121 = vpop.permute.xlu0 %2120
        %2122 = vrot.lane.b32.xlu0 %v2077, 96
        %v2123 = vpop.permute.xlu0 %2122
        %2124 = vrot.lane.b32.xlu0 %v2078, 96
        %v2125 = vpop.permute.xlu0 %2124
        %2126 = vrot.lane.b32.xlu0 %v2079, 96
        %v2127 = vpop.permute.xlu0 %2126
        %v2144 = vsel %vm696, %v2097, %v1332
        %v2145 = vsel %vm696, %v2099, %v1333
        %v2146 = vsel %vm696, %v2101, %v1334
        %v2147 = vsel %vm696, %v2103, %v1335
        %v2148 = vsel %vm696, %v2105, %v1336
        %v2149 = vsel %vm696, %v2107, %v1337
        %v2150 = vsel %vm696, %v2109, %v1338
        %v2151 = vsel %vm696, %v2111, %v1339
        %v2152 = vsel %vm696, %v2113, %v1340
        %v2153 = vsel %vm696, %v2115, %v1341
        %v2154 = vsel %vm696, %v2117, %v1342
        %v2155 = vsel %vm696, %v2119, %v1343
        %v2156 = vsel %vm696, %v2121, %v1344
        %v2157 = vsel %vm696, %v2123, %v1345
        %v2158 = vsel %vm696, %v2125, %v1346
        %v2159 = vsel %vm696, %v2127, %v1347
        %v2160 = vld [vmem:[#allocation2 + $0xe0] sm:$0xf]
        %v2161 = vld [vmem:[#allocation2 + $0xe4] sm:$0xf]
        %v2162 = vld [vmem:[#allocation2 + $0xe8] sm:$0xf]
        %v2163 = vld [vmem:[#allocation2 + $0xec] sm:$0xf]
        %v2164 = vld [vmem:[#allocation2 + $0xf0] sm:$0xf]
        %v2165 = vld [vmem:[#allocation2 + $0xf4] sm:$0xf]
        %v2166 = vld [vmem:[#allocation2 + $0xf8] sm:$0xf]
        %v2167 = vld [vmem:[#allocation2 + $0xfc] sm:$0xf]
        %v2168 = vpack.c.bf16 %v2145, %v2144
        %v2169 = vpack.c.bf16 %v2147, %v2146
        %v2170 = vpack.c.bf16 %v2149, %v2148
        %v2171 = vpack.c.bf16 %v2151, %v2150
        %v2172 = vpack.c.bf16 %v2153, %v2152
        %v2173 = vpack.c.bf16 %v2155, %v2154
        %v2174 = vpack.c.bf16 %v2157, %v2156
        %v2175 = vpack.c.bf16 %v2159, %v2158
        %v2176 = vld [vmem:[%s3 + $0x8] sm:$0x1]
        %v2177 = vlaneseq
        %v2178 = vshrl.u32 %v2177, 7
        %v2179 = vsub.s32 0, %v2178
        %v2180 = vrot.slane %v2176, %v2179
        %v2189 = vunpack.c.l.b16 %v2160
        %v2190 = vunpack.c.l.b16 %v2161
        %v2191 = vunpack.c.l.b16 %v2162
        %v2192 = vunpack.c.l.b16 %v2163
        %v2193 = vunpack.c.l.b16 %v2164
        %v2194 = vunpack.c.l.b16 %v2165
        %v2195 = vunpack.c.l.b16 %v2166
        %v2196 = vunpack.c.l.b16 %v2167
        %v2197 = vpack.c.b16 %v2190, %v2189
        %v2198 = vpack.c.b16 %v2192, %v2191
        %v2199 = vpack.c.b16 %v2194, %v2193
        %v2200 = vpack.c.b16 %v2196, %v2195
        %v2206 = vsel %vm529, %v2168, 0
        %v2209 = vsel %vm529, %v2169, 0
        %v2212 = vsel %vm529, %v2170, 0
        %v2215 = vsel %vm529, %v2171, 0
        %v2218 = vsel %vm529, %v2172, 0
        %v2221 = vsel %vm529, %v2173, 0
        %v2224 = vsel %vm529, %v2174, 0
        %v2227 = vsel %vm529, %v2175, 0
        %2229 = vmatprep.subr.bf16.mxu0 0
        %2230 = vmatpush1.bf16.msra.mxu0 %v2197
        %2231 = vmatprep.subr.bf16.mxu0 0
        %2232 = vmatpush1.bf16.msra.mxu0 %v2198
        %2233 = vmatprep.subr.bf16.mxu0 0
        %2234 = vmatpush1.bf16.msra.mxu0 %v2199
        %2235 = vmatprep.subr.bf16.mxu0 0
        %2236 = vmatpush1.bf16.msra.mxu0 %v2200
        %2237 = vmatprep.subr.bf16.mxu0 0
        %2238 = vmatpush1.bf16.msra.mxu0 0
        %2239 = vmatprep.subr.bf16.mxu0 0
        %2240 = vmatpush1.bf16.msra.mxu0 0
        %2241 = vmatprep.subr.bf16.mxu0 0
        %2242 = vmatpush1.bf16.msra.mxu0 0
        %2243 = vmatprep.subr.bf16.mxu0 0
        %2244 = vmatpush1.bf16.msra.mxu0 0
        %2245 = vmatprep.subr.bf16.mxu0 0
        %2246 = vmatpush1.bf16.msra.mxu0 0
        %2247 = vmatprep.subr.bf16.mxu0 0
        %2248 = vmatpush1.bf16.msra.mxu0 0
        %2249 = vmatprep.subr.bf16.mxu0 0
        %2250 = vmatpush1.bf16.msra.mxu0 0
        %2251 = vmatprep.subr.bf16.mxu0 0
        %2252 = vmatpush1.bf16.msra.mxu0 0
        %2253 = vmatprep.subr.bf16.mxu0 0
        %2254 = vmatpush1.bf16.msra.mxu0 0
        %2255 = vmatprep.subr.bf16.mxu0 0
        %2256 = vmatpush1.bf16.msra.mxu0 0
        %2257 = vmatprep.subr.bf16.mxu0 0
        %2258 = vmatpush1.bf16.msra.mxu0 0
        %2259 = vmatprep.subr.bf16.mxu0 0
        %2260 = vmatpush1.bf16.msra.mxu0 0
        %2261 = vmatprep.mubr.bf16.mxu0 0
        %2262 = vmatmul.mubr.bf16.gmra.mrb[0].mxu0 %v2206
        %v2263 = vpop.f32.mrb[0].mxu0
        %v2264 = vadd.f32 %v2180, %v2263
        %v2265 = vpop.f32.mrb[0].mxu0
        %v2266 = vpop.f32.mrb[0].mxu0
        %v2267 = vadd.f32 %v2180, %v2266
        %v2268 = vpop.f32.mrb[0].mxu0
        %2269 = vmatprep.mubr.bf16.mxu0 0
        %2270 = vmatmul.mubr.bf16.gmra.mrb[0].mxu0 %v2209
        %v2271 = vpop.f32.mrb[0].mxu0
        %v2272 = vadd.f32 %v2180, %v2271
        %v2273 = vpop.f32.mrb[0].mxu0
        %v2274 = vpop.f32.mrb[0].mxu0
        %v2275 = vadd.f32 %v2180, %v2274
        %v2276 = vpop.f32.mrb[0].mxu0
        %2277 = vmatprep.mubr.bf16.mxu0 0
        %2278 = vmatmul.mubr.bf16.gmra.mrb[0].mxu0 %v2212
        %v2279 = vpop.f32.mrb[0].mxu0
        %v2280 = vadd.f32 %v2180, %v2279
        %v2281 = vpop.f32.mrb[0].mxu0
        %v2282 = vpop.f32.mrb[0].mxu0
        %v2283 = vadd.f32 %v2180, %v2282
        %v2284 = vpop.f32.mrb[0].mxu0
        %2285 = vmatprep.mubr.bf16.mxu0 0
        %2286 = vmatmul.mubr.bf16.gmra.mrb[0].mxu0 %v2215
        %v2287 = vpop.f32.mrb[0].mxu0
        %v2288 = vadd.f32 %v2180, %v2287
        %v2289 = vpop.f32.mrb[0].mxu0
        %v2290 = vpop.f32.mrb[0].mxu0
        %v2291 = vadd.f32 %v2180, %v2290
        %v2292 = vpop.f32.mrb[0].mxu0
        %2293 = vmatprep.mubr.bf16.mxu0 0
        %2294 = vmatmul.mubr.bf16.gmra.mrb[0].mxu0 %v2218
        %v2295 = vpop.f32.mrb[0].mxu0
        %v2296 = vadd.f32 %v2180, %v2295
        %v2297 = vpop.f32.mrb[0].mxu0
        %v2298 = vpop.f32.mrb[0].mxu0
        %v2299 = vadd.f32 %v2180, %v2298
        %v2300 = vpop.f32.mrb[0].mxu0
        %2301 = vmatprep.mubr.bf16.mxu0 0
        %2302 = vmatmul.mubr.bf16.gmra.mrb[0].mxu0 %v2221
        %v2303 = vpop.f32.mrb[0].mxu0
        %v2304 = vadd.f32 %v2180, %v2303
        %v2305 = vpop.f32.mrb[0].mxu0
        %v2306 = vpop.f32.mrb[0].mxu0
        %v2307 = vadd.f32 %v2180, %v2306
        %v2308 = vpop.f32.mrb[0].mxu0
        %2309 = vmatprep.mubr.bf16.mxu0 0
        %2310 = vmatmul.mubr.bf16.gmra.mrb[0].mxu0 %v2224
        %v2311 = vpop.f32.mrb[0].mxu0
        %v2312 = vadd.f32 %v2180, %v2311
        %v2313 = vpop.f32.mrb[0].mxu0
        %v2314 = vpop.f32.mrb[0].mxu0
        %v2315 = vadd.f32 %v2180, %v2314
        %v2316 = vpop.f32.mrb[0].mxu0
        %2317 = vmatprep.mubr.bf16.mxu0 0
        %2318 = vmatmul.mubr.bf16.gmra.mrb[0].mxu0 %v2227
        %v2319 = vpop.f32.mrb[0].mxu0
        %v2320 = vadd.f32 %v2180, %v2319
        %v2321 = vpop.f32.mrb[0].mxu0
        %v2322 = vpop.f32.mrb[0].mxu0
        %v2323 = vadd.f32 %v2180, %v2322
        %v2324 = vpop.f32.mrb[0].mxu0
        %2325 = vdwg.mxu0
        %v2326 = vld [vmem:[#allocation2 + $0x100] sm:$0xf]
        %v2327 = vld [vmem:[#allocation2 + $0x104] sm:$0xf]
        %v2328 = vld [vmem:[#allocation2 + $0x108] sm:$0xf]
        %v2329 = vld [vmem:[#allocation2 + $0x10c] sm:$0xf]
        %v2330 = vld [vmem:[%s3 + $0x9] sm:$0x1]
        %v2331 = vlaneseq
        %v2332 = vshrl.u32 %v2331, 7
        %v2333 = vsub.s32 0, %v2332
        %v2334 = vrot.slane %v2330, %v2333
        %2343 = vrot.lane.b32.xlu0 %v1598, 96
        %v2344 = vpop.permute.xlu0 %2343
        %2345 = vrot.lane.b32.xlu0 %v1599, 96
        %v2346 = vpop.permute.xlu0 %2345
        %2347 = vrot.lane.b32.xlu0 %v1600, 96
        %v2348 = vpop.permute.xlu0 %2347
        %2349 = vrot.lane.b32.xlu0 %v1601, 96
        %v2350 = vpop.permute.xlu0 %2349
        %2351 = vrot.lane.b32.xlu0 %v1602, 96
        %v2352 = vpop.permute.xlu0 %2351
        %2353 = vrot.lane.b32.xlu0 %v1603, 96
        %v2354 = vpop.permute.xlu0 %2353
        %2355 = vrot.lane.b32.xlu0 %v1604, 96
        %v2356 = vpop.permute.xlu0 %2355
        %2357 = vrot.lane.b32.xlu0 %v1605, 96
        %v2358 = vpop.permute.xlu0 %2357
        %v2363 = vunpack.c.l.b16 %v2326
        %v2364 = vunpack.c.l.b16 %v2327
        %v2365 = vunpack.c.l.b16 %v2328
        %v2366 = vunpack.c.l.b16 %v2329
        %v2367 = vpack.c.b16 %v2364, %v2363
        %v2368 = vpack.c.b16 %v2366, %v2365
        %v2372 = vsel %vm696, %v2344, 0
        %v2375 = vsel %vm696, %v2346, 0
        %v2378 = vsel %vm696, %v2348, 0
        %v2381 = vsel %vm696, %v2350, 0
        %v2384 = vsel %vm696, %v2352, 0
        %v2387 = vsel %vm696, %v2354, 0
        %v2390 = vsel %vm696, %v2356, 0
        %v2393 = vsel %vm696, %v2358, 0
        %2395 = vmatprep.subr.bf16.mxu0 0
        %2396 = vmatpush1.bf16.msra.mxu0 %v2367
        %2397 = vmatprep.subr.bf16.mxu0 0
        %2398 = vmatpush1.bf16.msra.mxu0 %v2368
        %2399 = vmatprep.subr.bf16.mxu0 0
        %2400 = vmatpush1.bf16.msra.mxu0 0
        %2401 = vmatprep.subr.bf16.mxu0 0
        %2402 = vmatpush1.bf16.msra.mxu0 0
        %2403 = vmatprep.subr.bf16.mxu0 0
        %2404 = vmatpush1.bf16.msra.mxu0 0
        %2405 = vmatprep.subr.bf16.mxu0 0
        %2406 = vmatpush1.bf16.msra.mxu0 0
        %2407 = vmatprep.subr.bf16.mxu0 0
        %2408 = vmatpush1.bf16.msra.mxu0 0
        %2409 = vmatprep.subr.bf16.mxu0 0
        %2410 = vmatpush1.bf16.msra.mxu0 0
        %2411 = vmatprep.subr.bf16.mxu0 0
        %2412 = vmatpush1.bf16.msra.mxu0 0
        %2413 = vmatprep.subr.bf16.mxu0 0
        %2414 = vmatpush1.bf16.msra.mxu0 0
        %2415 = vmatprep.subr.bf16.mxu0 0
        %2416 = vmatpush1.bf16.msra.mxu0 0
        %2417 = vmatprep.subr.bf16.mxu0 0
        %2418 = vmatpush1.bf16.msra.mxu0 0
        %2419 = vmatprep.subr.bf16.mxu0 0
        %2420 = vmatpush1.bf16.msra.mxu0 0
        %2421 = vmatprep.subr.bf16.mxu0 0
        %2422 = vmatpush1.bf16.msra.mxu0 0
        %2423 = vmatprep.subr.bf16.mxu0 0
        %2424 = vmatpush1.bf16.msra.mxu0 0
        %2425 = vmatprep.subr.bf16.mxu0 0
        %2426 = vmatpush1.bf16.msra.mxu0 0
        %2427 = vmatprep.mubr.bf16.mxu0 0
        %2428 = vmatmul.mubr.bf16.gmra.mrb[0].mxu0 %v2372
        %v2429 = vpop.f32.mrb[0].mxu0
        %v2430 = vadd.f32 %v2334, %v2429
        %v2431 = vpop.f32.mrb[0].mxu0
        %v2432 = vpop.f32.mrb[0].mxu0
        %v2433 = vadd.f32 %v2334, %v2432
        %v2434 = vpop.f32.mrb[0].mxu0
        %2435 = vmatprep.mubr.bf16.mxu0 0
        %2436 = vmatmul.mubr.bf16.gmra.mrb[0].mxu0 %v2375
        %v2437 = vpop.f32.mrb[0].mxu0
        %v2438 = vadd.f32 %v2334, %v2437
        %v2439 = vpop.f32.mrb[0].mxu0
        %v2440 = vpop.f32.mrb[0].mxu0
        %v2441 = vadd.f32 %v2334, %v2440
        %v2442 = vpop.f32.mrb[0].mxu0
        %2443 = vmatprep.mubr.bf16.mxu0 0
        %2444 = vmatmul.mubr.bf16.gmra.mrb[0].mxu0 %v2378
        %v2445 = vpop.f32.mrb[0].mxu0
        %v2446 = vadd.f32 %v2334, %v2445
        %v2447 = vpop.f32.mrb[0].mxu0
        %v2448 = vpop.f32.mrb[0].mxu0
        %v2449 = vadd.f32 %v2334, %v2448
        %v2450 = vpop.f32.mrb[0].mxu0
        %2451 = vmatprep.mubr.bf16.mxu0 0
        %2452 = vmatmul.mubr.bf16.gmra.mrb[0].mxu0 %v2381
        %v2453 = vpop.f32.mrb[0].mxu0
        %v2454 = vadd.f32 %v2334, %v2453
        %v2455 = vpop.f32.mrb[0].mxu0
        %v2456 = vpop.f32.mrb[0].mxu0
        %v2457 = vadd.f32 %v2334, %v2456
        %v2458 = vpop.f32.mrb[0].mxu0
        %2459 = vmatprep.mubr.bf16.mxu0 0
        %2460 = vmatmul.mubr.bf16.gmra.mrb[0].mxu0 %v2384
        %v2461 = vpop.f32.mrb[0].mxu0
        %v2462 = vadd.f32 %v2334, %v2461
        %v2463 = vpop.f32.mrb[0].mxu0
        %v2464 = vpop.f32.mrb[0].mxu0
        %v2465 = vadd.f32 %v2334, %v2464
        %v2466 = vpop.f32.mrb[0].mxu0
        %2467 = vmatprep.mubr.bf16.mxu0 0
        %2468 = vmatmul.mubr.bf16.gmra.mrb[0].mxu0 %v2387
        %v2469 = vpop.f32.mrb[0].mxu0
        %v2470 = vadd.f32 %v2334, %v2469
        %v2471 = vpop.f32.mrb[0].mxu0
        %v2472 = vpop.f32.mrb[0].mxu0
        %v2473 = vadd.f32 %v2334, %v2472
        %v2474 = vpop.f32.mrb[0].mxu0
        %2475 = vmatprep.mubr.bf16.mxu0 0
        %2476 = vmatmul.mubr.bf16.gmra.mrb[0].mxu0 %v2390
        %v2477 = vpop.f32.mrb[0].mxu0
        %v2478 = vadd.f32 %v2334, %v2477
        %v2479 = vpop.f32.mrb[0].mxu0
        %v2480 = vpop.f32.mrb[0].mxu0
        %v2481 = vadd.f32 %v2334, %v2480
        %v2482 = vpop.f32.mrb[0].mxu0
        %2483 = vmatprep.mubr.bf16.mxu0 0
        %2484 = vmatmul.mubr.bf16.gmra.mrb[0].mxu0 %v2393
        %v2485 = vpop.f32.mrb[0].mxu0
        %v2486 = vadd.f32 %v2334, %v2485
        %v2487 = vpop.f32.mrb[0].mxu0
        %v2488 = vpop.f32.mrb[0].mxu0
        %v2489 = vadd.f32 %v2334, %v2488
        %v2490 = vpop.f32.mrb[0].mxu0
        %2491 = vdwg.mxu0
        %v2492 = vxor.u32 %v2264, 2147483648
        %v2493 = vxor.u32 %v2267, 2147483648
        %v2494 = vxor.u32 %v2272, 2147483648
        %v2495 = vxor.u32 %v2275, 2147483648
        %v2496 = vxor.u32 %v2280, 2147483648
        %v2497 = vxor.u32 %v2283, 2147483648
        %v2498 = vxor.u32 %v2288, 2147483648
        %v2499 = vxor.u32 %v2291, 2147483648
        %v2500 = vxor.u32 %v2296, 2147483648
        %v2501 = vxor.u32 %v2299, 2147483648
        %v2502 = vxor.u32 %v2304, 2147483648
        %v2503 = vxor.u32 %v2307, 2147483648
        %v2504 = vxor.u32 %v2312, 2147483648
        %v2505 = vxor.u32 %v2315, 2147483648
        %v2506 = vxor.u32 %v2320, 2147483648
        %v2507 = vxor.u32 %v2323, 2147483648
        %v2508 = vmul.f32 %v2492, 1.442695
        %v2509 = vpow.pop %v2508
        %v2510 = vmul.f32 %v2493, 1.442695
        %v2511 = vpow.pop %v2510
        %v2512 = vmul.f32 %v2494, 1.442695
        %v2513 = vpow.pop %v2512
        %v2514 = vmul.f32 %v2495, 1.442695
        %v2515 = vpow.pop %v2514
        %v2516 = vmul.f32 %v2496, 1.442695
        %v2517 = vpow.pop %v2516
        %v2518 = vmul.f32 %v2497, 1.442695
        %v2519 = vpow.pop %v2518
        %v2520 = vmul.f32 %v2498, 1.442695
        %v2521 = vpow.pop %v2520
        %v2522 = vmul.f32 %v2499, 1.442695
        %v2523 = vpow.pop %v2522
        %v2524 = vmul.f32 %v2500, 1.442695
        %v2525 = vpow.pop %v2524
        %v2526 = vmul.f32 %v2501, 1.442695
        %v2527 = vpow.pop %v2526
        %v2528 = vmul.f32 %v2502, 1.442695
        %v2529 = vpow.pop %v2528
        %v2530 = vmul.f32 %v2503, 1.442695
        %v2531 = vpow.pop %v2530
        %v2532 = vmul.f32 %v2504, 1.442695
        %v2533 = vpow.pop %v2532
        %v2534 = vmul.f32 %v2505, 1.442695
        %v2535 = vpow.pop %v2534
        %v2536 = vmul.f32 %v2506, 1.442695
        %v2537 = vpow.pop %v2536
        %v2538 = vmul.f32 %v2507, 1.442695
        %v2539 = vpow.pop %v2538
        %v2540 = vadd.f32 %v2509, 1.0
        %v2541 = vadd.f32 %v2511, 1.0
        %v2542 = vadd.f32 %v2513, 1.0
        %v2543 = vadd.f32 %v2515, 1.0
        %v2544 = vadd.f32 %v2517, 1.0
        %v2545 = vadd.f32 %v2519, 1.0
        %v2546 = vadd.f32 %v2521, 1.0
        %v2547 = vadd.f32 %v2523, 1.0
        %v2548 = vadd.f32 %v2525, 1.0
        %v2549 = vadd.f32 %v2527, 1.0
        %v2550 = vadd.f32 %v2529, 1.0
        %v2551 = vadd.f32 %v2531, 1.0
        %v2552 = vadd.f32 %v2533, 1.0
        %v2553 = vadd.f32 %v2535, 1.0
        %v2554 = vadd.f32 %v2537, 1.0
        %v2555 = vadd.f32 %v2539, 1.0
        %v2556 = vrcp.pop %v2540
        %v2557 = vmul.f32 1.0, %v2556
        %v2558 = vrcp.pop %v2541
        %v2559 = vmul.f32 1.0, %v2558
        %v2560 = vrcp.pop %v2542
        %v2561 = vmul.f32 1.0, %v2560
        %v2562 = vrcp.pop %v2543
        %v2563 = vmul.f32 1.0, %v2562
        %v2564 = vrcp.pop %v2544
        %v2565 = vmul.f32 1.0, %v2564
        %v2566 = vrcp.pop %v2545
        %v2567 = vmul.f32 1.0, %v2566
        %v2568 = vrcp.pop %v2546
        %v2569 = vmul.f32 1.0, %v2568
        %v2570 = vrcp.pop %v2547
        %v2571 = vmul.f32 1.0, %v2570
        %v2572 = vrcp.pop %v2548
        %v2573 = vmul.f32 1.0, %v2572
        %v2574 = vrcp.pop %v2549
        %v2575 = vmul.f32 1.0, %v2574
        %v2576 = vrcp.pop %v2550
        %v2577 = vmul.f32 1.0, %v2576
        %v2578 = vrcp.pop %v2551
        %v2579 = vmul.f32 1.0, %v2578
        %v2580 = vrcp.pop %v2552
        %v2581 = vmul.f32 1.0, %v2580
        %v2582 = vrcp.pop %v2553
        %v2583 = vmul.f32 1.0, %v2582
        %v2584 = vrcp.pop %v2554
        %v2585 = vmul.f32 1.0, %v2584
        %v2586 = vrcp.pop %v2555
        %v2587 = vmul.f32 1.0, %v2586
        %v2588 = vmul.f32 %v2557, %v2430
        %v2589 = vmul.f32 %v2559, %v2433
        %v2590 = vmul.f32 %v2561, %v2438
        %v2591 = vmul.f32 %v2563, %v2441
        %v2592 = vmul.f32 %v2565, %v2446
        %v2593 = vmul.f32 %v2567, %v2449
        %v2594 = vmul.f32 %v2569, %v2454
        %v2595 = vmul.f32 %v2571, %v2457
        %v2596 = vmul.f32 %v2573, %v2462
        %v2597 = vmul.f32 %v2575, %v2465
        %v2598 = vmul.f32 %v2577, %v2470
        %v2599 = vmul.f32 %v2579, %v2473
        %v2600 = vmul.f32 %v2581, %v2478
        %v2601 = vmul.f32 %v2583, %v2481
        %v2602 = vmul.f32 %v2585, %v2486
        %v2603 = vmul.f32 %v2587, %v2489
        %2620 = vrot.lane.b32.xlu0 %v2588, 64
        %v2621 = vpop.permute.xlu0 %2620
        %2622 = vrot.lane.b32.xlu0 %v2589, 64
        %v2623 = vpop.permute.xlu0 %2622
        %2624 = vrot.lane.b32.xlu0 %v2590, 64
        %v2625 = vpop.permute.xlu0 %2624
        %2626 = vrot.lane.b32.xlu0 %v2591, 64
        %v2627 = vpop.permute.xlu0 %2626
        %2628 = vrot.lane.b32.xlu0 %v2592, 64
        %v2629 = vpop.permute.xlu0 %2628
        %2630 = vrot.lane.b32.xlu0 %v2593, 64
        %v2631 = vpop.permute.xlu0 %2630
        %2632 = vrot.lane.b32.xlu0 %v2594, 64
        %v2633 = vpop.permute.xlu0 %2632
        %2634 = vrot.lane.b32.xlu0 %v2595, 64
        %v2635 = vpop.permute.xlu0 %2634
        %2636 = vrot.lane.b32.xlu0 %v2596, 64
        %v2637 = vpop.permute.xlu0 %2636
        %2638 = vrot.lane.b32.xlu0 %v2597, 64
        %v2639 = vpop.permute.xlu0 %2638
        %2640 = vrot.lane.b32.xlu0 %v2598, 64
        %v2641 = vpop.permute.xlu0 %2640
        %2642 = vrot.lane.b32.xlu0 %v2599, 64
        %v2643 = vpop.permute.xlu0 %2642
        %2644 = vrot.lane.b32.xlu0 %v2600, 64
        %v2645 = vpop.permute.xlu0 %2644
        %2646 = vrot.lane.b32.xlu0 %v2601, 64
        %v2647 = vpop.permute.xlu0 %2646
        %2648 = vrot.lane.b32.xlu0 %v2602, 64
        %v2649 = vpop.permute.xlu0 %2648
        %2650 = vrot.lane.b32.xlu0 %v2603, 64
        %v2651 = vpop.permute.xlu0 %2650
        %v2668 = vadd.f32 %v2264, %v2621
        %v2669 = vadd.f32 %v2267, %v2623
        %v2670 = vadd.f32 %v2272, %v2625
        %v2671 = vadd.f32 %v2275, %v2627
        %v2672 = vadd.f32 %v2280, %v2629
        %v2673 = vadd.f32 %v2283, %v2631
        %v2674 = vadd.f32 %v2288, %v2633
        %v2675 = vadd.f32 %v2291, %v2635
        %v2676 = vadd.f32 %v2296, %v2637
        %v2677 = vadd.f32 %v2299, %v2639
        %v2678 = vadd.f32 %v2304, %v2641
        %v2679 = vadd.f32 %v2307, %v2643
        %v2680 = vadd.f32 %v2312, %v2645
        %v2681 = vadd.f32 %v2315, %v2647
        %v2682 = vadd.f32 %v2320, %v2649
        %v2683 = vadd.f32 %v2323, %v2651
        %v2684 = vtanh.pop %v2668
        %v2685 = vtanh.pop %v2669
        %v2686 = vtanh.pop %v2670
        %v2687 = vtanh.pop %v2671
        %v2688 = vtanh.pop %v2672
        %v2689 = vtanh.pop %v2673
        %v2690 = vtanh.pop %v2674
        %v2691 = vtanh.pop %v2675
        %v2692 = vtanh.pop %v2676
        %v2693 = vtanh.pop %v2677
        %v2694 = vtanh.pop %v2678
        %v2695 = vtanh.pop %v2679
        %v2696 = vtanh.pop %v2680
        %v2697 = vtanh.pop %v2681
        %v2698 = vtanh.pop %v2682
        %v2699 = vtanh.pop %v2683
        %v2700 = vsub.f32 1.0, %v2557
        %v2701 = vsub.f32 1.0, %v2559
        %v2702 = vsub.f32 1.0, %v2561
        %v2703 = vsub.f32 1.0, %v2563
        %v2704 = vsub.f32 1.0, %v2565
        %v2705 = vsub.f32 1.0, %v2567
        %v2706 = vsub.f32 1.0, %v2569
        %v2707 = vsub.f32 1.0, %v2571
        %v2708 = vsub.f32 1.0, %v2573
        %v2709 = vsub.f32 1.0, %v2575
        %v2710 = vsub.f32 1.0, %v2577
        %v2711 = vsub.f32 1.0, %v2579
        %v2712 = vsub.f32 1.0, %v2581
        %v2713 = vsub.f32 1.0, %v2583
        %v2714 = vsub.f32 1.0, %v2585
        %v2715 = vsub.f32 1.0, %v2587
        %2732 = vrot.lane.b32.xlu0 %v2684, 96
        %v2733 = vpop.permute.xlu0 %2732
        %2734 = vrot.lane.b32.xlu0 %v2685, 96
        %v2735 = vpop.permute.xlu0 %2734
        %2736 = vrot.lane.b32.xlu0 %v2686, 96
        %v2737 = vpop.permute.xlu0 %2736
        %2738 = vrot.lane.b32.xlu0 %v2687, 96
        %v2739 = vpop.permute.xlu0 %2738
        %2740 = vrot.lane.b32.xlu0 %v2688, 96
        %v2741 = vpop.permute.xlu0 %2740
        %2742 = vrot.lane.b32.xlu0 %v2689, 96
        %v2743 = vpop.permute.xlu0 %2742
        %2744 = vrot.lane.b32.xlu0 %v2690, 96
        %v2745 = vpop.permute.xlu0 %2744
        %2746 = vrot.lane.b32.xlu0 %v2691, 96
        %v2747 = vpop.permute.xlu0 %2746
        %2748 = vrot.lane.b32.xlu0 %v2692, 96
        %v2749 = vpop.permute.xlu0 %2748
        %2750 = vrot.lane.b32.xlu0 %v2693, 96
        %v2751 = vpop.permute.xlu0 %2750
        %2752 = vrot.lane.b32.xlu0 %v2694, 96
        %v2753 = vpop.permute.xlu0 %2752
        %2754 = vrot.lane.b32.xlu0 %v2695, 96
        %v2755 = vpop.permute.xlu0 %2754
        %2756 = vrot.lane.b32.xlu0 %v2696, 96
        %v2757 = vpop.permute.xlu0 %2756
        %2758 = vrot.lane.b32.xlu0 %v2697, 96
        %v2759 = vpop.permute.xlu0 %2758
        %2760 = vrot.lane.b32.xlu0 %v2698, 96
        %v2761 = vpop.permute.xlu0 %2760
        %2762 = vrot.lane.b32.xlu0 %v2699, 96
        %v2763 = vpop.permute.xlu0 %2762
        %v2780 = vmul.f32 %v2700, %v2733
        %v2781 = vmul.f32 %v2701, %v2735
        %v2782 = vmul.f32 %v2702, %v2737
        %v2783 = vmul.f32 %v2703, %v2739
        %v2784 = vmul.f32 %v2704, %v2741
        %v2785 = vmul.f32 %v2705, %v2743
        %v2786 = vmul.f32 %v2706, %v2745
        %v2787 = vmul.f32 %v2707, %v2747
        %v2788 = vmul.f32 %v2708, %v2749
        %v2789 = vmul.f32 %v2709, %v2751
        %v2790 = vmul.f32 %v2710, %v2753
        %v2791 = vmul.f32 %v2711, %v2755
        %v2792 = vmul.f32 %v2712, %v2757
        %v2793 = vmul.f32 %v2713, %v2759
        %v2794 = vmul.f32 %v2714, %v2761
        %v2795 = vmul.f32 %v2715, %v2763
        %v2796 = vmul.f32 %v2557, %v1332
        %v2797 = vmul.f32 %v2559, %v1333
        %v2798 = vmul.f32 %v2561, %v1334
        %v2799 = vmul.f32 %v2563, %v1335
        %v2800 = vmul.f32 %v2565, %v1336
        %v2801 = vmul.f32 %v2567, %v1337
        %v2802 = vmul.f32 %v2569, %v1338
        %v2803 = vmul.f32 %v2571, %v1339
        %v2804 = vmul.f32 %v2573, %v1340
        %v2805 = vmul.f32 %v2575, %v1341
        %v2806 = vmul.f32 %v2577, %v1342
        %v2807 = vmul.f32 %v2579, %v1343
        %v2808 = vmul.f32 %v2581, %v1344
        %v2809 = vmul.f32 %v2583, %v1345
        %v2810 = vmul.f32 %v2585, %v1346
        %v2811 = vmul.f32 %v2587, %v1347
        %v2812 = vadd.f32 %v2780, %v2796
        %v2813 = vadd.f32 %v2781, %v2797
        %v2814 = vadd.f32 %v2782, %v2798
        %v2815 = vadd.f32 %v2783, %v2799
        %v2816 = vadd.f32 %v2784, %v2800
        %v2817 = vadd.f32 %v2785, %v2801
        %v2818 = vadd.f32 %v2786, %v2802
        %v2819 = vadd.f32 %v2787, %v2803
        %v2820 = vadd.f32 %v2788, %v2804
        %v2821 = vadd.f32 %v2789, %v2805
        %v2822 = vadd.f32 %v2790, %v2806
        %v2823 = vadd.f32 %v2791, %v2807
        %v2824 = vadd.f32 %v2792, %v2808
        %v2825 = vadd.f32 %v2793, %v2809
        %v2826 = vadd.f32 %v2794, %v2810
        %v2827 = vadd.f32 %v2795, %v2811
        %v2828 = vmax.f32 %v2812, 0.0
        %v2829 = vmax.f32 %v2813, 0.0
        %v2830 = vmax.f32 %v2814, 0.0
        %v2831 = vmax.f32 %v2815, 0.0
        %v2832 = vmax.f32 %v2816, 0.0
        %v2833 = vmax.f32 %v2817, 0.0
        %v2834 = vmax.f32 %v2818, 0.0
        %v2835 = vmax.f32 %v2819, 0.0
        %v2836 = vmax.f32 %v2820, 0.0
        %v2837 = vmax.f32 %v2821, 0.0
        %v2838 = vmax.f32 %v2822, 0.0
        %v2839 = vmax.f32 %v2823, 0.0
        %v2840 = vmax.f32 %v2824, 0.0
        %v2841 = vmax.f32 %v2825, 0.0
        %v2842 = vmax.f32 %v2826, 0.0
        %v2843 = vmax.f32 %v2827, 0.0
        %v2844 = vld [vmem:[#allocation2 + $0x110] sm:$0xf]
        %v2845 = vld [vmem:[#allocation2 + $0x114] sm:$0xf]
        %v2846 = vld [vmem:[#allocation2 + $0x118] sm:$0xf]
        %v2847 = vld [vmem:[#allocation2 + $0x11c] sm:$0xf]
        %v2848 = vpack.c.bf16 %v2829, %v2828
        %v2849 = vpack.c.bf16 %v2831, %v2830
        %v2850 = vpack.c.bf16 %v2833, %v2832
        %v2851 = vpack.c.bf16 %v2835, %v2834
        %v2852 = vpack.c.bf16 %v2837, %v2836
        %v2853 = vpack.c.bf16 %v2839, %v2838
        %v2854 = vpack.c.bf16 %v2841, %v2840
        %v2855 = vpack.c.bf16 %v2843, %v2842
        %v2856 = vld [vmem:[%s3 + $0xa] sm:$0x1]
        %v2857 = vlaneseq
        %v2858 = vshrl.u32 %v2857, 7
        %v2859 = vsub.s32 0, %v2858
        %v2860 = vrot.slane %v2856, %v2859
        %2869 = vrot.lane.b32.xlu0 %v2848, 96
        %v2870 = vpop.permute.xlu0 %2869
        %2871 = vrot.lane.b32.xlu0 %v2849, 96
        %v2872 = vpop.permute.xlu0 %2871
        %2873 = vrot.lane.b32.xlu0 %v2850, 96
        %v2874 = vpop.permute.xlu0 %2873
        %2875 = vrot.lane.b32.xlu0 %v2851, 96
        %v2876 = vpop.permute.xlu0 %2875
        %2877 = vrot.lane.b32.xlu0 %v2852, 96
        %v2878 = vpop.permute.xlu0 %2877
        %2879 = vrot.lane.b32.xlu0 %v2853, 96
        %v2880 = vpop.permute.xlu0 %2879
        %2881 = vrot.lane.b32.xlu0 %v2854, 96
        %v2882 = vpop.permute.xlu0 %2881
        %2883 = vrot.lane.b32.xlu0 %v2855, 96
        %v2884 = vpop.permute.xlu0 %2883
        %v2889 = vunpack.c.l.b16 %v2844
        %v2890 = vunpack.c.l.b16 %v2845
        %v2891 = vunpack.c.l.b16 %v2846
        %v2892 = vunpack.c.l.b16 %v2847
        %v2893 = vpack.c.b16 %v2890, %v2889
        %v2894 = vpack.c.b16 %v2892, %v2891
        %v2898 = vsel %vm696, %v2870, 0
        %v2901 = vsel %vm696, %v2872, 0
        %v2904 = vsel %vm696, %v2874, 0
        %v2907 = vsel %vm696, %v2876, 0
        %v2910 = vsel %vm696, %v2878, 0
        %v2913 = vsel %vm696, %v2880, 0
        %v2916 = vsel %vm696, %v2882, 0
        %v2919 = vsel %vm696, %v2884, 0
        %2921 = vmatprep.subr.bf16.mxu0 0
        %2922 = vmatpush1.bf16.msra.mxu0 %v2893
        %2923 = vmatprep.subr.bf16.mxu0 0
        %2924 = vmatpush1.bf16.msra.mxu0 %v2894
        %2925 = vmatprep.subr.bf16.mxu0 0
        %2926 = vmatpush1.bf16.msra.mxu0 0
        %2927 = vmatprep.subr.bf16.mxu0 0
        %2928 = vmatpush1.bf16.msra.mxu0 0
        %2929 = vmatprep.subr.bf16.mxu0 0
        %2930 = vmatpush1.bf16.msra.mxu0 0
        %2931 = vmatprep.subr.bf16.mxu0 0
        %2932 = vmatpush1.bf16.msra.mxu0 0
        %2933 = vmatprep.subr.bf16.mxu0 0
        %2934 = vmatpush1.bf16.msra.mxu0 0
        %2935 = vmatprep.subr.bf16.mxu0 0
        %2936 = vmatpush1.bf16.msra.mxu0 0
        %2937 = vmatprep.subr.bf16.mxu0 0
        %2938 = vmatpush1.bf16.msra.mxu0 0
        %2939 = vmatprep.subr.bf16.mxu0 0
        %2940 = vmatpush1.bf16.msra.mxu0 0
        %2941 = vmatprep.subr.bf16.mxu0 0
        %2942 = vmatpush1.bf16.msra.mxu0 0
        %2943 = vmatprep.subr.bf16.mxu0 0
        %2944 = vmatpush1.bf16.msra.mxu0 0
        %2945 = vmatprep.subr.bf16.mxu0 0
        %2946 = vmatpush1.bf16.msra.mxu0 0
        %2947 = vmatprep.subr.bf16.mxu0 0
        %2948 = vmatpush1.bf16.msra.mxu0 0
        %2949 = vmatprep.subr.bf16.mxu0 0
        %2950 = vmatpush1.bf16.msra.mxu0 0
        %2951 = vmatprep.subr.bf16.mxu0 0
        %2952 = vmatpush1.bf16.msra.mxu0 0
        %2953 = vmatprep.mubr.bf16.mxu0 0
        %2954 = vmatmul.mubr.bf16.gmra.mrb[0].mxu0 %v2898
        %v2955 = vpop.f32.mrb[0].mxu0
        %v2956 = vadd.f32 %v2860, %v2955
        %v2957 = vpop.f32.mrb[0].mxu0
        %v2958 = vpop.f32.mrb[0].mxu0
        %v2959 = vadd.f32 %v2860, %v2958
        %v2960 = vpop.f32.mrb[0].mxu0
        %2961 = vmatprep.mubr.bf16.mxu0 0
        %2962 = vmatmul.mubr.bf16.gmra.mrb[0].mxu0 %v2901
        %v2963 = vpop.f32.mrb[0].mxu0
        %v2964 = vadd.f32 %v2860, %v2963
        %v2965 = vpop.f32.mrb[0].mxu0
        %v2966 = vpop.f32.mrb[0].mxu0
        %v2967 = vadd.f32 %v2860, %v2966
        %v2968 = vpop.f32.mrb[0].mxu0
        %2969 = vmatprep.mubr.bf16.mxu0 0
        %2970 = vmatmul.mubr.bf16.gmra.mrb[0].mxu0 %v2904
        %v2971 = vpop.f32.mrb[0].mxu0
        %v2972 = vadd.f32 %v2860, %v2971
        %v2973 = vpop.f32.mrb[0].mxu0
        %v2974 = vpop.f32.mrb[0].mxu0
        %v2975 = vadd.f32 %v2860, %v2974
        %v2976 = vpop.f32.mrb[0].mxu0
        %2977 = vmatprep.mubr.bf16.mxu0 0
        %2978 = vmatmul.mubr.bf16.gmra.mrb[0].mxu0 %v2907
        %v2979 = vpop.f32.mrb[0].mxu0
        %v2980 = vadd.f32 %v2860, %v2979
        %v2981 = vpop.f32.mrb[0].mxu0
        %v2982 = vpop.f32.mrb[0].mxu0
        %v2983 = vadd.f32 %v2860, %v2982
        %v2984 = vpop.f32.mrb[0].mxu0
        %2985 = vmatprep.mubr.bf16.mxu0 0
        %2986 = vmatmul.mubr.bf16.gmra.mrb[0].mxu0 %v2910
        %v2987 = vpop.f32.mrb[0].mxu0
        %v2988 = vadd.f32 %v2860, %v2987
        %v2989 = vpop.f32.mrb[0].mxu0
        %v2990 = vpop.f32.mrb[0].mxu0
        %v2991 = vadd.f32 %v2860, %v2990
        %v2992 = vpop.f32.mrb[0].mxu0
        %2993 = vmatprep.mubr.bf16.mxu0 0
        %2994 = vmatmul.mubr.bf16.gmra.mrb[0].mxu0 %v2913
        %v2995 = vpop.f32.mrb[0].mxu0
        %v2996 = vadd.f32 %v2860, %v2995
        %v2997 = vpop.f32.mrb[0].mxu0
        %v2998 = vpop.f32.mrb[0].mxu0
        %v2999 = vadd.f32 %v2860, %v2998
        %v3000 = vpop.f32.mrb[0].mxu0
        %3001 = vmatprep.mubr.bf16.mxu0 0
        %3002 = vmatmul.mubr.bf16.gmra.mrb[0].mxu0 %v2916
        %v3003 = vpop.f32.mrb[0].mxu0
        %v3004 = vadd.f32 %v2860, %v3003
        %v3005 = vpop.f32.mrb[0].mxu0
        %v3006 = vpop.f32.mrb[0].mxu0
        %v3007 = vadd.f32 %v2860, %v3006
        %v3008 = vpop.f32.mrb[0].mxu0
        %3009 = vmatprep.mubr.bf16.mxu0 0
        %3010 = vmatmul.mubr.bf16.gmra.mrb[0].mxu0 %v2919
        %v3011 = vpop.f32.mrb[0].mxu0
        %v3012 = vadd.f32 %v2860, %v3011
        %v3013 = vpop.f32.mrb[0].mxu0
        %v3014 = vpop.f32.mrb[0].mxu0
        %v3015 = vadd.f32 %v2860, %v3014
        %v3016 = vpop.f32.mrb[0].mxu0
        %3017 = vdwg.mxu0
        %vm3018 = vcmask 15360
        %v3019 = vsel %vm3018, %v2956, -inf
        %3020 = vmax.xlane.f32.xlu0 %v3019
        %v3021 = vpop.xlane.xlu0 %3020
        %v3022 = vsel %vm3018, %v2959, -inf
        %3023 = vmax.xlane.f32.xlu0 %v3022
        %v3024 = vpop.xlane.xlu0 %3023
        %v3025 = vsel %vm3018, %v2964, -inf
        %3026 = vmax.xlane.f32.xlu0 %v3025
        %v3027 = vpop.xlane.xlu0 %3026
        %v3028 = vsel %vm3018, %v2967, -inf
        %3029 = vmax.xlane.f32.xlu0 %v3028
        %v3030 = vpop.xlane.xlu0 %3029
        %v3031 = vsel %vm3018, %v2972, -inf
        %3032 = vmax.xlane.f32.xlu0 %v3031
        %v3033 = vpop.xlane.xlu0 %3032
        %v3034 = vsel %vm3018, %v2975, -inf
        %3035 = vmax.xlane.f32.xlu0 %v3034
        %v3036 = vpop.xlane.xlu0 %3035
        %v3037 = vsel %vm3018, %v2980, -inf
        %3038 = vmax.xlane.f32.xlu0 %v3037
        %v3039 = vpop.xlane.xlu0 %3038
        %v3040 = vsel %vm3018, %v2983, -inf
        %3041 = vmax.xlane.f32.xlu0 %v3040
        %v3042 = vpop.xlane.xlu0 %3041
        %v3043 = vsel %vm3018, %v2988, -inf
        %3044 = vmax.xlane.f32.xlu0 %v3043
        %v3045 = vpop.xlane.xlu0 %3044
        %v3046 = vsel %vm3018, %v2991, -inf
        %3047 = vmax.xlane.f32.xlu0 %v3046
        %v3048 = vpop.xlane.xlu0 %3047
        %v3049 = vsel %vm3018, %v2996, -inf
        %3050 = vmax.xlane.f32.xlu0 %v3049
        %v3051 = vpop.xlane.xlu0 %3050
        %v3052 = vsel %vm3018, %v2999, -inf
        %3053 = vmax.xlane.f32.xlu0 %v3052
        %v3054 = vpop.xlane.xlu0 %3053
        %v3055 = vsel %vm3018, %v3004, -inf
        %3056 = vmax.xlane.f32.xlu0 %v3055
        %v3057 = vpop.xlane.xlu0 %3056
        %v3058 = vsel %vm3018, %v3007, -inf
        %3059 = vmax.xlane.f32.xlu0 %v3058
        %v3060 = vpop.xlane.xlu0 %3059
        %v3061 = vsel %vm3018, %v3012, -inf
        %3062 = vmax.xlane.f32.xlu0 %v3061
        %v3063 = vpop.xlane.xlu0 %3062
        %v3064 = vsel %vm3018, %v3015, -inf
        %3065 = vmax.xlane.f32.xlu0 %v3064
        %v3066 = vpop.xlane.xlu0 %3065
        %v3067 = vsub.f32 %v2956, %v3021
        %v3068 = vsub.f32 %v2959, %v3024
        %v3069 = vsub.f32 %v2964, %v3027
        %v3070 = vsub.f32 %v2967, %v3030
        %v3071 = vsub.f32 %v2972, %v3033
        %v3072 = vsub.f32 %v2975, %v3036
        %v3073 = vsub.f32 %v2980, %v3039
        %v3074 = vsub.f32 %v2983, %v3042
        %v3075 = vsub.f32 %v2988, %v3045
        %v3076 = vsub.f32 %v2991, %v3048
        %v3077 = vsub.f32 %v2996, %v3051
        %v3078 = vsub.f32 %v2999, %v3054
        %v3079 = vsub.f32 %v3004, %v3057
        %v3080 = vsub.f32 %v3007, %v3060
        %v3081 = vsub.f32 %v3012, %v3063
        %v3082 = vsub.f32 %v3015, %v3066
        %v3083 = vmul.f32 %v3067, 1.442695
        %v3084 = vpow.pop %v3083
        %v3085 = vmul.f32 %v3068, 1.442695
        %v3086 = vpow.pop %v3085
        %v3087 = vmul.f32 %v3069, 1.442695
        %v3088 = vpow.pop %v3087
        %v3089 = vmul.f32 %v3070, 1.442695
        %v3090 = vpow.pop %v3089
        %v3091 = vmul.f32 %v3071, 1.442695
        %v3092 = vpow.pop %v3091
        %v3093 = vmul.f32 %v3072, 1.442695
        %v3094 = vpow.pop %v3093
        %v3095 = vmul.f32 %v3073, 1.442695
        %v3096 = vpow.pop %v3095
        %v3097 = vmul.f32 %v3074, 1.442695
        %v3098 = vpow.pop %v3097
        %v3099 = vmul.f32 %v3075, 1.442695
        %v3100 = vpow.pop %v3099
        %v3101 = vmul.f32 %v3076, 1.442695
        %v3102 = vpow.pop %v3101
        %v3103 = vmul.f32 %v3077, 1.442695
        %v3104 = vpow.pop %v3103
        %v3105 = vmul.f32 %v3078, 1.442695
        %v3106 = vpow.pop %v3105
        %v3107 = vmul.f32 %v3079, 1.442695
        %v3108 = vpow.pop %v3107
        %v3109 = vmul.f32 %v3080, 1.442695
        %v3110 = vpow.pop %v3109
        %v3111 = vmul.f32 %v3081, 1.442695
        %v3112 = vpow.pop %v3111
        %v3113 = vmul.f32 %v3082, 1.442695
        %v3114 = vpow.pop %v3113
        %v3115 = vsel %vm3018, %v3084, 0.0
        %3116 = vadd.xlane.f32.xlu0 %v3115
        %v3117 = vpop.xlane.xlu0 %3116
        %v3118 = vsel %vm3018, %v3086, 0.0
        %3119 = vadd.xlane.f32.xlu0 %v3118
        %v3120 = vpop.xlane.xlu0 %3119
        %v3121 = vsel %vm3018, %v3088, 0.0
        %3122 = vadd.xlane.f32.xlu0 %v3121
        %v3123 = vpop.xlane.xlu0 %3122
        %v3124 = vsel %vm3018, %v3090, 0.0
        %3125 = vadd.xlane.f32.xlu0 %v3124
        %v3126 = vpop.xlane.xlu0 %3125
        %v3127 = vsel %vm3018, %v3092, 0.0
        %3128 = vadd.xlane.f32.xlu0 %v3127
        %v3129 = vpop.xlane.xlu0 %3128
        %v3130 = vsel %vm3018, %v3094, 0.0
        %3131 = vadd.xlane.f32.xlu0 %v3130
        %v3132 = vpop.xlane.xlu0 %3131
        %v3133 = vsel %vm3018, %v3096, 0.0
        %3134 = vadd.xlane.f32.xlu0 %v3133
        %v3135 = vpop.xlane.xlu0 %3134
        %v3136 = vsel %vm3018, %v3098, 0.0
        %3137 = vadd.xlane.f32.xlu0 %v3136
        %v3138 = vpop.xlane.xlu0 %3137
        %v3139 = vsel %vm3018, %v3100, 0.0
        %3140 = vadd.xlane.f32.xlu0 %v3139
        %v3141 = vpop.xlane.xlu0 %3140
        %v3142 = vsel %vm3018, %v3102, 0.0
        %3143 = vadd.xlane.f32.xlu0 %v3142
        %v3144 = vpop.xlane.xlu0 %3143
        %v3145 = vsel %vm3018, %v3104, 0.0
        %3146 = vadd.xlane.f32.xlu0 %v3145
        %v3147 = vpop.xlane.xlu0 %3146
        %v3148 = vsel %vm3018, %v3106, 0.0
        %3149 = vadd.xlane.f32.xlu0 %v3148
        %v3150 = vpop.xlane.xlu0 %3149
        %v3151 = vsel %vm3018, %v3108, 0.0
        %3152 = vadd.xlane.f32.xlu0 %v3151
        %v3153 = vpop.xlane.xlu0 %3152
        %v3154 = vsel %vm3018, %v3110, 0.0
        %3155 = vadd.xlane.f32.xlu0 %v3154
        %v3156 = vpop.xlane.xlu0 %3155
        %v3157 = vsel %vm3018, %v3112, 0.0
        %3158 = vadd.xlane.f32.xlu0 %v3157
        %v3159 = vpop.xlane.xlu0 %3158
        %v3160 = vsel %vm3018, %v3114, 0.0
        %3161 = vadd.xlane.f32.xlu0 %v3160
        %v3162 = vpop.xlane.xlu0 %3161
        %v3163 = vrcp.pop %v3117
        %v3164 = vrcp.pop %v3120
        %v3165 = vrcp.pop %v3123
        %v3166 = vrcp.pop %v3126
        %v3167 = vrcp.pop %v3129
        %v3168 = vrcp.pop %v3132
        %v3169 = vrcp.pop %v3135
        %v3170 = vrcp.pop %v3138
        %v3171 = vrcp.pop %v3141
        %v3172 = vrcp.pop %v3144
        %v3173 = vrcp.pop %v3147
        %v3174 = vrcp.pop %v3150
        %v3175 = vrcp.pop %v3153
        %v3176 = vrcp.pop %v3156
        %v3177 = vrcp.pop %v3159
        %v3178 = vrcp.pop %v3162
        %v3179 = vmul.f32 %v3084, %v3163
        %v3180 = vmul.f32 %v3086, %v3164
        %v3181 = vmul.f32 %v3088, %v3165
        %v3182 = vmul.f32 %v3090, %v3166
        %v3183 = vmul.f32 %v3092, %v3167
        %v3184 = vmul.f32 %v3094, %v3168
        %v3185 = vmul.f32 %v3096, %v3169
        %v3186 = vmul.f32 %v3098, %v3170
        %v3187 = vmul.f32 %v3100, %v3171
        %v3188 = vmul.f32 %v3102, %v3172
        %v3189 = vmul.f32 %v3104, %v3173
        %v3190 = vmul.f32 %v3106, %v3174
        %v3191 = vmul.f32 %v3108, %v3175
        %v3192 = vmul.f32 %v3110, %v3176
        %v3193 = vmul.f32 %v3112, %v3177
        %v3194 = vmul.f32 %v3114, %v3178
        %3195 = vst.msk [vmem:[%s275] sm:$0xff] %vm696, %v756
        %3196 = vst.msk [vmem:[%s275 + $0x8] sm:$0xff] %vm696, %v759
        %3197 = vst.msk [vmem:[%s275 + $0x10] sm:$0xff] %vm696, %v764
        %3198 = vst.msk [vmem:[%s275 + $0x18] sm:$0xff] %vm696, %v767
        %3199 = vst.msk [vmem:[%s275 + $0x20] sm:$0xff] %vm696, %v772
        %3200 = vst.msk [vmem:[%s275 + $0x28] sm:$0xff] %vm696, %v775
        %3201 = vst.msk [vmem:[%s275 + $0x30] sm:$0xff] %vm696, %v780
        %3202 = vst.msk [vmem:[%s275 + $0x38] sm:$0xff] %vm696, %v783
        %3203 = vst.msk [vmem:[%s275 + $0x40] sm:$0xff] %vm696, %v788
        %3204 = vst.msk [vmem:[%s275 + $0x48] sm:$0xff] %vm696, %v791
        %3205 = vst.msk [vmem:[%s275 + $0x50] sm:$0xff] %vm696, %v796
        %3206 = vst.msk [vmem:[%s275 + $0x58] sm:$0xff] %vm696, %v799
        %3207 = vst.msk [vmem:[%s275 + $0x60] sm:$0xff] %vm696, %v804
        %3208 = vst.msk [vmem:[%s275 + $0x68] sm:$0xff] %vm696, %v807
        %3209 = vst.msk [vmem:[%s275 + $0x70] sm:$0xff] %vm696, %v812
        %3210 = vst.msk [vmem:[%s275 + $0x78] sm:$0xff] %vm696, %v815
        %vm3211 = vcmask 523520
        %3212 = vst.msk [vmem:[%s275] sm:$0xff] %vm3211, %v2064
        %3213 = vst.msk [vmem:[%s275 + $0x8] sm:$0xff] %vm3211, %v2065
        %3214 = vst.msk [vmem:[%s275 + $0x10] sm:$0xff] %vm3211, %v2066
        %3215 = vst.msk [vmem:[%s275 + $0x18] sm:$0xff] %vm3211, %v2067
        %3216 = vst.msk [vmem:[%s275 + $0x20] sm:$0xff] %vm3211, %v2068
        %3217 = vst.msk [vmem:[%s275 + $0x28] sm:$0xff] %vm3211, %v2069
        %3218 = vst.msk [vmem:[%s275 + $0x30] sm:$0xff] %vm3211, %v2070
        %3219 = vst.msk [vmem:[%s275 + $0x38] sm:$0xff] %vm3211, %v2071
        %3220 = vst.msk [vmem:[%s275 + $0x40] sm:$0xff] %vm3211, %v2072
        %3221 = vst.msk [vmem:[%s275 + $0x48] sm:$0xff] %vm3211, %v2073
        %3222 = vst.msk [vmem:[%s275 + $0x50] sm:$0xff] %vm3211, %v2074
        %3223 = vst.msk [vmem:[%s275 + $0x58] sm:$0xff] %vm3211, %v2075
        %3224 = vst.msk [vmem:[%s275 + $0x60] sm:$0xff] %vm3211, %v2076
        %3225 = vst.msk [vmem:[%s275 + $0x68] sm:$0xff] %vm3211, %v2077
        %3226 = vst.msk [vmem:[%s275 + $0x70] sm:$0xff] %vm3211, %v2078
        %3227 = vst.msk [vmem:[%s275 + $0x78] sm:$0xff] %vm3211, %v2079
        %3244 = vrot.lane.b32.xlu0 %v2812, 32
        %v3245 = vpop.permute.xlu0 %3244
        %3246 = vrot.lane.b32.xlu0 %v2813, 32
        %v3247 = vpop.permute.xlu0 %3246
        %3248 = vrot.lane.b32.xlu0 %v2814, 32
        %v3249 = vpop.permute.xlu0 %3248
        %3250 = vrot.lane.b32.xlu0 %v2815, 32
        %v3251 = vpop.permute.xlu0 %3250
        %3252 = vrot.lane.b32.xlu0 %v2816, 32
        %v3253 = vpop.permute.xlu0 %3252
        %3254 = vrot.lane.b32.xlu0 %v2817, 32
        %v3255 = vpop.permute.xlu0 %3254
        %3256 = vrot.lane.b32.xlu0 %v2818, 32
        %v3257 = vpop.permute.xlu0 %3256
        %3258 = vrot.lane.b32.xlu0 %v2819, 32
        %v3259 = vpop.permute.xlu0 %3258
        %3260 = vrot.lane.b32.xlu0 %v2820, 32
        %v3261 = vpop.permute.xlu0 %3260
        %3262 = vrot.lane.b32.xlu0 %v2821, 32
        %v3263 = vpop.permute.xlu0 %3262
        %3264 = vrot.lane.b32.xlu0 %v2822, 32
        %v3265 = vpop.permute.xlu0 %3264
        %3266 = vrot.lane.b32.xlu0 %v2823, 32
        %v3267 = vpop.permute.xlu0 %3266
        %3268 = vrot.lane.b32.xlu0 %v2824, 32
        %v3269 = vpop.permute.xlu0 %3268
        %3270 = vrot.lane.b32.xlu0 %v2825, 32
        %v3271 = vpop.permute.xlu0 %3270
        %3272 = vrot.lane.b32.xlu0 %v2826, 32
        %v3273 = vpop.permute.xlu0 %3272
        %3274 = vrot.lane.b32.xlu0 %v2827, 32
        %v3275 = vpop.permute.xlu0 %3274
        %vm3292 = vcmask 785920
        %3293 = vst.msk [vmem:[%s275] sm:$0xff] %vm3292, %v3245
        %3294 = vst.msk [vmem:[%s275 + $0x8] sm:$0xff] %vm3292, %v3247
        %3295 = vst.msk [vmem:[%s275 + $0x10] sm:$0xff] %vm3292, %v3249
        %3296 = vst.msk [vmem:[%s275 + $0x18] sm:$0xff] %vm3292, %v3251
        %3297 = vst.msk [vmem:[%s275 + $0x20] sm:$0xff] %vm3292, %v3253
        %3298 = vst.msk [vmem:[%s275 + $0x28] sm:$0xff] %vm3292, %v3255
        %3299 = vst.msk [vmem:[%s275 + $0x30] sm:$0xff] %vm3292, %v3257
        %3300 = vst.msk [vmem:[%s275 + $0x38] sm:$0xff] %vm3292, %v3259
        %3301 = vst.msk [vmem:[%s275 + $0x40] sm:$0xff] %vm3292, %v3261
        %3302 = vst.msk [vmem:[%s275 + $0x48] sm:$0xff] %vm3292, %v3263
        %3303 = vst.msk [vmem:[%s275 + $0x50] sm:$0xff] %vm3292, %v3265
        %3304 = vst.msk [vmem:[%s275 + $0x58] sm:$0xff] %vm3292, %v3267
        %3305 = vst.msk [vmem:[%s275 + $0x60] sm:$0xff] %vm3292, %v3269
        %3306 = vst.msk [vmem:[%s275 + $0x68] sm:$0xff] %vm3292, %v3271
        %3307 = vst.msk [vmem:[%s275 + $0x70] sm:$0xff] %vm3292, %v3273
        %3308 = vst.msk [vmem:[%s275 + $0x78] sm:$0xff] %vm3292, %v3275
        %3325 = vrot.lane.b32.xlu0 %v3179, 96
        %v3326 = vpop.permute.xlu0 %3325
        %3327 = vrot.lane.b32.xlu0 %v3180, 96
        %v3328 = vpop.permute.xlu0 %3327
        %3329 = vrot.lane.b32.xlu0 %v3181, 96
        %v3330 = vpop.permute.xlu0 %3329
        %3331 = vrot.lane.b32.xlu0 %v3182, 96
        %v3332 = vpop.permute.xlu0 %3331
        %3333 = vrot.lane.b32.xlu0 %v3183, 96
        %v3334 = vpop.permute.xlu0 %3333
        %3335 = vrot.lane.b32.xlu0 %v3184, 96
        %v3336 = vpop.permute.xlu0 %3335
        %3337 = vrot.lane.b32.xlu0 %v3185, 96
        %v3338 = vpop.permute.xlu0 %3337
        %3339 = vrot.lane.b32.xlu0 %v3186, 96
        %v3340 = vpop.permute.xlu0 %3339
        %3341 = vrot.lane.b32.xlu0 %v3187, 96
        %v3342 = vpop.permute.xlu0 %3341
        %3343 = vrot.lane.b32.xlu0 %v3188, 96
        %v3344 = vpop.permute.xlu0 %3343
        %3345 = vrot.lane.b32.xlu0 %v3189, 96
        %v3346 = vpop.permute.xlu0 %3345
        %3347 = vrot.lane.b32.xlu0 %v3190, 96
        %v3348 = vpop.permute.xlu0 %3347
        %3349 = vrot.lane.b32.xlu0 %v3191, 96
        %v3350 = vpop.permute.xlu0 %3349
        %3351 = vrot.lane.b32.xlu0 %v3192, 96
        %v3352 = vpop.permute.xlu0 %3351
        %3353 = vrot.lane.b32.xlu0 %v3193, 96
        %v3354 = vpop.permute.xlu0 %3353
        %3355 = vrot.lane.b32.xlu0 %v3194, 96
        %v3356 = vpop.permute.xlu0 %3355
        %vm3373 = vcmask 802560
        %3374 = vst.msk [vmem:[%s275] sm:$0xff] %vm3373, %v3326
        %3375 = vst.msk [vmem:[%s275 + $0x8] sm:$0xff] %vm3373, %v3328
        %3376 = vst.msk [vmem:[%s275 + $0x10] sm:$0xff] %vm3373, %v3330
        %3377 = vst.msk [vmem:[%s275 + $0x18] sm:$0xff] %vm3373, %v3332
        %3378 = vst.msk [vmem:[%s275 + $0x20] sm:$0xff] %vm3373, %v3334
        %3379 = vst.msk [vmem:[%s275 + $0x28] sm:$0xff] %vm3373, %v3336
        %3380 = vst.msk [vmem:[%s275 + $0x30] sm:$0xff] %vm3373, %v3338
        %3381 = vst.msk [vmem:[%s275 + $0x38] sm:$0xff] %vm3373, %v3340
        %3382 = vst.msk [vmem:[%s275 + $0x40] sm:$0xff] %vm3373, %v3342
        %3383 = vst.msk [vmem:[%s275 + $0x48] sm:$0xff] %vm3373, %v3344
        %3384 = vst.msk [vmem:[%s275 + $0x50] sm:$0xff] %vm3373, %v3346
        %3385 = vst.msk [vmem:[%s275 + $0x58] sm:$0xff] %vm3373, %v3348
        %3386 = vst.msk [vmem:[%s275 + $0x60] sm:$0xff] %vm3373, %v3350
        %3387 = vst.msk [vmem:[%s275 + $0x68] sm:$0xff] %vm3373, %v3352
        %3388 = vst.msk [vmem:[%s275 + $0x70] sm:$0xff] %vm3373, %v3354
        %3389 = vst.msk [vmem:[%s275 + $0x78] sm:$0xff] %vm3373, %v3356
        %vm3390 = vcmask 1048336
        %3391 = vst.msk [vmem:[%s275] sm:$0xff] %vm3390, 0.0
        %3392 = vst.msk [vmem:[%s275 + $0x8] sm:$0xff] %vm3390, 0.0
        %3393 = vst.msk [vmem:[%s275 + $0x10] sm:$0xff] %vm3390, 0.0
        %3394 = vst.msk [vmem:[%s275 + $0x18] sm:$0xff] %vm3390, 0.0
        %3395 = vst.msk [vmem:[%s275 + $0x20] sm:$0xff] %vm3390, 0.0
        %3396 = vst.msk [vmem:[%s275 + $0x28] sm:$0xff] %vm3390, 0.0
        %3397 = vst.msk [vmem:[%s275 + $0x30] sm:$0xff] %vm3390, 0.0
        %3398 = vst.msk [vmem:[%s275 + $0x38] sm:$0xff] %vm3390, 0.0
        %3399 = vst.msk [vmem:[%s275 + $0x40] sm:$0xff] %vm3390, 0.0
        %3400 = vst.msk [vmem:[%s275 + $0x48] sm:$0xff] %vm3390, 0.0
        %3401 = vst.msk [vmem:[%s275 + $0x50] sm:$0xff] %vm3390, 0.0
        %3402 = vst.msk [vmem:[%s275 + $0x58] sm:$0xff] %vm3390, 0.0
        %3403 = vst.msk [vmem:[%s275 + $0x60] sm:$0xff] %vm3390, 0.0
        %3404 = vst.msk [vmem:[%s275 + $0x68] sm:$0xff] %vm3390, 0.0
        %3405 = vst.msk [vmem:[%s275 + $0x70] sm:$0xff] %vm3390, 0.0
        %3406 = vst.msk [vmem:[%s275 + $0x78] sm:$0xff] %vm3390, 0.0
        %s3407 = sand.u32 %s123, 1
        %s3408 = scalar_lea.sflag [#allocation4], %s3407
        %s3409 = sand.u32 %s123, 1
        %s3410 = smul.addr %s3409, 128
        %s3411 = scalar_lea.vmem [#allocation5], %s3410
        %s3412 = smul.u32 16, %s21
        %p3413 = scmp.lt.s32.totalorder %s3412, 63
        %s3414 = scalar_select %p3413, %s3412, 63
        %s3415 = smul.addr %s3414, 8
        %s3416 = scalar_lea.vmem %s5, %s3415
        // Predicated region
        $region41: #{forward.1} parent=35 // pred_check
          %p3417 = pneg %p133
        $region42: #{forward.1} parent=35 // pred_check_branch
          %3419 = sbr.rel (%p3417) target = $region44
        $region43: #{forward.1} parent=35 // pred_region
          %s3420 = smul.u32 16, %s21
          %s3422 = ssub.s32 2048, 2048
          %3423 = vsyncadd %s3408, %s3422
          %s3424 = smul.addr %s3420, 128
          %s3425 = scalar_lea.hbm %s4, %s3424
          %s3426 = sshll.u32 %s3411, 4
          %s3427 = int_to_ptr.vmem [resolvable:$true] %s3426
          %3432 = dma.vmem_to_hbm [thread:$0]  %s3427, 2048, %s3425, %s3408, 128, 128, 8
        $region44: #{forward.1} parent=35 // pred_fallthru
          _
        // Predicated region
        $region45: #{forward.1} parent=35 // pred_check
          %p3433 = pneg %p159
        $region46: #{forward.1} parent=35 // pred_check_branch
          %3435 = sbr.rel (%p3433) target = $region48
        $region47: #{forward.1} parent=35 // pred_region
          %s3436 = smul.u32 16, %s21
        $region48: #{forward.1} parent=35 // pred_fallthru
          _
      $region36: #{forward.1} parent=5 // pred_fallthru
        _
      %p3437 = scmp.le.s32.totalorder 2, %s16
      // Predicated region
      $region49: #{forward.1} parent=5 // pred_check
        %p3438 = pneg %p3437
      $region50: #{forward.1} parent=5 // pred_check_branch
        %3440 = sbr.rel (%p3438) target = $region52
      $region51: #{forward.1} parent=5 // pred_region
        %s3441 = ssub.s32 %s16, 2
        // Predicated region
        $region53: #{forward.1} parent=51 // pred_check
          %p3442 = pneg %p139
        $region54: #{forward.1} parent=51 // pred_check_branch
          %3444 = sbr.rel (%p3442) target = $region56
        $region55: #{forward.1} parent=51 // pred_region
          %s3445 = sand.u32 %s124, 1
          %s3446 = scalar_lea.sflag [#allocation4], %s3445
          %s3447 = sand.u32 %s124, 1
          %s3448 = smul.addr %s3447, 128
          %s3449 = scalar_lea.vmem [#allocation5], %s3448
          %3450 = dma.done %s3446, 2048
        $region56: #{forward.1} parent=51 // pred_fallthru
          _
        // Predicated region
        $region57: #{forward.1} parent=51 // pred_check
          %p3451 = pneg %p165
        $region58: #{forward.1} parent=51 // pred_check_branch
          %3453 = sbr.rel (%p3451) target = $region60
        $region59: #{forward.1} parent=51 // pred_region
          %s3454 = smul.u32 16, %s22
          %p3455 = scmp.lt.s32.totalorder %s3454, 63
          %s3456 = scalar_select %p3455, %s3454, 63
          %s3457 = smul.addr %s3456, 8
          %s3458 = scalar_lea.vmem %s5, %s3457
        $region60: #{forward.1} parent=51 // pred_fallthru
          _
      $region52: #{forward.1} parent=5 // pred_fallthru
        _
    $region6: #{forward.1} parent=1 // loop_footer
      %s20 = sadd.s32 1, %s16
    $region7: #{forward.1} parent=1 // loop_footer_branch
      %15 = sbr.rel target = $region3
    $region8: #{forward.1} parent=1 // loop_exit
      _
    %3459 = vsyncpa [#allocation3], 1
    %s3460 = scalar_lea.sflag [#allocation3], 1
    %3461 = vsyncpa %s3460, 1
    %3462 = vsyncpa [#allocation4], 1
    %s3463 = scalar_lea.sflag [#allocation4], 1
    %3464 = vsyncpa %s3463, 1

</llo_original>
